<compile_context>
chip_gen: v6e
topology: v6e:2x2x1
jax: 0.10.0
libtpu: 0.0.40
codegen_flags: <defaults>
</compile_context>

<pallas_src>
import functools

import jax
import jax.numpy as jnp
import numpy as np
from jax import lax
from jax.experimental import pallas as pl
from jax.experimental.pallas import tpu as pltpu

_LRELU_SLOPE = 0.2
_BN_EPS = 0.8  # nn.BatchNorm1d(out_feat, 0.8): second positional arg is eps.

_H1, _H2, _H3, _H4 = 128, 256, 512, 1024  # intrinsic hidden widths of the module


def _round_up(x, m):
    return (x + m - 1) // m * m


def _cgen_kernel(z_ref, emb_ref, w1a_ref, w1b_ref, w2_ref, w3_ref, vec_ref,
                 w4_hbm, w5_hbm, out_ref, w4_vmem, w5_vmem, sem, *, out_pad):
    """Whole CGenerator MLP: 5 matmuls + 3 BatchNorms + activations, fused."""
    # Start streaming the two biggest weights now so their DMAs overlap the
    # layer-1..3 compute. (All other operands were auto-DMA'd in the prologue.)
    cp4 = pltpu.make_async_copy(w4_hbm, w4_vmem, sem.at[0])
    cp5 = pltpu.make_async_copy(w5_hbm, w5_vmem, sem.at[1])
    cp4.start()
    cp5.start()

    def mm(x, w):
        # bf16 MXU operands, f32 accumulation (single-pass MXU on v5e/v6e/v7x).
        return jnp.dot(x.astype(jnp.bfloat16), w, preferred_element_type=jnp.float32)

    def lrelu(x):
        # slope < 1  =>  max(x, 0.2*x) == LeakyReLU_0.2(x); one VPU max.
        return jnp.maximum(x, _LRELU_SLOPE * x)

    def bnorm(x, g, bt):
        # Training-mode BatchNorm1d: exact batch stats, biased variance, eps=0.8.
        m = jnp.mean(x, axis=0, keepdims=True)
        d = x - m
        v = jnp.mean(d * d, axis=0, keepdims=True)
        return d * lax.rsqrt(v + _BN_EPS) * g + bt

    # Static (zero-cost) slices into the single packed small-parameter vector.
    off = 0

    def nxt(n):
        nonlocal off
        s = off
        off += n
        return vec_ref[:, s:s + n]

    b1 = nxt(_H1)
    b2, g2, bt2 = nxt(_H2), nxt(_H2), nxt(_H2)
    b3, g3, bt3 = nxt(_H3), nxt(_H3), nxt(_H3)
    b4, g4, bt4 = nxt(_H4), nxt(_H4), nxt(_H4)
    b5 = nxt(out_pad)

    # concat([z, emb]) @ W1 == z @ W1[:latent] + emb @ W1[latent:]  (no lane concat).
    h = lrelu(mm(z_ref[...], w1a_ref[...]) + mm(emb_ref[...], w1b_ref[...]) + b1)
    h = lrelu(bnorm(mm(h, w2_ref[...]) + b2, g2, bt2))
    h = lrelu(bnorm(mm(h, w3_ref[...]) + b3, g3, bt3))

    cp4.wait()  # w4 has been streaming since kernel entry
    h = lrelu(bnorm(mm(h, w4_vmem[...]) + b4, g4, bt4))

    cp5.wait()
    out_ref[...] = jnp.tanh(mm(h, w5_vmem[...]) + b5)


def prepare_params(params, latent, img_shape):
    """One-time preprocessing, hoisted out of the per-step forward path.

    * Weights pre-cast to bf16 (MXU operand dtype).
    * w1 pre-split into z / embedding halves.
    * 11 small 1-D vectors packed into one (1, total) f32 operand.
    * w5/b5 columns padded to a multiple of 128 (lane-dense output stores).
    """
    f32, bf16 = jnp.float32, jnp.bfloat16
    out_dim = int(np.prod(img_shape))
    out_pad = _round_up(out_dim, 128)

    w1 = jnp.asarray(params["w1"], bf16)
    w5 = jnp.asarray(params["w5"], f32)
    b5 = jnp.asarray(params["b5"], f32)
    if out_pad != out_dim:
        w5 = jnp.pad(w5, ((0, 0), (0, out_pad - out_dim)))
        b5 = jnp.pad(b5, (0, out_pad - out_dim))

    small = [params["b1"],
             params["b2"], params["g2"], params["bt2"],
             params["b3"], params["g3"], params["bt3"],
             params["b4"], params["g4"], params["bt4"]]
    vec = jnp.concatenate([jnp.asarray(v, f32).reshape(-1) for v in small]
                          + [b5.reshape(-1)]).reshape(1, -1)

    return {
        "we": jnp.asarray(params["we"], f32),
        "be": jnp.asarray(params["be"], f32).reshape(1, -1),
        "w1a": w1[:latent],
        "w1b": w1[latent:],
        "w2": jnp.asarray(params["w2"], bf16),
        "w3": jnp.asarray(params["w3"], bf16),
        "w4": jnp.asarray(params["w4"], bf16),
        "w5": w5.astype(bf16),
        "vec": vec,
    }


@functools.partial(jax.jit, static_argnames=("img_shape",))
def cgenerator_forward(z, labels, p, img_shape):
    """Forward pass of CGenerator; `p` comes from prepare_params()."""
    B, latent = z.shape
    out_dim = int(np.prod(img_shape))
    out_pad = _round_up(out_dim, 128)
    f32, bf16 = jnp.float32, jnp.bfloat16

    # Class embedding as a tiny f32 matmul in the (jitted) wrapper: removes the
    # narrow-lane (B, n_classes) operand, one tiny MXU op and two DMAs.
    emb = jnp.dot(labels.astype(f32), p["we"]) + p["be"]          # (B, latent)

    def full(shape):
        nd = len(shape)
        return pl.BlockSpec(shape, lambda i, _n=nd: (0,) * _n)

    kernel = functools.partial(_cgen_kernel, out_pad=out_pad)

    img_flat = pl.pallas_call(
        kernel,
        out_shape=jax.ShapeDtypeStruct((B, out_pad), f32),
        grid=(1,),
        in_specs=[
            full(z.shape),
            full((B, latent)),
            full(p["w1a"].shape), full(p["w1b"].shape),
            full(p["w2"].shape), full(p["w3"].shape),
            full(p["vec"].shape),
            pl.BlockSpec(memory_space=pl.ANY),   # w4: manual, overlapped DMA
            pl.BlockSpec(memory_space=pl.ANY),   # w5: manual, overlapped DMA
        ],
        out_specs=full((B, out_pad)),
        scratch_shapes=[
            pltpu.VMEM((_H3, _H4), bf16),        # w4 landing buffer
            pltpu.VMEM((_H4, out_pad), bf16),    # w5 landing buffer
            pltpu.SemaphoreType.DMA((2,)),
        ],
        compiler_params=pltpu.CompilerParams(
            dimension_semantics=("arbitrary",),
            vmem_limit_bytes=32 * 1024 * 1024),
    )(z.astype(f32), emb, p["w1a"], p["w1b"], p["w2"], p["w3"], p["vec"],
      p["w4"], p["w5"])

    if out_pad != out_dim:
        img_flat = img_flat[:, :out_dim]
    return img_flat.reshape(B, *img_shape)


def _reference(z, labels, params, img_shape):
    """Pure-JAX reference with matching numerics (bf16 MXU, f32 elementwise)."""
    def mm(x, w):
        return jnp.dot(x.astype(jnp.bfloat16), jnp.asarray(w, jnp.bfloat16),
                       preferred_element_type=jnp.float32)

    def lrelu(x):
        return jnp.maximum(x, _LRELU_SLOPE * x)

    def bnorm(x, g, b):
        m = jnp.mean(x, axis=0, keepdims=True)
        d = x - m
        v = jnp.mean(d * d, axis=0, keepdims=True)
        return d * lax.rsqrt(v + _BN_EPS) * g + b

    emb = jnp.dot(labels, jnp.asarray(params["we"], jnp.float32)) + params["be"]
    gi = jnp.concatenate([z, emb], axis=-1)
    h = lrelu(mm(gi, params["w1"]) + params["b1"])
    h = lrelu(bnorm(mm(h, params["w2"]) + params["b2"], params["g2"], params["bt2"]))
    h = lrelu(bnorm(mm(h, params["w3"]) + params["b3"], params["g3"], params["bt3"]))
    h = lrelu(bnorm(mm(h, params["w4"]) + params["b4"], params["g4"], params["bt4"]))
    out = jnp.tanh(mm(h, params["w5"]) + params["b5"])
    return out.reshape(z.shape[0], *img_shape)


if __name__ == "__main__":
    # Small shapes consistent with the module: hidden widths 128/256/512/1024 are
    # intrinsic; use latent_dim=128 (default), a small class count and image.
    B, n_classes, latent = 8, 16, 128
    img_shape = (3, 16, 16)
    out_dim = int(np.prod(img_shape))

    keys = jax.random.split(jax.random.PRNGKey(0), 20)

    def nrm(k, shape, s=0.1):
        return s * jax.random.normal(k, shape, jnp.float32)

    params = {
        "we": nrm(keys[0], (n_classes, latent)), "be": nrm(keys[1], (latent,)),
        "w1": nrm(keys[2], (2 * latent, _H1)),   "b1": nrm(keys[3], (_H1,)),
        "w2": nrm(keys[4], (_H1, _H2)),          "b2": nrm(keys[5], (_H2,)),
        "g2": 1.0 + nrm(keys[6], (_H2,)),        "bt2": nrm(keys[7], (_H2,)),
        "w3": nrm(keys[8], (_H2, _H3)),          "b3": nrm(keys[9], (_H3,)),
        "g3": 1.0 + nrm(keys[10], (_H3,)),       "bt3": nrm(keys[11], (_H3,)),
        "w4": nrm(keys[12], (_H3, _H4)),         "b4": nrm(keys[13], (_H4,)),
        "g4": 1.0 + nrm(keys[14], (_H4,)),       "bt4": nrm(keys[15], (_H4,)),
        "w5": nrm(keys[16], (_H4, out_dim)),     "b5": nrm(keys[17], (out_dim,)),
    }

    z = jax.random.normal(keys[18], (B, latent), jnp.float32)
    label_ids = jax.random.randint(keys[19], (B,), 0, n_classes)
    labels = jax.nn.one_hot(label_ids, n_classes, dtype=jnp.float32)

    prepped = prepare_params(params, latent, img_shape)   # one-time, off the hot path

    img = cgenerator_forward(z, labels, prepped, img_shape=img_shape)
    img = jax.block_until_ready(img)
    assert img.shape == (B, *img_shape)

    ref = _reference(z, labels, params, img_shape)
    np.testing.assert_allclose(np.asarray(img), np.asarray(ref),
                               rtol=2e-3, atol=2e-3)
    print("KERNEL_OK")
</pallas_src>

<mosaic_0001>
module attributes {stable_mosaic.version = 11 : i64} {
  func.func @_cgen_kernel(%arg0: i32, %arg1: memref<8x128xf32, #tpu.memory_space<vmem>>, %arg2: memref<8x128xf32, #tpu.memory_space<vmem>>, %arg3: memref<128x128xbf16, #tpu.memory_space<vmem>>, %arg4: memref<128x128xbf16, #tpu.memory_space<vmem>>, %arg5: memref<128x256xbf16, #tpu.memory_space<vmem>>, %arg6: memref<256x512xbf16, #tpu.memory_space<vmem>>, %arg7: memref<1x6272xf32, #tpu.memory_space<vmem>>, %arg8: memref<512x1024xbf16, #tpu.memory_space<any>>, %arg9: memref<1024x768xbf16, #tpu.memory_space<any>>, %arg10: memref<8x768xf32, #tpu.memory_space<vmem>>, %arg11: memref<512x1024xbf16, #tpu.memory_space<vmem>>, %arg12: memref<1024x768xbf16, #tpu.memory_space<vmem>>, %arg13: memref<2x!tpu.dma_semaphore, #tpu.memory_space<semaphore_mem>>) attributes {dimension_semantics = [#tpu.dimension_semantics<arbitrary>], iteration_bounds = array<i64: 1>, scalar_prefetch = 0 : i64, scratch_operands = 3 : i64, tpu.core_type = #tpu.core_type<tc>, window_params = [{pipeline_mode = #tpu.pipeline_mode<synchronous>, transform_indices = @transform_0, window_bounds = array<i64: 8, 128>}, {pipeline_mode = #tpu.pipeline_mode<synchronous>, transform_indices = @transform_1, window_bounds = array<i64: 8, 128>}, {pipeline_mode = #tpu.pipeline_mode<synchronous>, transform_indices = @transform_2, window_bounds = array<i64: 128, 128>}, {pipeline_mode = #tpu.pipeline_mode<synchronous>, transform_indices = @transform_3, window_bounds = array<i64: 128, 128>}, {pipeline_mode = #tpu.pipeline_mode<synchronous>, transform_indices = @transform_4, window_bounds = array<i64: 128, 256>}, {pipeline_mode = #tpu.pipeline_mode<synchronous>, transform_indices = @transform_5, window_bounds = array<i64: 256, 512>}, {pipeline_mode = #tpu.pipeline_mode<synchronous>, transform_indices = @transform_6, window_bounds = array<i64: 1, 6272>}, {}, {}, {pipeline_mode = #tpu.pipeline_mode<synchronous>, transform_indices = @transform_9, window_bounds = array<i64: 8, 768>}]} {
    %c0_i32 = arith.constant 0 : i32
    %0 = tpu.memref_slice %arg13[%c0_i32] : memref<2x!tpu.dma_semaphore, #tpu.memory_space<semaphore_mem>> -> memref<1x!tpu.dma_semaphore, #tpu.memory_space<semaphore_mem>>
    %1 = tpu.memref_squeeze %0 : memref<1x!tpu.dma_semaphore, #tpu.memory_space<semaphore_mem>> -> memref<!tpu.dma_semaphore, #tpu.memory_space<semaphore_mem>>
    tpu.enqueue_dma source(%arg8 : memref<512x1024xbf16, #tpu.memory_space<any>>) target(%arg11 : memref<512x1024xbf16, #tpu.memory_space<vmem>>) target_semaphore(%1 : memref<!tpu.dma_semaphore, #tpu.memory_space<semaphore_mem>>)
    %c1_i32 = arith.constant 1 : i32
    %2 = tpu.memref_slice %arg13[%c1_i32] : memref<2x!tpu.dma_semaphore, #tpu.memory_space<semaphore_mem>> -> memref<1x!tpu.dma_semaphore, #tpu.memory_space<semaphore_mem>>
    %3 = tpu.memref_squeeze %2 : memref<1x!tpu.dma_semaphore, #tpu.memory_space<semaphore_mem>> -> memref<!tpu.dma_semaphore, #tpu.memory_space<semaphore_mem>>
    tpu.enqueue_dma source(%arg9 : memref<1024x768xbf16, #tpu.memory_space<any>>) target(%arg12 : memref<1024x768xbf16, #tpu.memory_space<vmem>>) target_semaphore(%3 : memref<!tpu.dma_semaphore, #tpu.memory_space<semaphore_mem>>)
    %c0 = arith.constant 0 : index
    %c0_0 = arith.constant 0 : index
    %4 = vector.load %arg7[%c0, %c0_0] : memref<1x6272xf32, #tpu.memory_space<vmem>>, vector<1x128xf32>
    %c0_1 = arith.constant 0 : index
    %c128 = arith.constant 128 : index
    %5 = vector.load %arg7[%c0_1, %c128] : memref<1x6272xf32, #tpu.memory_space<vmem>>, vector<1x256xf32>
    %c0_2 = arith.constant 0 : index
    %c384 = arith.constant 384 : index
    %6 = vector.load %arg7[%c0_2, %c384] : memref<1x6272xf32, #tpu.memory_space<vmem>>, vector<1x256xf32>
    %c0_3 = arith.constant 0 : index
    %c640 = arith.constant 640 : index
    %7 = vector.load %arg7[%c0_3, %c640] : memref<1x6272xf32, #tpu.memory_space<vmem>>, vector<1x256xf32>
    %c0_4 = arith.constant 0 : index
    %c896 = arith.constant 896 : index
    %8 = vector.load %arg7[%c0_4, %c896] : memref<1x6272xf32, #tpu.memory_space<vmem>>, vector<1x512xf32>
    %c0_5 = arith.constant 0 : index
    %c1408 = arith.constant 1408 : index
    %9 = vector.load %arg7[%c0_5, %c1408] : memref<1x6272xf32, #tpu.memory_space<vmem>>, vector<1x512xf32>
    %c0_6 = arith.constant 0 : index
    %c1920 = arith.constant 1920 : index
    %10 = vector.load %arg7[%c0_6, %c1920] : memref<1x6272xf32, #tpu.memory_space<vmem>>, vector<1x512xf32>
    %c0_7 = arith.constant 0 : index
    %c2432 = arith.constant 2432 : index
    %11 = vector.load %arg7[%c0_7, %c2432] : memref<1x6272xf32, #tpu.memory_space<vmem>>, vector<1x1024xf32>
    %c0_8 = arith.constant 0 : index
    %c3456 = arith.constant 3456 : index
    %12 = vector.load %arg7[%c0_8, %c3456] : memref<1x6272xf32, #tpu.memory_space<vmem>>, vector<1x1024xf32>
    %c0_9 = arith.constant 0 : index
    %c4480 = arith.constant 4480 : index
    %13 = vector.load %arg7[%c0_9, %c4480] : memref<1x6272xf32, #tpu.memory_space<vmem>>, vector<1x1024xf32>
    %c0_10 = arith.constant 0 : index
    %c5504 = arith.constant 5504 : index
    %14 = vector.load %arg7[%c0_10, %c5504] : memref<1x6272xf32, #tpu.memory_space<vmem>>, vector<1x768xf32>
    %c0_11 = arith.constant 0 : index
    %c0_12 = arith.constant 0 : index
    %15 = vector.load %arg1[%c0_11, %c0_12] : memref<8x128xf32, #tpu.memory_space<vmem>>, vector<8x128xf32>
    %c0_13 = arith.constant 0 : index
    %c0_14 = arith.constant 0 : index
    %16 = vector.load %arg3[%c0_13, %c0_14] : memref<128x128xbf16, #tpu.memory_space<vmem>>, vector<128x128xbf16>
    %17 = arith.truncf %15 : vector<8x128xf32> to vector<8x128xbf16>
    %cst = arith.constant dense<0.000000e+00> : vector<8x128xf32>
    %18 = tpu.matmul %17, %16, %cst {dimension_numbers = #tpu.dot_dimension_numbers<[1], [0], [0], [1], [0, 0, 1, 1], [], []>} : vector<8x128xbf16>, vector<128x128xbf16>, vector<8x128xf32> -> vector<8x128xf32>
    %c0_15 = arith.constant 0 : index
    %c0_16 = arith.constant 0 : index
    %19 = vector.load %arg2[%c0_15, %c0_16] : memref<8x128xf32, #tpu.memory_space<vmem>>, vector<8x128xf32>
    %c0_17 = arith.constant 0 : index
    %c0_18 = arith.constant 0 : index
    %20 = vector.load %arg4[%c0_17, %c0_18] : memref<128x128xbf16, #tpu.memory_space<vmem>>, vector<128x128xbf16>
    %21 = arith.truncf %19 : vector<8x128xf32> to vector<8x128xbf16>
    %cst_19 = arith.constant dense<0.000000e+00> : vector<8x128xf32>
    %22 = tpu.matmul %21, %20, %cst_19 {dimension_numbers = #tpu.dot_dimension_numbers<[1], [0], [0], [1], [0, 0, 1, 1], [], []>} : vector<8x128xbf16>, vector<128x128xbf16>, vector<8x128xf32> -> vector<8x128xf32>
    %23 = arith.addf %18, %22 : vector<8x128xf32>
    %24 = vector.broadcast %4 : vector<1x128xf32> to vector<8x128xf32>
    %25 = arith.addf %23, %24 : vector<8x128xf32>
    %cst_20 = arith.constant 2.000000e-01 : f32
    %26 = vector.broadcast %cst_20 : f32 to vector<8x128xf32>
    %27 = arith.mulf %26, %25 : vector<8x128xf32>
    %28 = arith.maximumf %25, %27 : vector<8x128xf32>
    %c0_21 = arith.constant 0 : index
    %c0_22 = arith.constant 0 : index
    %29 = vector.load %arg5[%c0_21, %c0_22] : memref<128x256xbf16, #tpu.memory_space<vmem>>, vector<128x256xbf16>
    %30 = arith.truncf %28 : vector<8x128xf32> to vector<8x128xbf16>
    %cst_23 = arith.constant dense<0.000000e+00> : vector<8x256xf32>
    %31 = tpu.matmul %30, %29, %cst_23 {dimension_numbers = #tpu.dot_dimension_numbers<[1], [0], [0], [1], [0, 0, 1, 1], [], []>} : vector<8x128xbf16>, vector<128x256xbf16>, vector<8x256xf32> -> vector<8x256xf32>
    %32 = vector.broadcast %5 : vector<1x256xf32> to vector<8x256xf32>
    %33 = arith.addf %31, %32 : vector<8x256xf32>
    %cst_24 = arith.constant dense<0.000000e+00> : vector<256xf32>
    %34 = vector.multi_reduction <add>, %33, %cst_24 [0] : vector<8x256xf32> to vector<256xf32>
    %35 = vector.shape_cast %34 : vector<256xf32> to vector<1x256xf32>
    %cst_25 = arith.constant 8.000000e+00 : f32
    %36 = vector.broadcast %cst_25 : f32 to vector<1x256xf32>
    %37 = arith.divf %35, %36 : vector<1x256xf32>
    %38 = vector.broadcast %37 : vector<1x256xf32> to vector<8x256xf32>
    %39 = arith.subf %33, %38 : vector<8x256xf32>
    %40 = arith.mulf %39, %39 : vector<8x256xf32>
    %cst_26 = arith.constant dense<0.000000e+00> : vector<256xf32>
    %41 = vector.multi_reduction <add>, %40, %cst_26 [0] : vector<8x256xf32> to vector<256xf32>
    %42 = vector.shape_cast %41 : vector<256xf32> to vector<1x256xf32>
    %cst_27 = arith.constant 8.000000e+00 : f32
    %43 = vector.broadcast %cst_27 : f32 to vector<1x256xf32>
    %44 = arith.divf %42, %43 : vector<1x256xf32>
    %cst_28 = arith.constant 8.000000e-01 : f32
    %45 = vector.broadcast %cst_28 : f32 to vector<1x256xf32>
    %46 = arith.addf %44, %45 : vector<1x256xf32>
    %47 = math.rsqrt %46 : vector<1x256xf32>
    %48 = vector.broadcast %47 : vector<1x256xf32> to vector<8x256xf32>
    %49 = arith.mulf %39, %48 : vector<8x256xf32>
    %50 = vector.broadcast %6 : vector<1x256xf32> to vector<8x256xf32>
    %51 = arith.mulf %49, %50 : vector<8x256xf32>
    %52 = vector.broadcast %7 : vector<1x256xf32> to vector<8x256xf32>
    %53 = arith.addf %51, %52 : vector<8x256xf32>
    %cst_29 = arith.constant 2.000000e-01 : f32
    %54 = vector.broadcast %cst_29 : f32 to vector<8x256xf32>
    %55 = arith.mulf %54, %53 : vector<8x256xf32>
    %56 = arith.maximumf %53, %55 : vector<8x256xf32>
    %c0_30 = arith.constant 0 : index
    %c0_31 = arith.constant 0 : index
    %57 = vector.load %arg6[%c0_30, %c0_31] : memref<256x512xbf16, #tpu.memory_space<vmem>>, vector<256x512xbf16>
    %58 = arith.truncf %56 : vector<8x256xf32> to vector<8x256xbf16>
    %cst_32 = arith.constant dense<0.000000e+00> : vector<8x512xf32>
    %59 = tpu.matmul %58, %57, %cst_32 {dimension_numbers = #tpu.dot_dimension_numbers<[1], [0], [0], [1], [0, 0, 1, 1], [], []>} : vector<8x256xbf16>, vector<256x512xbf16>, vector<8x512xf32> -> vector<8x512xf32>
    %60 = vector.broadcast %8 : vector<1x512xf32> to vector<8x512xf32>
    %61 = arith.addf %59, %60 : vector<8x512xf32>
    %cst_33 = arith.constant dense<0.000000e+00> : vector<512xf32>
    %62 = vector.multi_reduction <add>, %61, %cst_33 [0] : vector<8x512xf32> to vector<512xf32>
    %63 = vector.shape_cast %62 : vector<512xf32> to vector<1x512xf32>
    %cst_34 = arith.constant 8.000000e+00 : f32
    %64 = vector.broadcast %cst_34 : f32 to vector<1x512xf32>
    %65 = arith.divf %63, %64 : vector<1x512xf32>
    %66 = vector.broadcast %65 : vector<1x512xf32> to vector<8x512xf32>
    %67 = arith.subf %61, %66 : vector<8x512xf32>
    %68 = arith.mulf %67, %67 : vector<8x512xf32>
    %cst_35 = arith.constant dense<0.000000e+00> : vector<512xf32>
    %69 = vector.multi_reduction <add>, %68, %cst_35 [0] : vector<8x512xf32> to vector<512xf32>
    %70 = vector.shape_cast %69 : vector<512xf32> to vector<1x512xf32>
    %cst_36 = arith.constant 8.000000e+00 : f32
    %71 = vector.broadcast %cst_36 : f32 to vector<1x512xf32>
    %72 = arith.divf %70, %71 : vector<1x512xf32>
    %cst_37 = arith.constant 8.000000e-01 : f32
    %73 = vector.broadcast %cst_37 : f32 to vector<1x512xf32>
    %74 = arith.addf %72, %73 : vector<1x512xf32>
    %75 = math.rsqrt %74 : vector<1x512xf32>
    %76 = vector.broadcast %75 : vector<1x512xf32> to vector<8x512xf32>
    %77 = arith.mulf %67, %76 : vector<8x512xf32>
    %78 = vector.broadcast %9 : vector<1x512xf32> to vector<8x512xf32>
    %79 = arith.mulf %77, %78 : vector<8x512xf32>
    %80 = vector.broadcast %10 : vector<1x512xf32> to vector<8x512xf32>
    %81 = arith.addf %79, %80 : vector<8x512xf32>
    %cst_38 = arith.constant 2.000000e-01 : f32
    %82 = vector.broadcast %cst_38 : f32 to vector<8x512xf32>
    %83 = arith.mulf %82, %81 : vector<8x512xf32>
    %84 = arith.maximumf %81, %83 : vector<8x512xf32>
    %c0_i32_39 = arith.constant 0 : i32
    %85 = tpu.memref_slice %arg13[%c0_i32_39] : memref<2x!tpu.dma_semaphore, #tpu.memory_space<semaphore_mem>> -> memref<1x!tpu.dma_semaphore, #tpu.memory_space<semaphore_mem>>
    %86 = tpu.memref_squeeze %85 : memref<1x!tpu.dma_semaphore, #tpu.memory_space<semaphore_mem>> -> memref<!tpu.dma_semaphore, #tpu.memory_space<semaphore_mem>>
    tpu.wait_dma2 semaphore(%86 : memref<!tpu.dma_semaphore, #tpu.memory_space<semaphore_mem>>) src(%arg8 : memref<512x1024xbf16, #tpu.memory_space<any>>) dst(%arg11 : memref<512x1024xbf16, #tpu.memory_space<vmem>>)
    %c0_40 = arith.constant 0 : index
    %c0_41 = arith.constant 0 : index
    %87 = vector.load %arg11[%c0_40, %c0_41] : memref<512x1024xbf16, #tpu.memory_space<vmem>>, vector<512x1024xbf16>
    %88 = arith.truncf %84 : vector<8x512xf32> to vector<8x512xbf16>
    %cst_42 = arith.constant dense<0.000000e+00> : vector<8x1024xf32>
    %89 = tpu.matmul %88, %87, %cst_42 {dimension_numbers = #tpu.dot_dimension_numbers<[1], [0], [0], [1], [0, 0, 1, 1], [], []>} : vector<8x512xbf16>, vector<512x1024xbf16>, vector<8x1024xf32> -> vector<8x1024xf32>
    %90 = vector.broadcast %11 : vector<1x1024xf32> to vector<8x1024xf32>
    %91 = arith.addf %89, %90 : vector<8x1024xf32>
    %cst_43 = arith.constant dense<0.000000e+00> : vector<1024xf32>
    %92 = vector.multi_reduction <add>, %91, %cst_43 [0] : vector<8x1024xf32> to vector<1024xf32>
    %93 = vector.shape_cast %92 : vector<1024xf32> to vector<1x1024xf32>
    %cst_44 = arith.constant 8.000000e+00 : f32
    %94 = vector.broadcast %cst_44 : f32 to vector<1x1024xf32>
    %95 = arith.divf %93, %94 : vector<1x1024xf32>
    %96 = vector.broadcast %95 : vector<1x1024xf32> to vector<8x1024xf32>
    %97 = arith.subf %91, %96 : vector<8x1024xf32>
    %98 = arith.mulf %97, %97 : vector<8x1024xf32>
    %cst_45 = arith.constant dense<0.000000e+00> : vector<1024xf32>
    %99 = vector.multi_reduction <add>, %98, %cst_45 [0] : vector<8x1024xf32> to vector<1024xf32>
    %100 = vector.shape_cast %99 : vector<1024xf32> to vector<1x1024xf32>
    %cst_46 = arith.constant 8.000000e+00 : f32
    %101 = vector.broadcast %cst_46 : f32 to vector<1x1024xf32>
    %102 = arith.divf %100, %101 : vector<1x1024xf32>
    %cst_47 = arith.constant 8.000000e-01 : f32
    %103 = vector.broadcast %cst_47 : f32 to vector<1x1024xf32>
    %104 = arith.addf %102, %103 : vector<1x1024xf32>
    %105 = math.rsqrt %104 : vector<1x1024xf32>
    %106 = vector.broadcast %105 : vector<1x1024xf32> to vector<8x1024xf32>
    %107 = arith.mulf %97, %106 : vector<8x1024xf32>
    %108 = vector.broadcast %12 : vector<1x1024xf32> to vector<8x1024xf32>
    %109 = arith.mulf %107, %108 : vector<8x1024xf32>
    %110 = vector.broadcast %13 : vector<1x1024xf32> to vector<8x1024xf32>
    %111 = arith.addf %109, %110 : vector<8x1024xf32>
    %cst_48 = arith.constant 2.000000e-01 : f32
    %112 = vector.broadcast %cst_48 : f32 to vector<8x1024xf32>
    %113 = arith.mulf %112, %111 : vector<8x1024xf32>
    %114 = arith.maximumf %111, %113 : vector<8x1024xf32>
    %c1_i32_49 = arith.constant 1 : i32
    %115 = tpu.memref_slice %arg13[%c1_i32_49] : memref<2x!tpu.dma_semaphore, #tpu.memory_space<semaphore_mem>> -> memref<1x!tpu.dma_semaphore, #tpu.memory_space<semaphore_mem>>
    %116 = tpu.memref_squeeze %115 : memref<1x!tpu.dma_semaphore, #tpu.memory_space<semaphore_mem>> -> memref<!tpu.dma_semaphore, #tpu.memory_space<semaphore_mem>>
    tpu.wait_dma2 semaphore(%116 : memref<!tpu.dma_semaphore, #tpu.memory_space<semaphore_mem>>) src(%arg9 : memref<1024x768xbf16, #tpu.memory_space<any>>) dst(%arg12 : memref<1024x768xbf16, #tpu.memory_space<vmem>>)
    %c0_50 = arith.constant 0 : index
    %c0_51 = arith.constant 0 : index
    %117 = vector.load %arg12[%c0_50, %c0_51] : memref<1024x768xbf16, #tpu.memory_space<vmem>>, vector<1024x768xbf16>
    %118 = arith.truncf %114 : vector<8x1024xf32> to vector<8x1024xbf16>
    %cst_52 = arith.constant dense<0.000000e+00> : vector<8x768xf32>
    %119 = tpu.matmul %118, %117, %cst_52 {dimension_numbers = #tpu.dot_dimension_numbers<[1], [0], [0], [1], [0, 0, 1, 1], [], []>} : vector<8x1024xbf16>, vector<1024x768xbf16>, vector<8x768xf32> -> vector<8x768xf32>
    %120 = vector.broadcast %14 : vector<1x768xf32> to vector<8x768xf32>
    %121 = arith.addf %119, %120 : vector<8x768xf32>
    %122 = math.tanh %121 : vector<8x768xf32>
    %c0_53 = arith.constant 0 : index
    %c0_54 = arith.constant 0 : index
    %123 = vector.load %arg10[%c0_53, %c0_54] : memref<8x768xf32, #tpu.memory_space<vmem>>, vector<8x768xf32>
    tpu.vector_store %arg10[%c0_53, %c0_54], %122 {strides = array<i32>} : memref<8x768xf32, #tpu.memory_space<vmem>>, vector<8x768xf32>,
    return
  }
  func.func @transform_0(%arg0: i32) -> (i32, i32) {
    %c0_i32 = arith.constant 0 : i32
    %c0_i32_0 = arith.constant 0 : i32
    %c0_i32_1 = arith.constant 0 : i32
    return %c0_i32, %c0_i32_0 : i32, i32
  }
  func.func @transform_1(%arg0: i32) -> (i32, i32) {
    %c0_i32 = arith.constant 0 : i32
    %c0_i32_0 = arith.constant 0 : i32
    %c0_i32_1 = arith.constant 0 : i32
    return %c0_i32, %c0_i32_0 : i32, i32
  }
  func.func @transform_2(%arg0: i32) -> (i32, i32) {
    %c0_i32 = arith.constant 0 : i32
    %c0_i32_0 = arith.constant 0 : i32
    %c0_i32_1 = arith.constant 0 : i32
    return %c0_i32, %c0_i32_0 : i32, i32
  }
  func.func @transform_3(%arg0: i32) -> (i32, i32) {
    %c0_i32 = arith.constant 0 : i32
    %c0_i32_0 = arith.constant 0 : i32
    %c0_i32_1 = arith.constant 0 : i32
    return %c0_i32, %c0_i32_0 : i32, i32
  }
  func.func @transform_4(%arg0: i32) -> (i32, i32) {
    %c0_i32 = arith.constant 0 : i32
    %c0_i32_0 = arith.constant 0 : i32
    %c0_i32_1 = arith.constant 0 : i32
    return %c0_i32, %c0_i32_0 : i32, i32
  }
  func.func @transform_5(%arg0: i32) -> (i32, i32) {
    %c0_i32 = arith.constant 0 : i32
    %c0_i32_0 = arith.constant 0 : i32
    %c0_i32_1 = arith.constant 0 : i32
    return %c0_i32, %c0_i32_0 : i32, i32
  }
  func.func @transform_6(%arg0: i32) -> (i32, i32) {
    %c0_i32 = arith.constant 0 : i32
    %c0_i32_0 = arith.constant 0 : i32
    %c0_i32_1 = arith.constant 0 : i32
    return %c0_i32, %c0_i32_0 : i32, i32
  }
  func.func @transform_9(%arg0: i32) -> (i32, i32) {
    %c0_i32 = arith.constant 0 : i32
    %c0_i32_0 = arith.constant 0 : i32
    %c0_i32_1 = arith.constant 0 : i32
    return %c0_i32, %c0_i32_0 : i32, i32
  }
}

</mosaic_0001>

<llo_original>
// kernel: cgenerator_forward.1
$region0: #{cgenerator_forward.1}
  #allocation0 [shape = 'u32[]', space=smem, size = 0x4, offset = 0x4, fixed_abs, tag = 'smem constant byte address 0x4 - core index']
  #allocation1 [shape = 'u32[144,128]{1,0:T(1,128)}', space=vmem, size = 0x12000, scoped, tag = 'internal scratch']
  #allocation2 [shape = 'bf16[512,1024]{1,0:T(8,128)(2,1)}', space=vmem, size = 0x100000, scoped, tag = 'scratch operand']
  #allocation3 [shape = 'bf16[1024,768]{1,0:T(8,128)(2,1)}', space=vmem, size = 0x180000, scoped, tag = 'scratch operand']
  #allocation4 [shape = 's32[2]{0}', space=sflag, size = 0x8, scoped, tag = 'scratch operand']
  #allocation15 [shape = 's32[]', space=sflag, size = 0x4, offset = 0, fixed_abs, tag = 'sflag constant byte address 0x0 - dummy sync flag']
  #allocation16 [shape = 's32[]', space=sflag, size = 0x4, offset = 0, fixed_abs, tag = 'sflag constant byte address 0x0 - dummy sync flag']
  #allocation17 [shape = 'u32[]', space=smem, size = 0x4, offset = 0x44, fixed_abs, tag = 'smem constant byte address 0x44 - assertion arg 0']
  #allocation18 [shape = 'u32[]', space=smem, size = 0x4, offset = 0x48, fixed_abs, tag = 'smem constant byte address 0x48 - assertion arg 1']
  #allocation19 [shape = 's32[]', space=sflag, size = 0x4, offset = 0, fixed_abs, tag = 'sflag constant byte address 0x0 - dummy sync flag']
  #allocation20 [shape = 's32[]', space=sflag, size = 0x4, offset = 0, fixed_abs, tag = 'sflag constant byte address 0x0 - dummy sync flag']
  %s0 = inlined_call_operand.hbm [shape: f32[8,128], index: 0, kind: input, shape index: {}]
  %s1 = inlined_call_operand.vmem [shape: f32[8,128], index: 1, kind: input, shape index: {}]
  %s2 = inlined_call_operand.hbm [shape: bf16[128,128], index: 2, kind: input, shape index: {}]
  %s3 = inlined_call_operand.hbm [shape: bf16[128,128], index: 3, kind: input, shape index: {}]
  %s4 = inlined_call_operand.hbm [shape: bf16[128,256], index: 4, kind: input, shape index: {}]
  %s5 = inlined_call_operand.hbm [shape: bf16[256,512], index: 5, kind: input, shape index: {}]
  %s6 = inlined_call_operand.hbm [shape: f32[1,6272], index: 6, kind: input, shape index: {}]
  %s7 = inlined_call_operand.hbm [shape: bf16[512,1024], index: 7, kind: input, shape index: {}]
  %s8 = inlined_call_operand.hbm [shape: bf16[1024,768], index: 8, kind: input, shape index: {}]
  %s9 = inlined_call_operand.vmem [shape: f32[8,768], index: 9, kind: output, shape index: {}]
  %s10 = sld [smem:[#allocation0]]
  $region70: #{cgenerator_forward.1} parent=0
    _
  %s12 = ssub.s32 1, %s10
  %s13 = scalar_select 0, %s12, %s10
  $region1: #{cgenerator_forward.1} parent=0
    #allocation5 [shape = 'u8[4096]{0}', space=vmem, size = 0x1000, scoped, tag = 'input window, operand 0, single buffered']
    #allocation6 [shape = 's32[1]{0}', space=sflag, size = 0x4, scoped, tag = 'scoped memory for cgenerator_forward.1']
    #allocation7 [shape = 'u8[32768]{0}', space=vmem, size = 0x8000, scoped, tag = 'input window, operand 2, single buffered']
    #allocation8 [shape = 's32[1]{0}', space=sflag, size = 0x4, scoped, tag = 'scoped memory for cgenerator_forward.1']
    #allocation9 [shape = 'u8[32768]{0}', space=vmem, size = 0x8000, scoped, tag = 'input window, operand 3, single buffered']
    #allocation10 [shape = 'u8[65536]{0}', space=vmem, size = 0x10000, scoped, tag = 'input window, operand 4, single buffered']
    #allocation11 [shape = 's32[1]{0}', space=sflag, size = 0x4, scoped, tag = 'scoped memory for cgenerator_forward.1']
    #allocation12 [shape = 'u8[262144]{0}', space=vmem, size = 0x40000, scoped, tag = 'input window, operand 5, single buffered']
    #allocation13 [shape = 'u8[25088]{0}', space=vmem, size = 0x6400, scoped, tag = 'input window, operand 6, single buffered']
    #allocation14 [shape = 's32[1]{0}', space=sflag, size = 0x4, scoped, tag = 'scoped memory for cgenerator_forward.1']
    %14 = vsyncpa [#allocation6], 0
    %15 = vsyncpa [#allocation8], 0
    %16 = vsyncpa [#allocation11], 0
    %17 = vsyncpa [#allocation14], 0
    // Predicated region
    $region2: #{cgenerator_forward.1} parent=1 // pred_check
      _
    $region3: #{cgenerator_forward.1} parent=1 // pred_check_branch
      %19 = sbr.rel (0) target = $region5
    $region4: #{cgenerator_forward.1} parent=1 // pred_region
      %s21 = ssub.s32 128, 128
      %22 = vsyncadd [#allocation6], %s21
      %s24 = sshll.u32 [#allocation5], 4
      %s25 = int_to_ptr.vmem [resolvable:$true] %s24
      %27 = dma.hbm_to_vmem [thread:$0]  %s0, 128, %s25, [#allocation6]
    $region5: #{cgenerator_forward.1} parent=1 // pred_fallthru
      _
    // Predicated region
    $region6: #{cgenerator_forward.1} parent=1 // pred_check
      _
    $region7: #{cgenerator_forward.1} parent=1 // pred_check_branch
      %29 = sbr.rel (0) target = $region9
    $region8: #{cgenerator_forward.1} parent=1 // pred_region
      _
    $region9: #{cgenerator_forward.1} parent=1 // pred_fallthru
      _
    // Predicated region
    $region10: #{cgenerator_forward.1} parent=1 // pred_check
      _
    $region11: #{cgenerator_forward.1} parent=1 // pred_check_branch
      %31 = sbr.rel (0) target = $region13
    $region12: #{cgenerator_forward.1} parent=1 // pred_region
      %s33 = ssub.s32 1024, 1024
      %34 = vsyncadd [#allocation8], %s33
      %s35 = sshll.u32 [#allocation7], 4
      %s36 = int_to_ptr.vmem [resolvable:$true] %s35
      %41 = dma.hbm_to_vmem [thread:$0]  %s2, 1024, %s36, [#allocation8], 64, 64, 4
    $region13: #{cgenerator_forward.1} parent=1 // pred_fallthru
      _
    // Predicated region
    $region14: #{cgenerator_forward.1} parent=1 // pred_check
      _
    $region15: #{cgenerator_forward.1} parent=1 // pred_check_branch
      %43 = sbr.rel (0) target = $region17
    $region16: #{cgenerator_forward.1} parent=1 // pred_region
      %s45 = ssub.s32 1024, 1024
      %46 = vsyncadd [#allocation8], %s45
      %s47 = sshll.u32 [#allocation9], 4
      %s48 = int_to_ptr.vmem [resolvable:$true] %s47
      %53 = dma.hbm_to_vmem [thread:$0]  %s3, 1024, %s48, [#allocation8], 64, 64, 4
    $region17: #{cgenerator_forward.1} parent=1 // pred_fallthru
      _
    // Predicated region
    $region18: #{cgenerator_forward.1} parent=1 // pred_check
      _
    $region19: #{cgenerator_forward.1} parent=1 // pred_check_branch
      %55 = sbr.rel (0) target = $region21
    $region20: #{cgenerator_forward.1} parent=1 // pred_region
      %s57 = ssub.s32 2048, 2048
      %58 = vsyncadd [#allocation11], %s57
      %s59 = sshll.u32 [#allocation10], 4
      %s60 = int_to_ptr.vmem [resolvable:$true] %s59
      %65 = dma.hbm_to_vmem [thread:$0]  %s4, 2048, %s60, [#allocation11], 128, 128, 8
    $region21: #{cgenerator_forward.1} parent=1 // pred_fallthru
      _
    // Predicated region
    $region22: #{cgenerator_forward.1} parent=1 // pred_check
      _
    $region23: #{cgenerator_forward.1} parent=1 // pred_check_branch
      %67 = sbr.rel (0) target = $region25
    $region24: #{cgenerator_forward.1} parent=1 // pred_region
      %s69 = ssub.s32 8192, 8192
      %70 = vsyncadd [#allocation11], %s69
      %s71 = sshll.u32 [#allocation12], 4
      %s72 = int_to_ptr.vmem [resolvable:$true] %s71
      %77 = dma.hbm_to_vmem [thread:$0]  %s5, 8192, %s72, [#allocation11], 256, 256, 16
    $region25: #{cgenerator_forward.1} parent=1 // pred_fallthru
      _
    // Predicated region
    $region26: #{cgenerator_forward.1} parent=1 // pred_check
      _
    $region27: #{cgenerator_forward.1} parent=1 // pred_check_branch
      %79 = sbr.rel (0) target = $region29
    $region28: #{cgenerator_forward.1} parent=1 // pred_region
      %s81 = ssub.s32 784, 784
      %82 = vsyncadd [#allocation14], %s81
      %s84 = sshll.u32 [#allocation13], 4
      %s85 = int_to_ptr.vmem [resolvable:$true] %s84
      %87 = dma.hbm_to_vmem [thread:$0]  %s6, 784, %s85, [#allocation14]
    $region29: #{cgenerator_forward.1} parent=1 // pred_fallthru
      _
    // Predicated region
    $region30: #{cgenerator_forward.1} parent=1 // pred_check
      _
    $region31: #{cgenerator_forward.1} parent=1 // pred_check_branch
      %89 = sbr.rel (0) target = $region33
    $region32: #{cgenerator_forward.1} parent=1 // pred_region
      %90 = dma.done [#allocation6], 128
    $region33: #{cgenerator_forward.1} parent=1 // pred_fallthru
      _
    // Predicated region
    $region34: #{cgenerator_forward.1} parent=1 // pred_check
      _
    $region35: #{cgenerator_forward.1} parent=1 // pred_check_branch
      %92 = sbr.rel (0) target = $region37
    $region36: #{cgenerator_forward.1} parent=1 // pred_region
      %93 = dma.done [#allocation8], 1024
    $region37: #{cgenerator_forward.1} parent=1 // pred_fallthru
      _
    // Predicated region
    $region38: #{cgenerator_forward.1} parent=1 // pred_check
      _
    $region39: #{cgenerator_forward.1} parent=1 // pred_check_branch
      %95 = sbr.rel (0) target = $region41
    $region40: #{cgenerator_forward.1} parent=1 // pred_region
      %96 = dma.done [#allocation8], 1024
    $region41: #{cgenerator_forward.1} parent=1 // pred_fallthru
      _
    // Predicated region
    $region42: #{cgenerator_forward.1} parent=1 // pred_check
      _
    $region43: #{cgenerator_forward.1} parent=1 // pred_check_branch
      %98 = sbr.rel (0) target = $region45
    $region44: #{cgenerator_forward.1} parent=1 // pred_region
      %99 = dma.done [#allocation11], 2048
    $region45: #{cgenerator_forward.1} parent=1 // pred_fallthru
      _
    // Predicated region
    $region46: #{cgenerator_forward.1} parent=1 // pred_check
      _
    $region47: #{cgenerator_forward.1} parent=1 // pred_check_branch
      %101 = sbr.rel (0) target = $region49
    $region48: #{cgenerator_forward.1} parent=1 // pred_region
      %102 = dma.done [#allocation11], 8192
    $region49: #{cgenerator_forward.1} parent=1 // pred_fallthru
      _
    // Predicated region
    $region50: #{cgenerator_forward.1} parent=1 // pred_check
      _
    $region51: #{cgenerator_forward.1} parent=1 // pred_check_branch
      %104 = sbr.rel (0) target = $region53
    $region52: #{cgenerator_forward.1} parent=1 // pred_region
      %105 = dma.done [#allocation14], 784
    $region53: #{cgenerator_forward.1} parent=1 // pred_fallthru
      _
    // Predicated region
    $region54: #{cgenerator_forward.1} parent=1 // pred_check
      _
    $region55: #{cgenerator_forward.1} parent=1 // pred_check_branch
      %108 = sbr.rel target = $region57
    $region56: #{cgenerator_forward.1} parent=1 // pred_region
      %109 = sst [smem:[#allocation17]] [#allocation16]
      %110 = sst [smem:[#allocation18]] [#allocation15]
    $region57: #{cgenerator_forward.1} parent=1 // pred_fallthru
      _
    %112 = shalt.err (0)
    %s114 = sshll.u32 [#allocation2], 4
    %s115 = int_to_ptr.vmem [resolvable:$true] %s114
    %117 = dma.hbm_to_vmem [thread:$0]  %s7, 32768, %s115, [#allocation4]
    %s118 = scalar_lea.sflag [#allocation4], 1
    // Predicated region
    $region58: #{cgenerator_forward.1} parent=1 // pred_check
      _
    $region59: #{cgenerator_forward.1} parent=1 // pred_check_branch
      %120 = sbr.rel target = $region61
    $region60: #{cgenerator_forward.1} parent=1 // pred_region
      %121 = sst [smem:[#allocation17]] [#allocation20]
      %122 = sst [smem:[#allocation18]] [#allocation19]
    $region61: #{cgenerator_forward.1} parent=1 // pred_fallthru
      _
    %124 = shalt.err (0)
    %s126 = sshll.u32 [#allocation3], 4
    %s127 = int_to_ptr.vmem [resolvable:$true] %s126
    %129 = dma.hbm_to_vmem [thread:$0]  %s8, 49152, %s127, %s118
    %v130 = vld [vmem:[#allocation13] sm:$0x1]
    %v131 = vld [vmem:[#allocation13 + $0x1] sm:$0x3]
    %v132 = vld [vmem:[#allocation13 + $0x3] sm:$0x3]
    %v133 = vld [vmem:[#allocation13 + $0x5] sm:$0x3]
    %v134 = vld [vmem:[#allocation13 + $0x7] sm:$0xf]
    %v135 = vld [vmem:[#allocation13 + $0xb] sm:$0xf]
    %v136 = vld [vmem:[#allocation13 + $0xf] sm:$0xf]
    %v137 = vld [vmem:[#allocation13 + $0x13] sm:$0xff]
    %v138 = vld [vmem:[#allocation13 + $0x1b] sm:$0xff]
    %v139 = vld [vmem:[#allocation13 + $0x23] sm:$0xff]
    %v140 = vld [vmem:[#allocation13 + $0x2b] sm:$0x3f]
    %v141 = vld [vmem:[#allocation5] sm:$0xff]
    %v142 = vld [vmem:[#allocation7] sm:$0xf]
    %v143 = vld [vmem:[#allocation7 + $0x4] sm:$0xf]
    %v144 = vld [vmem:[#allocation7 + $0x8] sm:$0xf]
    %v145 = vld [vmem:[#allocation7 + $0xc] sm:$0xf]
    %v146 = vld [vmem:[#allocation7 + $0x10] sm:$0xf]
    %v147 = vld [vmem:[#allocation7 + $0x14] sm:$0xf]
    %v148 = vld [vmem:[#allocation7 + $0x18] sm:$0xf]
    %v149 = vld [vmem:[#allocation7 + $0x1c] sm:$0xf]
    %v150 = vld [vmem:[#allocation7 + $0x20] sm:$0xf]
    %v151 = vld [vmem:[#allocation7 + $0x24] sm:$0xf]
    %v152 = vld [vmem:[#allocation7 + $0x28] sm:$0xf]
    %v153 = vld [vmem:[#allocation7 + $0x2c] sm:$0xf]
    %v154 = vld [vmem:[#allocation7 + $0x30] sm:$0xf]
    %v155 = vld [vmem:[#allocation7 + $0x34] sm:$0xf]
    %v156 = vld [vmem:[#allocation7 + $0x38] sm:$0xf]
    %v157 = vld [vmem:[#allocation7 + $0x3c] sm:$0xf]
    %v158 = vpack.c.bf16 %v141, %v141
    %v159 = vld [vmem:[%s1] sm:$0xff]
    %v160 = vld [vmem:[#allocation9] sm:$0xf]
    %v161 = vld [vmem:[#allocation9 + $0x4] sm:$0xf]
    %v162 = vld [vmem:[#allocation9 + $0x8] sm:$0xf]
    %v163 = vld [vmem:[#allocation9 + $0xc] sm:$0xf]
    %v164 = vld [vmem:[#allocation9 + $0x10] sm:$0xf]
    %v165 = vld [vmem:[#allocation9 + $0x14] sm:$0xf]
    %v166 = vld [vmem:[#allocation9 + $0x18] sm:$0xf]
    %v167 = vld [vmem:[#allocation9 + $0x1c] sm:$0xf]
    %v168 = vld [vmem:[#allocation9 + $0x20] sm:$0xf]
    %v169 = vld [vmem:[#allocation9 + $0x24] sm:$0xf]
    %v170 = vld [vmem:[#allocation9 + $0x28] sm:$0xf]
    %v171 = vld [vmem:[#allocation9 + $0x2c] sm:$0xf]
    %v172 = vld [vmem:[#allocation9 + $0x30] sm:$0xf]
    %v173 = vld [vmem:[#allocation9 + $0x34] sm:$0xf]
    %v174 = vld [vmem:[#allocation9 + $0x38] sm:$0xf]
    %v175 = vld [vmem:[#allocation9 + $0x3c] sm:$0xf]
    %v176 = vpack.c.bf16 %v159, %v159
    %v193 = vunpack.c.l.b16 %v160
    %v194 = vunpack.c.l.b16 %v161
    %v195 = vunpack.c.l.b16 %v162
    %v196 = vunpack.c.l.b16 %v163
    %v197 = vunpack.c.l.b16 %v164
    %v198 = vunpack.c.l.b16 %v165
    %v199 = vunpack.c.l.b16 %v166
    %v200 = vunpack.c.l.b16 %v167
    %v201 = vunpack.c.l.b16 %v168
    %v202 = vunpack.c.l.b16 %v169
    %v203 = vunpack.c.l.b16 %v170
    %v204 = vunpack.c.l.b16 %v171
    %v205 = vunpack.c.l.b16 %v172
    %v206 = vunpack.c.l.b16 %v173
    %v207 = vunpack.c.l.b16 %v174
    %v208 = vunpack.c.l.b16 %v175
    %v209 = vpack.c.b16 %v194, %v193
    %v210 = vpack.c.b16 %v196, %v195
    %v211 = vpack.c.b16 %v198, %v197
    %v212 = vpack.c.b16 %v200, %v199
    %v213 = vpack.c.b16 %v202, %v201
    %v214 = vpack.c.b16 %v204, %v203
    %v215 = vpack.c.b16 %v206, %v205
    %v216 = vpack.c.b16 %v208, %v207
    %225 = vmatprep.subr.bf16.mxu0 0
    %226 = vmatpush1.bf16.msra.mxu0 %v216
    %227 = vmatprep.subr.bf16.mxu0 0
    %228 = vmatpush1.bf16.msra.mxu0 %v215
    %229 = vmatprep.subr.bf16.mxu0 0
    %230 = vmatpush1.bf16.msra.mxu0 %v214
    %231 = vmatprep.subr.bf16.mxu0 0
    %232 = vmatpush1.bf16.msra.mxu0 %v213
    %233 = vmatprep.subr.bf16.mxu0 0
    %234 = vmatpush1.bf16.msra.mxu0 %v212
    %235 = vmatprep.subr.bf16.mxu0 0
    %236 = vmatpush1.bf16.msra.mxu0 %v211
    %237 = vmatprep.subr.bf16.mxu0 0
    %238 = vmatpush1.bf16.msra.mxu0 %v210
    %239 = vmatprep.subr.bf16.mxu0 0
    %240 = vmatpush1.bf16.msra.mxu0 %v209
    %241 = vmatprep.subr.bf16.mxu0 0
    %242 = vmatpush2.bf16.msra.mxu0 0
    %243 = vmatprep.subr.bf16.mxu0 0
    %244 = vmatpush2.bf16.msra.mxu0 0
    %245 = vmatprep.subr.bf16.mxu0 0
    %246 = vmatpush2.bf16.msra.mxu0 0
    %247 = vmatprep.subr.bf16.mxu0 0
    %248 = vmatpush2.bf16.msra.mxu0 0
    %249 = vmatprep.subr.bf16.mxu0 0
    %250 = vmatpush2.bf16.msra.mxu0 0
    %251 = vmatprep.subr.bf16.mxu0 0
    %252 = vmatpush2.bf16.msra.mxu0 0
    %253 = vmatprep.subr.bf16.mxu0 0
    %254 = vmatpush2.bf16.msra.mxu0 0
    %255 = vmatprep.subr.bf16.mxu0 0
    %256 = vmatpush2.bf16.msra.mxu0 0
    %257 = vmatprep.mubr.bf16.mxu0 0
    %258 = vmatmul.mubr.bf16.gmra.mxu0 %v176
    %v259 = vpop.f32.mrf.mxu0
    %v260 = vadd.f32 0.0, %v259
    %v261 = vpop.f32.mrf.mxu0
    %v262 = vpop.f32.mrf.mxu0
    %v263 = vpop.f32.mrf.mxu0
    %264 = vdwg.mxu0
    %v281 = vunpack.c.l.b16 %v142
    %v282 = vunpack.c.l.b16 %v143
    %v283 = vunpack.c.l.b16 %v144
    %v284 = vunpack.c.l.b16 %v145
    %v285 = vunpack.c.l.b16 %v146
    %v286 = vunpack.c.l.b16 %v147
    %v287 = vunpack.c.l.b16 %v148
    %v288 = vunpack.c.l.b16 %v149
    %v289 = vunpack.c.l.b16 %v150
    %v290 = vunpack.c.l.b16 %v151
    %v291 = vunpack.c.l.b16 %v152
    %v292 = vunpack.c.l.b16 %v153
    %v293 = vunpack.c.l.b16 %v154
    %v294 = vunpack.c.l.b16 %v155
    %v295 = vunpack.c.l.b16 %v156
    %v296 = vunpack.c.l.b16 %v157
    %v297 = vpack.c.b16 %v282, %v281
    %v298 = vpack.c.b16 %v284, %v283
    %v299 = vpack.c.b16 %v286, %v285
    %v300 = vpack.c.b16 %v288, %v287
    %v301 = vpack.c.b16 %v290, %v289
    %v302 = vpack.c.b16 %v292, %v291
    %v303 = vpack.c.b16 %v294, %v293
    %v304 = vpack.c.b16 %v296, %v295
    %313 = vmatprep.subr.bf16.mxu0 0
    %314 = vmatpush1.bf16.msra.mxu0 %v304
    %315 = vmatprep.subr.bf16.mxu0 0
    %316 = vmatpush1.bf16.msra.mxu0 %v303
    %317 = vmatprep.subr.bf16.mxu0 0
    %318 = vmatpush1.bf16.msra.mxu0 %v302
    %319 = vmatprep.subr.bf16.mxu0 0
    %320 = vmatpush1.bf16.msra.mxu0 %v301
    %321 = vmatprep.subr.bf16.mxu0 0
    %322 = vmatpush1.bf16.msra.mxu0 %v300
    %323 = vmatprep.subr.bf16.mxu0 0
    %324 = vmatpush1.bf16.msra.mxu0 %v299
    %325 = vmatprep.subr.bf16.mxu0 0
    %326 = vmatpush1.bf16.msra.mxu0 %v298
    %327 = vmatprep.subr.bf16.mxu0 0
    %328 = vmatpush1.bf16.msra.mxu0 %v297
    %329 = vmatprep.subr.bf16.mxu0 0
    %330 = vmatpush2.bf16.msra.mxu0 0
    %331 = vmatprep.subr.bf16.mxu0 0
    %332 = vmatpush2.bf16.msra.mxu0 0
    %333 = vmatprep.subr.bf16.mxu0 0
    %334 = vmatpush2.bf16.msra.mxu0 0
    %335 = vmatprep.subr.bf16.mxu0 0
    %336 = vmatpush2.bf16.msra.mxu0 0
    %337 = vmatprep.subr.bf16.mxu0 0
    %338 = vmatpush2.bf16.msra.mxu0 0
    %339 = vmatprep.subr.bf16.mxu0 0
    %340 = vmatpush2.bf16.msra.mxu0 0
    %341 = vmatprep.subr.bf16.mxu0 0
    %342 = vmatpush2.bf16.msra.mxu0 0
    %343 = vmatprep.subr.bf16.mxu0 0
    %344 = vmatpush2.bf16.msra.mxu0 0
    %345 = vmatprep.mubr.bf16.mxu0 0
    %346 = vmatmul.mubr.bf16.gmra.mxu0 %v158
    %v347 = vpop.f32.mrf.mxu0
    %v348 = vadd.f32 %v260, %v347
    %v349 = vpop.f32.mrf.mxu0
    %v350 = vpop.f32.mrf.mxu0
    %v351 = vpop.f32.mrf.mxu0
    %352 = vdwg.mxu0
    %v354 = vlaneseq
    %v355 = vshrl.u32 %v354, 7
    %v356 = vsub.s32 0, %v355
    %v357 = vrot.slane %v130, %v356
    %v359 = vadd.f32 %v348, %v357
    %v360 = vmul.f32 %v359, 0.2
    %v361 = vmax.f32 %v359, %v360
    %v362 = vld [vmem:[#allocation10] sm:$0xff]
    %v363 = vld [vmem:[#allocation10 + $0x8] sm:$0xff]
    %v364 = vld [vmem:[#allocation10 + $0x10] sm:$0xff]
    %v365 = vld [vmem:[#allocation10 + $0x18] sm:$0xff]
    %v366 = vld [vmem:[#allocation10 + $0x20] sm:$0xff]
    %v367 = vld [vmem:[#allocation10 + $0x28] sm:$0xff]
    %v368 = vld [vmem:[#allocation10 + $0x30] sm:$0xff]
    %v369 = vld [vmem:[#allocation10 + $0x38] sm:$0xff]
    %v370 = vld [vmem:[#allocation10 + $0x40] sm:$0xff]
    %v371 = vld [vmem:[#allocation10 + $0x48] sm:$0xff]
    %v372 = vld [vmem:[#allocation10 + $0x50] sm:$0xff]
    %v373 = vld [vmem:[#allocation10 + $0x58] sm:$0xff]
    %v374 = vld [vmem:[#allocation10 + $0x60] sm:$0xff]
    %v375 = vld [vmem:[#allocation10 + $0x68] sm:$0xff]
    %v376 = vld [vmem:[#allocation10 + $0x70] sm:$0xff]
    %v377 = vld [vmem:[#allocation10 + $0x78] sm:$0xff]
    %v378 = vpack.c.bf16 %v361, %v361
    %v380 = vlaneseq
    %v381 = vshrl.u32 %v380, 7
    %v382 = vsub.s32 0, %v381
    %v383 = vrot.slane %v131, %v382
    %v384 = vlaneseq
    %v385 = vshrl.u32 %v384, 7
    %v386 = vsub.s32 1, %v385
    %v387 = vrot.slane %v131, %v386
    %v406 = vunpack.c.l.b16 %v362
    %v407 = vunpack.c.h.b16 %v362
    %v408 = vunpack.c.l.b16 %v363
    %v409 = vunpack.c.h.b16 %v363
    %v410 = vunpack.c.l.b16 %v364
    %v411 = vunpack.c.h.b16 %v364
    %v412 = vunpack.c.l.b16 %v365
    %v413 = vunpack.c.h.b16 %v365
    %v414 = vunpack.c.l.b16 %v366
    %v415 = vunpack.c.h.b16 %v366
    %v416 = vunpack.c.l.b16 %v367
    %v417 = vunpack.c.h.b16 %v367
    %v418 = vunpack.c.l.b16 %v368
    %v419 = vunpack.c.h.b16 %v368
    %v420 = vunpack.c.l.b16 %v369
    %v421 = vunpack.c.h.b16 %v369
    %v422 = vunpack.c.l.b16 %v370
    %v423 = vunpack.c.h.b16 %v370
    %v424 = vunpack.c.l.b16 %v371
    %v425 = vunpack.c.h.b16 %v371
    %v426 = vunpack.c.l.b16 %v372
    %v427 = vunpack.c.h.b16 %v372
    %v428 = vunpack.c.l.b16 %v373
    %v429 = vunpack.c.h.b16 %v373
    %v430 = vunpack.c.l.b16 %v374
    %v431 = vunpack.c.h.b16 %v374
    %v432 = vunpack.c.l.b16 %v375
    %v433 = vunpack.c.h.b16 %v375
    %v434 = vunpack.c.l.b16 %v376
    %v435 = vunpack.c.h.b16 %v376
    %v436 = vunpack.c.l.b16 %v377
    %v437 = vunpack.c.h.b16 %v377
    %v438 = vpack.c.b16 %v408, %v406
    %v439 = vpack.c.b16 %v409, %v407
    %v440 = vpack.c.b16 %v412, %v410
    %v441 = vpack.c.b16 %v413, %v411
    %v442 = vpack.c.b16 %v416, %v414
    %v443 = vpack.c.b16 %v417, %v415
    %v444 = vpack.c.b16 %v420, %v418
    %v445 = vpack.c.b16 %v421, %v419
    %v446 = vpack.c.b16 %v424, %v422
    %v447 = vpack.c.b16 %v425, %v423
    %v448 = vpack.c.b16 %v428, %v426
    %v449 = vpack.c.b16 %v429, %v427
    %v450 = vpack.c.b16 %v432, %v430
    %v451 = vpack.c.b16 %v433, %v431
    %v452 = vpack.c.b16 %v436, %v434
    %v453 = vpack.c.b16 %v437, %v435
    %470 = vmatprep.subr.bf16.mxu0 %v453
    %471 = vmatpush1.bf16.msra.mxu0 %v452
    %472 = vmatprep.subr.bf16.mxu0 %v451
    %473 = vmatpush1.bf16.msra.mxu0 %v450
    %474 = vmatprep.subr.bf16.mxu0 %v449
    %475 = vmatpush1.bf16.msra.mxu0 %v448
    %476 = vmatprep.subr.bf16.mxu0 %v447
    %477 = vmatpush1.bf16.msra.mxu0 %v446
    %478 = vmatprep.subr.bf16.mxu0 %v445
    %479 = vmatpush1.bf16.msra.mxu0 %v444
    %480 = vmatprep.subr.bf16.mxu0 %v443
    %481 = vmatpush1.bf16.msra.mxu0 %v442
    %482 = vmatprep.subr.bf16.mxu0 %v441
    %483 = vmatpush1.bf16.msra.mxu0 %v440
    %484 = vmatprep.subr.bf16.mxu0 %v439
    %485 = vmatpush1.bf16.msra.mxu0 %v438
    %486 = vmatprep.subr.bf16.mxu0 0
    %487 = vmatpush2.bf16.msra.mxu0 0
    %488 = vmatprep.subr.bf16.mxu0 0
    %489 = vmatpush2.bf16.msra.mxu0 0
    %490 = vmatprep.subr.bf16.mxu0 0
    %491 = vmatpush2.bf16.msra.mxu0 0
    %492 = vmatprep.subr.bf16.mxu0 0
    %493 = vmatpush2.bf16.msra.mxu0 0
    %494 = vmatprep.subr.bf16.mxu0 0
    %495 = vmatpush2.bf16.msra.mxu0 0
    %496 = vmatprep.subr.bf16.mxu0 0
    %497 = vmatpush2.bf16.msra.mxu0 0
    %498 = vmatprep.subr.bf16.mxu0 0
    %499 = vmatpush2.bf16.msra.mxu0 0
    %500 = vmatprep.subr.bf16.mxu0 0
    %501 = vmatpush2.bf16.msra.mxu0 0
    %502 = vmatprep.mubr.bf16.mxu0 0
    %503 = vmatmul.mubr.bf16.gmra.mxu0 %v378
    %v504 = vpop.f32.mrf.mxu0
    %v505 = vadd.f32 %v383, %v504
    %v506 = vpop.f32.mrf.mxu0
    %v507 = vadd.f32 %v387, %v506
    %v508 = vpop.f32.mrf.mxu0
    %v509 = vpop.f32.mrf.mxu0
    %510 = vdwg.mxu0
    %v511 = vrot.slane %v505, 4
    %v512 = vadd.f32 %v505, %v511
    %v513 = vrot.slane %v512, 2
    %v514 = vadd.f32 %v512, %v513
    %v515 = vrot.slane %v514, 1
    %v516 = vadd.f32 %v514, %v515
    %v517 = vrot.slane %v507, 4
    %v518 = vadd.f32 %v507, %v517
    %v519 = vrot.slane %v518, 2
    %v520 = vadd.f32 %v518, %v519
    %v521 = vrot.slane %v520, 1
    %v522 = vadd.f32 %v520, %v521
    %v523 = vrcp.pop 8.0
    %v524 = vmul.f32 %v516, %v523
    %v525 = vmul.f32 %v522, %v523
    %v526 = vsub.f32 %v505, %v524
    %v527 = vsub.f32 %v507, %v525
    %v528 = vmul.f32 %v526, %v526
    %v529 = vmul.f32 %v527, %v527
    %v530 = vrot.slane %v528, 4
    %v531 = vadd.f32 %v528, %v530
    %v532 = vrot.slane %v531, 2
    %v533 = vadd.f32 %v531, %v532
    %v534 = vrot.slane %v533, 1
    %v535 = vadd.f32 %v533, %v534
    %v536 = vrot.slane %v529, 4
    %v537 = vadd.f32 %v529, %v536
    %v538 = vrot.slane %v537, 2
    %v539 = vadd.f32 %v537, %v538
    %v540 = vrot.slane %v539, 1
    %v541 = vadd.f32 %v539, %v540
    %v542 = vmul.f32 %v535, %v523
    %v543 = vmul.f32 %v541, %v523
    %v544 = vadd.f32 %v542, 0.8
    %v545 = vadd.f32 %v543, 0.8
    %v546 = vrsqrt.pop %v544
    %v547 = vrsqrt.pop %v545
    %v548 = vmul.f32 %v526, %v546
    %v549 = vmul.f32 %v527, %v547
    %v551 = vlaneseq
    %v552 = vshrl.u32 %v551, 7
    %v553 = vsub.s32 0, %v552
    %v554 = vrot.slane %v132, %v553
    %v555 = vlaneseq
    %v556 = vshrl.u32 %v555, 7
    %v557 = vsub.s32 1, %v556
    %v558 = vrot.slane %v132, %v557
    %v561 = vmul.f32 %v548, %v554
    %v562 = vmul.f32 %v549, %v558
    %v564 = vlaneseq
    %v565 = vshrl.u32 %v564, 7
    %v566 = vsub.s32 0, %v565
    %v567 = vrot.slane %v133, %v566
    %v568 = vlaneseq
    %v569 = vshrl.u32 %v568, 7
    %v570 = vsub.s32 1, %v569
    %v571 = vrot.slane %v133, %v570
    %v574 = vadd.f32 %v561, %v567
    %v575 = vadd.f32 %v562, %v571
    %v576 = vmul.f32 %v574, 0.2
    %v577 = vmul.f32 %v575, 0.2
    %v578 = vmax.f32 %v574, %v576
    %v579 = vmax.f32 %v575, %v577
    %v580 = vld [vmem:[#allocation12] sm:$0xff]
    %v581 = vld [vmem:[#allocation12 + $0x8] sm:$0xff]
    %v582 = vld [vmem:[#allocation12 + $0x10] sm:$0xff]
    %v583 = vld [vmem:[#allocation12 + $0x18] sm:$0xff]
    %v584 = vld [vmem:[#allocation12 + $0x20] sm:$0xff]
    %v585 = vld [vmem:[#allocation12 + $0x28] sm:$0xff]
    %v586 = vld [vmem:[#allocation12 + $0x30] sm:$0xff]
    %v587 = vld [vmem:[#allocation12 + $0x38] sm:$0xff]
    %v588 = vld [vmem:[#allocation12 + $0x40] sm:$0xff]
    %v589 = vld [vmem:[#allocation12 + $0x48] sm:$0xff]
    %v590 = vld [vmem:[#allocation12 + $0x50] sm:$0xff]
    %v591 = vld [vmem:[#allocation12 + $0x58] sm:$0xff]
    %v592 = vld [vmem:[#allocation12 + $0x60] sm:$0xff]
    %v593 = vld [vmem:[#allocation12 + $0x68] sm:$0xff]
    %v594 = vld [vmem:[#allocation12 + $0x70] sm:$0xff]
    %v595 = vld [vmem:[#allocation12 + $0x78] sm:$0xff]
    %v596 = vld [vmem:[#allocation12 + $0x80] sm:$0xff]
    %v597 = vld [vmem:[#allocation12 + $0x88] sm:$0xff]
    %v598 = vld [vmem:[#allocation12 + $0x90] sm:$0xff]
    %v599 = vld [vmem:[#allocation12 + $0x98] sm:$0xff]
    %v600 = vld [vmem:[#allocation12 + $0xa0] sm:$0xff]
    %v601 = vld [vmem:[#allocation12 + $0xa8] sm:$0xff]
    %v602 = vld [vmem:[#allocation12 + $0xb0] sm:$0xff]
    %v603 = vld [vmem:[#allocation12 + $0xb8] sm:$0xff]
    %v604 = vld [vmem:[#allocation12 + $0xc0] sm:$0xff]
    %v605 = vld [vmem:[#allocation12 + $0xc8] sm:$0xff]
    %v606 = vld [vmem:[#allocation12 + $0xd0] sm:$0xff]
    %v607 = vld [vmem:[#allocation12 + $0xd8] sm:$0xff]
    %v608 = vld [vmem:[#allocation12 + $0xe0] sm:$0xff]
    %v609 = vld [vmem:[#allocation12 + $0xe8] sm:$0xff]
    %v610 = vld [vmem:[#allocation12 + $0xf0] sm:$0xff]
    %v611 = vld [vmem:[#allocation12 + $0xf8] sm:$0xff]
    %v612 = vld [vmem:[#allocation12 + $0x100] sm:$0xff]
    %v613 = vld [vmem:[#allocation12 + $0x108] sm:$0xff]
    %v614 = vld [vmem:[#allocation12 + $0x110] sm:$0xff]
    %v615 = vld [vmem:[#allocation12 + $0x118] sm:$0xff]
    %v616 = vld [vmem:[#allocation12 + $0x120] sm:$0xff]
    %v617 = vld [vmem:[#allocation12 + $0x128] sm:$0xff]
    %v618 = vld [vmem:[#allocation12 + $0x130] sm:$0xff]
    %v619 = vld [vmem:[#allocation12 + $0x138] sm:$0xff]
    %v620 = vld [vmem:[#allocation12 + $0x140] sm:$0xff]
    %v621 = vld [vmem:[#allocation12 + $0x148] sm:$0xff]
    %v622 = vld [vmem:[#allocation12 + $0x150] sm:$0xff]
    %v623 = vld [vmem:[#allocation12 + $0x158] sm:$0xff]
    %v624 = vld [vmem:[#allocation12 + $0x160] sm:$0xff]
    %v625 = vld [vmem:[#allocation12 + $0x168] sm:$0xff]
    %v626 = vld [vmem:[#allocation12 + $0x170] sm:$0xff]
    %v627 = vld [vmem:[#allocation12 + $0x178] sm:$0xff]
    %v628 = vld [vmem:[#allocation12 + $0x180] sm:$0xff]
    %v629 = vld [vmem:[#allocation12 + $0x188] sm:$0xff]
    %v630 = vld [vmem:[#allocation12 + $0x190] sm:$0xff]
    %v631 = vld [vmem:[#allocation12 + $0x198] sm:$0xff]
    %v632 = vld [vmem:[#allocation12 + $0x1a0] sm:$0xff]
    %v633 = vld [vmem:[#allocation12 + $0x1a8] sm:$0xff]
    %v634 = vld [vmem:[#allocation12 + $0x1b0] sm:$0xff]
    %v635 = vld [vmem:[#allocation12 + $0x1b8] sm:$0xff]
    %v636 = vld [vmem:[#allocation12 + $0x1c0] sm:$0xff]
    %v637 = vld [vmem:[#allocation12 + $0x1c8] sm:$0xff]
    %v638 = vld [vmem:[#allocation12 + $0x1d0] sm:$0xff]
    %v639 = vld [vmem:[#allocation12 + $0x1d8] sm:$0xff]
    %v640 = vld [vmem:[#allocation12 + $0x1e0] sm:$0xff]
    %v641 = vld [vmem:[#allocation12 + $0x1e8] sm:$0xff]
    %v642 = vld [vmem:[#allocation12 + $0x1f0] sm:$0xff]
    %v643 = vld [vmem:[#allocation12 + $0x1f8] sm:$0xff]
    %v644 = vpack.c.bf16 %v578, %v578
    %v645 = vpack.c.bf16 %v579, %v579
    %v647 = vlaneseq
    %v648 = vshrl.u32 %v647, 7
    %v649 = vsub.s32 0, %v648
    %v650 = vrot.slane %v134, %v649
    %v651 = vlaneseq
    %v652 = vshrl.u32 %v651, 7
    %v653 = vsub.s32 1, %v652
    %v654 = vrot.slane %v134, %v653
    %v655 = vlaneseq
    %v656 = vshrl.u32 %v655, 7
    %v657 = vsub.s32 2, %v656
    %v658 = vrot.slane %v134, %v657
    %v659 = vlaneseq
    %v660 = vshrl.u32 %v659, 7
    %v661 = vsub.s32 3, %v660
    %v662 = vrot.slane %v134, %v661
    %v731 = vunpack.c.l.b16 %v580
    %v732 = vunpack.c.h.b16 %v580
    %v733 = vunpack.c.l.b16 %v581
    %v734 = vunpack.c.h.b16 %v581
    %v735 = vunpack.c.l.b16 %v582
    %v736 = vunpack.c.h.b16 %v582
    %v737 = vunpack.c.l.b16 %v583
    %v738 = vunpack.c.h.b16 %v583
    %v739 = vunpack.c.l.b16 %v584
    %v740 = vunpack.c.h.b16 %v584
    %v741 = vunpack.c.l.b16 %v585
    %v742 = vunpack.c.h.b16 %v585
    %v743 = vunpack.c.l.b16 %v586
    %v744 = vunpack.c.h.b16 %v586
    %v745 = vunpack.c.l.b16 %v587
    %v746 = vunpack.c.h.b16 %v587
    %v747 = vunpack.c.l.b16 %v588
    %v748 = vunpack.c.h.b16 %v588
    %v749 = vunpack.c.l.b16 %v589
    %v750 = vunpack.c.h.b16 %v589
    %v751 = vunpack.c.l.b16 %v590
    %v752 = vunpack.c.h.b16 %v590
    %v753 = vunpack.c.l.b16 %v591
    %v754 = vunpack.c.h.b16 %v591
    %v755 = vunpack.c.l.b16 %v592
    %v756 = vunpack.c.h.b16 %v592
    %v757 = vunpack.c.l.b16 %v593
    %v758 = vunpack.c.h.b16 %v593
    %v759 = vunpack.c.l.b16 %v594
    %v760 = vunpack.c.h.b16 %v594
    %v761 = vunpack.c.l.b16 %v595
    %v762 = vunpack.c.h.b16 %v595
    %v763 = vunpack.c.l.b16 %v596
    %v764 = vunpack.c.h.b16 %v596
    %v765 = vunpack.c.l.b16 %v597
    %v766 = vunpack.c.h.b16 %v597
    %v767 = vunpack.c.l.b16 %v598
    %v768 = vunpack.c.h.b16 %v598
    %v769 = vunpack.c.l.b16 %v599
    %v770 = vunpack.c.h.b16 %v599
    %v771 = vunpack.c.l.b16 %v600
    %v772 = vunpack.c.h.b16 %v600
    %v773 = vunpack.c.l.b16 %v601
    %v774 = vunpack.c.h.b16 %v601
    %v775 = vunpack.c.l.b16 %v602
    %v776 = vunpack.c.h.b16 %v602
    %v777 = vunpack.c.l.b16 %v603
    %v778 = vunpack.c.h.b16 %v603
    %v779 = vunpack.c.l.b16 %v604
    %v780 = vunpack.c.h.b16 %v604
    %v781 = vunpack.c.l.b16 %v605
    %v782 = vunpack.c.h.b16 %v605
    %v783 = vunpack.c.l.b16 %v606
    %v784 = vunpack.c.h.b16 %v606
    %v785 = vunpack.c.l.b16 %v607
    %v786 = vunpack.c.h.b16 %v607
    %v787 = vunpack.c.l.b16 %v608
    %v788 = vunpack.c.h.b16 %v608
    %v789 = vunpack.c.l.b16 %v609
    %v790 = vunpack.c.h.b16 %v609
    %v791 = vunpack.c.l.b16 %v610
    %v792 = vunpack.c.h.b16 %v610
    %v793 = vunpack.c.l.b16 %v611
    %v794 = vunpack.c.h.b16 %v611
    %v795 = vunpack.c.l.b16 %v612
    %v796 = vunpack.c.h.b16 %v612
    %v797 = vunpack.c.l.b16 %v613
    %v798 = vunpack.c.h.b16 %v613
    %v799 = vunpack.c.l.b16 %v614
    %v800 = vunpack.c.h.b16 %v614
    %v801 = vunpack.c.l.b16 %v615
    %v802 = vunpack.c.h.b16 %v615
    %v803 = vunpack.c.l.b16 %v616
    %v804 = vunpack.c.h.b16 %v616
    %v805 = vunpack.c.l.b16 %v617
    %v806 = vunpack.c.h.b16 %v617
    %v807 = vunpack.c.l.b16 %v618
    %v808 = vunpack.c.h.b16 %v618
    %v809 = vunpack.c.l.b16 %v619
    %v810 = vunpack.c.h.b16 %v619
    %v811 = vunpack.c.l.b16 %v620
    %v812 = vunpack.c.h.b16 %v620
    %v813 = vunpack.c.l.b16 %v621
    %v814 = vunpack.c.h.b16 %v621
    %v815 = vunpack.c.l.b16 %v622
    %v816 = vunpack.c.h.b16 %v622
    %v817 = vunpack.c.l.b16 %v623
    %v818 = vunpack.c.h.b16 %v623
    %v819 = vunpack.c.l.b16 %v624
    %v820 = vunpack.c.h.b16 %v624
    %v821 = vunpack.c.l.b16 %v625
    %v822 = vunpack.c.h.b16 %v625
    %v823 = vunpack.c.l.b16 %v626
    %v824 = vunpack.c.h.b16 %v626
    %v825 = vunpack.c.l.b16 %v627
    %v826 = vunpack.c.h.b16 %v627
    %v827 = vunpack.c.l.b16 %v628
    %v828 = vunpack.c.h.b16 %v628
    %v829 = vunpack.c.l.b16 %v629
    %v830 = vunpack.c.h.b16 %v629
    %v831 = vunpack.c.l.b16 %v630
    %v832 = vunpack.c.h.b16 %v630
    %v833 = vunpack.c.l.b16 %v631
    %v834 = vunpack.c.h.b16 %v631
    %v835 = vunpack.c.l.b16 %v632
    %v836 = vunpack.c.h.b16 %v632
    %v837 = vunpack.c.l.b16 %v633
    %v838 = vunpack.c.h.b16 %v633
    %v839 = vunpack.c.l.b16 %v634
    %v840 = vunpack.c.h.b16 %v634
    %v841 = vunpack.c.l.b16 %v635
    %v842 = vunpack.c.h.b16 %v635
    %v843 = vunpack.c.l.b16 %v636
    %v844 = vunpack.c.h.b16 %v636
    %v845 = vunpack.c.l.b16 %v637
    %v846 = vunpack.c.h.b16 %v637
    %v847 = vunpack.c.l.b16 %v638
    %v848 = vunpack.c.h.b16 %v638
    %v849 = vunpack.c.l.b16 %v639
    %v850 = vunpack.c.h.b16 %v639
    %v851 = vunpack.c.l.b16 %v640
    %v852 = vunpack.c.h.b16 %v640
    %v853 = vunpack.c.l.b16 %v641
    %v854 = vunpack.c.h.b16 %v641
    %v855 = vunpack.c.l.b16 %v642
    %v856 = vunpack.c.h.b16 %v642
    %v857 = vunpack.c.l.b16 %v643
    %v858 = vunpack.c.h.b16 %v643
    %v859 = vpack.c.b16 %v735, %v731
    %v860 = vpack.c.b16 %v736, %v732
    %v861 = vpack.c.b16 %v737, %v733
    %v862 = vpack.c.b16 %v738, %v734
    %v863 = vpack.c.b16 %v743, %v739
    %v864 = vpack.c.b16 %v744, %v740
    %v865 = vpack.c.b16 %v745, %v741
    %v866 = vpack.c.b16 %v746, %v742
    %v867 = vpack.c.b16 %v751, %v747
    %v868 = vpack.c.b16 %v752, %v748
    %v869 = vpack.c.b16 %v753, %v749
    %v870 = vpack.c.b16 %v754, %v750
    %v871 = vpack.c.b16 %v759, %v755
    %v872 = vpack.c.b16 %v760, %v756
    %v873 = vpack.c.b16 %v761, %v757
    %v874 = vpack.c.b16 %v762, %v758
    %v875 = vpack.c.b16 %v767, %v763
    %v876 = vpack.c.b16 %v768, %v764
    %v877 = vpack.c.b16 %v769, %v765
    %v878 = vpack.c.b16 %v770, %v766
    %v879 = vpack.c.b16 %v775, %v771
    %v880 = vpack.c.b16 %v776, %v772
    %v881 = vpack.c.b16 %v777, %v773
    %v882 = vpack.c.b16 %v778, %v774
    %v883 = vpack.c.b16 %v783, %v779
    %v884 = vpack.c.b16 %v784, %v780
    %v885 = vpack.c.b16 %v785, %v781
    %v886 = vpack.c.b16 %v786, %v782
    %v887 = vpack.c.b16 %v791, %v787
    %v888 = vpack.c.b16 %v792, %v788
    %v889 = vpack.c.b16 %v793, %v789
    %v890 = vpack.c.b16 %v794, %v790
    %v891 = vpack.c.b16 %v799, %v795
    %v892 = vpack.c.b16 %v800, %v796
    %v893 = vpack.c.b16 %v801, %v797
    %v894 = vpack.c.b16 %v802, %v798
    %v895 = vpack.c.b16 %v807, %v803
    %v896 = vpack.c.b16 %v808, %v804
    %v897 = vpack.c.b16 %v809, %v805
    %v898 = vpack.c.b16 %v810, %v806
    %v899 = vpack.c.b16 %v815, %v811
    %v900 = vpack.c.b16 %v816, %v812
    %v901 = vpack.c.b16 %v817, %v813
    %v902 = vpack.c.b16 %v818, %v814
    %v903 = vpack.c.b16 %v823, %v819
    %v904 = vpack.c.b16 %v824, %v820
    %v905 = vpack.c.b16 %v825, %v821
    %v906 = vpack.c.b16 %v826, %v822
    %v907 = vpack.c.b16 %v831, %v827
    %v908 = vpack.c.b16 %v832, %v828
    %v909 = vpack.c.b16 %v833, %v829
    %v910 = vpack.c.b16 %v834, %v830
    %v911 = vpack.c.b16 %v839, %v835
    %v912 = vpack.c.b16 %v840, %v836
    %v913 = vpack.c.b16 %v841, %v837
    %v914 = vpack.c.b16 %v842, %v838
    %v915 = vpack.c.b16 %v847, %v843
    %v916 = vpack.c.b16 %v848, %v844
    %v917 = vpack.c.b16 %v849, %v845
    %v918 = vpack.c.b16 %v850, %v846
    %v919 = vpack.c.b16 %v855, %v851
    %v920 = vpack.c.b16 %v856, %v852
    %v921 = vpack.c.b16 %v857, %v853
    %v922 = vpack.c.b16 %v858, %v854
    %987 = vmatprep.subr.bf16.mxu0 %v888
    %988 = vmatpush1.bf16.msra.mxu0 %v887
    %989 = vmatprep.subr.bf16.mxu0 %v884
    %990 = vmatpush1.bf16.msra.mxu0 %v883
    %991 = vmatprep.subr.bf16.mxu0 %v880
    %992 = vmatpush1.bf16.msra.mxu0 %v879
    %993 = vmatprep.subr.bf16.mxu0 %v876
    %994 = vmatpush1.bf16.msra.mxu0 %v875
    %995 = vmatprep.subr.bf16.mxu0 %v872
    %996 = vmatpush1.bf16.msra.mxu0 %v871
    %997 = vmatprep.subr.bf16.mxu0 %v868
    %998 = vmatpush1.bf16.msra.mxu0 %v867
    %999 = vmatprep.subr.bf16.mxu0 %v864
    %1000 = vmatpush1.bf16.msra.mxu0 %v863
    %1001 = vmatprep.subr.bf16.mxu0 %v860
    %1002 = vmatpush1.bf16.msra.mxu0 %v859
    %1003 = vmatprep.subr.bf16.mxu0 %v920
    %1004 = vmatpush2.bf16.msra.mxu0 %v919
    %1005 = vmatprep.subr.bf16.mxu0 %v916
    %1006 = vmatpush2.bf16.msra.mxu0 %v915
    %1007 = vmatprep.subr.bf16.mxu0 %v912
    %1008 = vmatpush2.bf16.msra.mxu0 %v911
    %1009 = vmatprep.subr.bf16.mxu0 %v908
    %1010 = vmatpush2.bf16.msra.mxu0 %v907
    %1011 = vmatprep.subr.bf16.mxu0 %v904
    %1012 = vmatpush2.bf16.msra.mxu0 %v903
    %1013 = vmatprep.subr.bf16.mxu0 %v900
    %1014 = vmatpush2.bf16.msra.mxu0 %v899
    %1015 = vmatprep.subr.bf16.mxu0 %v896
    %1016 = vmatpush2.bf16.msra.mxu0 %v895
    %1017 = vmatprep.subr.bf16.mxu0 %v892
    %1018 = vmatpush2.bf16.msra.mxu0 %v891
    %1019 = vmatprep.mubr.bf16.mxu0 %v645
    %1020 = vmatmul.mubr.bf16.gmra.mxu0 %v644
    %v1021 = vpop.f32.mrf.mxu0
    %v1022 = vadd.f32 %v650, %v1021
    %v1023 = vpop.f32.mrf.mxu0
    %v1024 = vadd.f32 %v654, %v1023
    %v1025 = vpop.f32.mrf.mxu0
    %v1026 = vpop.f32.mrf.mxu0
    %1027 = vdwg.mxu0
    %1028 = vmatprep.subr.bf16.mxu0 %v890
    %1029 = vmatpush1.bf16.msra.mxu0 %v889
    %1030 = vmatprep.subr.bf16.mxu0 %v886
    %1031 = vmatpush1.bf16.msra.mxu0 %v885
    %1032 = vmatprep.subr.bf16.mxu0 %v882
    %1033 = vmatpush1.bf16.msra.mxu0 %v881
    %1034 = vmatprep.subr.bf16.mxu0 %v878
    %1035 = vmatpush1.bf16.msra.mxu0 %v877
    %1036 = vmatprep.subr.bf16.mxu0 %v874
    %1037 = vmatpush1.bf16.msra.mxu0 %v873
    %1038 = vmatprep.subr.bf16.mxu0 %v870
    %1039 = vmatpush1.bf16.msra.mxu0 %v869
    %1040 = vmatprep.subr.bf16.mxu0 %v866
    %1041 = vmatpush1.bf16.msra.mxu0 %v865
    %1042 = vmatprep.subr.bf16.mxu0 %v862
    %1043 = vmatpush1.bf16.msra.mxu0 %v861
    %1044 = vmatprep.subr.bf16.mxu0 %v922
    %1045 = vmatpush2.bf16.msra.mxu0 %v921
    %1046 = vmatprep.subr.bf16.mxu0 %v918
    %1047 = vmatpush2.bf16.msra.mxu0 %v917
    %1048 = vmatprep.subr.bf16.mxu0 %v914
    %1049 = vmatpush2.bf16.msra.mxu0 %v913
    %1050 = vmatprep.subr.bf16.mxu0 %v910
    %1051 = vmatpush2.bf16.msra.mxu0 %v909
    %1052 = vmatprep.subr.bf16.mxu0 %v906
    %1053 = vmatpush2.bf16.msra.mxu0 %v905
    %1054 = vmatprep.subr.bf16.mxu0 %v902
    %1055 = vmatpush2.bf16.msra.mxu0 %v901
    %1056 = vmatprep.subr.bf16.mxu0 %v898
    %1057 = vmatpush2.bf16.msra.mxu0 %v897
    %1058 = vmatprep.subr.bf16.mxu0 %v894
    %1059 = vmatpush2.bf16.msra.mxu0 %v893
    %1060 = vmatprep.mubr.bf16.mxu0 %v645
    %1061 = vmatmul.mubr.bf16.gmra.mxu0 %v644
    %v1062 = vpop.f32.mrf.mxu0
    %v1063 = vadd.f32 %v658, %v1062
    %v1064 = vpop.f32.mrf.mxu0
    %v1065 = vadd.f32 %v662, %v1064
    %v1066 = vpop.f32.mrf.mxu0
    %v1067 = vpop.f32.mrf.mxu0
    %1068 = vdwg.mxu0
    %v1069 = vrot.slane %v1022, 4
    %v1070 = vadd.f32 %v1022, %v1069
    %v1071 = vrot.slane %v1070, 2
    %v1072 = vadd.f32 %v1070, %v1071
    %v1073 = vrot.slane %v1072, 1
    %v1074 = vadd.f32 %v1072, %v1073
    %v1075 = vrot.slane %v1024, 4
    %v1076 = vadd.f32 %v1024, %v1075
    %v1077 = vrot.slane %v1076, 2
    %v1078 = vadd.f32 %v1076, %v1077
    %v1079 = vrot.slane %v1078, 1
    %v1080 = vadd.f32 %v1078, %v1079
    %v1081 = vrot.slane %v1063, 4
    %v1082 = vadd.f32 %v1063, %v1081
    %v1083 = vrot.slane %v1082, 2
    %v1084 = vadd.f32 %v1082, %v1083
    %v1085 = vrot.slane %v1084, 1
    %v1086 = vadd.f32 %v1084, %v1085
    %v1087 = vrot.slane %v1065, 4
    %v1088 = vadd.f32 %v1065, %v1087
    %v1089 = vrot.slane %v1088, 2
    %v1090 = vadd.f32 %v1088, %v1089
    %v1091 = vrot.slane %v1090, 1
    %v1092 = vadd.f32 %v1090, %v1091
    %v1093 = vmul.f32 %v1074, %v523
    %v1094 = vmul.f32 %v1080, %v523
    %v1095 = vmul.f32 %v1086, %v523
    %v1096 = vmul.f32 %v1092, %v523
    %v1097 = vsub.f32 %v1022, %v1093
    %v1098 = vsub.f32 %v1024, %v1094
    %v1099 = vsub.f32 %v1063, %v1095
    %v1100 = vsub.f32 %v1065, %v1096
    %v1101 = vmul.f32 %v1097, %v1097
    %v1102 = vmul.f32 %v1098, %v1098
    %v1103 = vmul.f32 %v1099, %v1099
    %v1104 = vmul.f32 %v1100, %v1100
    %v1105 = vrot.slane %v1101, 4
    %v1106 = vadd.f32 %v1101, %v1105
    %v1107 = vrot.slane %v1106, 2
    %v1108 = vadd.f32 %v1106, %v1107
    %v1109 = vrot.slane %v1108, 1
    %v1110 = vadd.f32 %v1108, %v1109
    %v1111 = vrot.slane %v1102, 4
    %v1112 = vadd.f32 %v1102, %v1111
    %v1113 = vrot.slane %v1112, 2
    %v1114 = vadd.f32 %v1112, %v1113
    %v1115 = vrot.slane %v1114, 1
    %v1116 = vadd.f32 %v1114, %v1115
    %v1117 = vrot.slane %v1103, 4
    %v1118 = vadd.f32 %v1103, %v1117
    %v1119 = vrot.slane %v1118, 2
    %v1120 = vadd.f32 %v1118, %v1119
    %v1121 = vrot.slane %v1120, 1
    %v1122 = vadd.f32 %v1120, %v1121
    %v1123 = vrot.slane %v1104, 4
    %v1124 = vadd.f32 %v1104, %v1123
    %v1125 = vrot.slane %v1124, 2
    %v1126 = vadd.f32 %v1124, %v1125
    %v1127 = vrot.slane %v1126, 1
    %v1128 = vadd.f32 %v1126, %v1127
    %v1129 = vmul.f32 %v1110, %v523
    %v1130 = vmul.f32 %v1116, %v523
    %v1131 = vmul.f32 %v1122, %v523
    %v1132 = vmul.f32 %v1128, %v523
    %v1133 = vadd.f32 %v1129, 0.8
    %v1134 = vadd.f32 %v1130, 0.8
    %v1135 = vadd.f32 %v1131, 0.8
    %v1136 = vadd.f32 %v1132, 0.8
    %v1137 = vrsqrt.pop %v1133
    %v1138 = vrsqrt.pop %v1134
    %v1139 = vrsqrt.pop %v1135
    %v1140 = vrsqrt.pop %v1136
    %v1141 = vmul.f32 %v1097, %v1137
    %v1142 = vmul.f32 %v1098, %v1138
    %v1143 = vmul.f32 %v1099, %v1139
    %v1144 = vmul.f32 %v1100, %v1140
    %v1146 = vlaneseq
    %v1147 = vshrl.u32 %v1146, 7
    %v1148 = vsub.s32 0, %v1147
    %v1149 = vrot.slane %v135, %v1148
    %v1150 = vlaneseq
    %v1151 = vshrl.u32 %v1150, 7
    %v1152 = vsub.s32 1, %v1151
    %v1153 = vrot.slane %v135, %v1152
    %v1154 = vlaneseq
    %v1155 = vshrl.u32 %v1154, 7
    %v1156 = vsub.s32 2, %v1155
    %v1157 = vrot.slane %v135, %v1156
    %v1158 = vlaneseq
    %v1159 = vshrl.u32 %v1158, 7
    %v1160 = vsub.s32 3, %v1159
    %v1161 = vrot.slane %v135, %v1160
    %v1166 = vmul.f32 %v1141, %v1149
    %v1167 = vmul.f32 %v1142, %v1153
    %v1168 = vmul.f32 %v1143, %v1157
    %v1169 = vmul.f32 %v1144, %v1161
    %v1171 = vlaneseq
    %v1172 = vshrl.u32 %v1171, 7
    %v1173 = vsub.s32 0, %v1172
    %v1174 = vrot.slane %v136, %v1173
    %v1175 = vlaneseq
    %v1176 = vshrl.u32 %v1175, 7
    %v1177 = vsub.s32 1, %v1176
    %v1178 = vrot.slane %v136, %v1177
    %v1179 = vlaneseq
    %v1180 = vshrl.u32 %v1179, 7
    %v1181 = vsub.s32 2, %v1180
    %v1182 = vrot.slane %v136, %v1181
    %v1183 = vlaneseq
    %v1184 = vshrl.u32 %v1183, 7
    %v1185 = vsub.s32 3, %v1184
    %v1186 = vrot.slane %v136, %v1185
    %v1191 = vadd.f32 %v1166, %v1174
    %v1192 = vadd.f32 %v1167, %v1178
    %v1193 = vadd.f32 %v1168, %v1182
    %v1194 = vadd.f32 %v1169, %v1186
    %v1195 = vmul.f32 %v1191, 0.2
    %v1196 = vmul.f32 %v1192, 0.2
    %v1197 = vmul.f32 %v1193, 0.2
    %v1198 = vmul.f32 %v1194, 0.2
    %v1199 = vmax.f32 %v1191, %v1195
    %v1200 = vmax.f32 %v1192, %v1196
    %v1201 = vmax.f32 %v1193, %v1197
    %v1202 = vmax.f32 %v1194, %v1198
    %s1203 = smul.u32 4, 64
    %s1204 = smul.u32 %s1203, 8
    %s1205 = sshll.u32 %s1204, 4
    %1206 = dma.done [#allocation4], %s1205
    %v1207 = vld [vmem:[#allocation2] sm:$0xff]
    %v1208 = vld [vmem:[#allocation2 + $0x8] sm:$0xff]
    %v1209 = vld [vmem:[#allocation2 + $0x10] sm:$0xff]
    %v1210 = vld [vmem:[#allocation2 + $0x18] sm:$0xff]
    %v1211 = vld [vmem:[#allocation2 + $0x20] sm:$0xff]
    %v1212 = vld [vmem:[#allocation2 + $0x28] sm:$0xff]
    %v1213 = vld [vmem:[#allocation2 + $0x30] sm:$0xff]
    %v1214 = vld [vmem:[#allocation2 + $0x38] sm:$0xff]
    %v1215 = vld [vmem:[#allocation2 + $0x40] sm:$0xff]
    %v1216 = vld [vmem:[#allocation2 + $0x48] sm:$0xff]
    %v1217 = vld [vmem:[#allocation2 + $0x50] sm:$0xff]
    %v1218 = vld [vmem:[#allocation2 + $0x58] sm:$0xff]
    %v1219 = vld [vmem:[#allocation2 + $0x60] sm:$0xff]
    %v1220 = vld [vmem:[#allocation2 + $0x68] sm:$0xff]
    %v1221 = vld [vmem:[#allocation2 + $0x70] sm:$0xff]
    %v1222 = vld [vmem:[#allocation2 + $0x78] sm:$0xff]
    %v1223 = vld [vmem:[#allocation2 + $0x80] sm:$0xff]
    %v1224 = vld [vmem:[#allocation2 + $0x88] sm:$0xff]
    %v1225 = vld [vmem:[#allocation2 + $0x90] sm:$0xff]
    %v1226 = vld [vmem:[#allocation2 + $0x98] sm:$0xff]
    %v1227 = vld [vmem:[#allocation2 + $0xa0] sm:$0xff]
    %v1228 = vld [vmem:[#allocation2 + $0xa8] sm:$0xff]
    %v1229 = vld [vmem:[#allocation2 + $0xb0] sm:$0xff]
    %v1230 = vld [vmem:[#allocation2 + $0xb8] sm:$0xff]
    %v1231 = vld [vmem:[#allocation2 + $0xc0] sm:$0xff]
    %v1232 = vld [vmem:[#allocation2 + $0xc8] sm:$0xff]
    %v1233 = vld [vmem:[#allocation2 + $0xd0] sm:$0xff]
    %v1234 = vld [vmem:[#allocation2 + $0xd8] sm:$0xff]
    %v1235 = vld [vmem:[#allocation2 + $0xe0] sm:$0xff]
    %v1236 = vld [vmem:[#allocation2 + $0xe8] sm:$0xff]
    %v1237 = vld [vmem:[#allocation2 + $0xf0] sm:$0xff]
    %v1238 = vld [vmem:[#allocation2 + $0xf8] sm:$0xff]
    %v1239 = vld [vmem:[#allocation2 + $0x100] sm:$0xff]
    %v1240 = vld [vmem:[#allocation2 + $0x108] sm:$0xff]
    %v1241 = vld [vmem:[#allocation2 + $0x110] sm:$0xff]
    %v1242 = vld [vmem:[#allocation2 + $0x118] sm:$0xff]
    %v1243 = vld [vmem:[#allocation2 + $0x120] sm:$0xff]
    %v1244 = vld [vmem:[#allocation2 + $0x128] sm:$0xff]
    %v1245 = vld [vmem:[#allocation2 + $0x130] sm:$0xff]
    %v1246 = vld [vmem:[#allocation2 + $0x138] sm:$0xff]
    %v1247 = vld [vmem:[#allocation2 + $0x140] sm:$0xff]
    %v1248 = vld [vmem:[#allocation2 + $0x148] sm:$0xff]
    %v1249 = vld [vmem:[#allocation2 + $0x150] sm:$0xff]
    %v1250 = vld [vmem:[#allocation2 + $0x158] sm:$0xff]
    %v1251 = vld [vmem:[#allocation2 + $0x160] sm:$0xff]
    %v1252 = vld [vmem:[#allocation2 + $0x168] sm:$0xff]
    %v1253 = vld [vmem:[#allocation2 + $0x170] sm:$0xff]
    %v1254 = vld [vmem:[#allocation2 + $0x178] sm:$0xff]
    %v1255 = vld [vmem:[#allocation2 + $0x180] sm:$0xff]
    %v1256 = vld [vmem:[#allocation2 + $0x188] sm:$0xff]
    %v1257 = vld [vmem:[#allocation2 + $0x190] sm:$0xff]
    %v1258 = vld [vmem:[#allocation2 + $0x198] sm:$0xff]
    %v1259 = vld [vmem:[#allocation2 + $0x1a0] sm:$0xff]
    %v1260 = vld [vmem:[#allocation2 + $0x1a8] sm:$0xff]
    %v1261 = vld [vmem:[#allocation2 + $0x1b0] sm:$0xff]
    %v1262 = vld [vmem:[#allocation2 + $0x1b8] sm:$0xff]
    %v1263 = vld [vmem:[#allocation2 + $0x1c0] sm:$0xff]
    %v1264 = vld [vmem:[#allocation2 + $0x1c8] sm:$0xff]
    %v1265 = vld [vmem:[#allocation2 + $0x1d0] sm:$0xff]
    %v1266 = vld [vmem:[#allocation2 + $0x1d8] sm:$0xff]
    %v1267 = vld [vmem:[#allocation2 + $0x1e0] sm:$0xff]
    %v1268 = vld [vmem:[#allocation2 + $0x1e8] sm:$0xff]
    %v1269 = vld [vmem:[#allocation2 + $0x1f0] sm:$0xff]
    %v1270 = vld [vmem:[#allocation2 + $0x1f8] sm:$0xff]
    %v1271 = vld [vmem:[#allocation2 + $0x200] sm:$0xff]
    %v1272 = vld [vmem:[#allocation2 + $0x208] sm:$0xff]
    %v1273 = vld [vmem:[#allocation2 + $0x210] sm:$0xff]
    %v1274 = vld [vmem:[#allocation2 + $0x218] sm:$0xff]
    %v1275 = vld [vmem:[#allocation2 + $0x220] sm:$0xff]
    %v1276 = vld [vmem:[#allocation2 + $0x228] sm:$0xff]
    %v1277 = vld [vmem:[#allocation2 + $0x230] sm:$0xff]
    %v1278 = vld [vmem:[#allocation2 + $0x238] sm:$0xff]
    %v1279 = vld [vmem:[#allocation2 + $0x240] sm:$0xff]
    %v1280 = vld [vmem:[#allocation2 + $0x248] sm:$0xff]
    %v1281 = vld [vmem:[#allocation2 + $0x250] sm:$0xff]
    %v1282 = vld [vmem:[#allocation2 + $0x258] sm:$0xff]
    %v1283 = vld [vmem:[#allocation2 + $0x260] sm:$0xff]
    %v1284 = vld [vmem:[#allocation2 + $0x268] sm:$0xff]
    %v1285 = vld [vmem:[#allocation2 + $0x270] sm:$0xff]
    %v1286 = vld [vmem:[#allocation2 + $0x278] sm:$0xff]
    %v1287 = vld [vmem:[#allocation2 + $0x280] sm:$0xff]
    %v1288 = vld [vmem:[#allocation2 + $0x288] sm:$0xff]
    %v1289 = vld [vmem:[#allocation2 + $0x290] sm:$0xff]
    %v1290 = vld [vmem:[#allocation2 + $0x298] sm:$0xff]
    %v1291 = vld [vmem:[#allocation2 + $0x2a0] sm:$0xff]
    %v1292 = vld [vmem:[#allocation2 + $0x2a8] sm:$0xff]
    %v1293 = vld [vmem:[#allocation2 + $0x2b0] sm:$0xff]
    %v1294 = vld [vmem:[#allocation2 + $0x2b8] sm:$0xff]
    %v1295 = vld [vmem:[#allocation2 + $0x2c0] sm:$0xff]
    %v1296 = vld [vmem:[#allocation2 + $0x2c8] sm:$0xff]
    %v1297 = vld [vmem:[#allocation2 + $0x2d0] sm:$0xff]
    %v1298 = vld [vmem:[#allocation2 + $0x2d8] sm:$0xff]
    %v1299 = vld [vmem:[#allocation2 + $0x2e0] sm:$0xff]
    %v1300 = vld [vmem:[#allocation2 + $0x2e8] sm:$0xff]
    %v1301 = vld [vmem:[#allocation2 + $0x2f0] sm:$0xff]
    %v1302 = vld [vmem:[#allocation2 + $0x2f8] sm:$0xff]
    %v1303 = vld [vmem:[#allocation2 + $0x300] sm:$0xff]
    %v1304 = vld [vmem:[#allocation2 + $0x308] sm:$0xff]
    %v1305 = vld [vmem:[#allocation2 + $0x310] sm:$0xff]
    %v1306 = vld [vmem:[#allocation2 + $0x318] sm:$0xff]
    %v1307 = vld [vmem:[#allocation2 + $0x320] sm:$0xff]
    %v1308 = vld [vmem:[#allocation2 + $0x328] sm:$0xff]
    %v1309 = vld [vmem:[#allocation2 + $0x330] sm:$0xff]
    %v1310 = vld [vmem:[#allocation2 + $0x338] sm:$0xff]
    %v1311 = vld [vmem:[#allocation2 + $0x340] sm:$0xff]
    %v1312 = vld [vmem:[#allocation2 + $0x348] sm:$0xff]
    %v1313 = vld [vmem:[#allocation2 + $0x350] sm:$0xff]
    %v1314 = vld [vmem:[#allocation2 + $0x358] sm:$0xff]
    %v1315 = vld [vmem:[#allocation2 + $0x360] sm:$0xff]
    %v1316 = vld [vmem:[#allocation2 + $0x368] sm:$0xff]
    %v1317 = vld [vmem:[#allocation2 + $0x370] sm:$0xff]
    %v1318 = vld [vmem:[#allocation2 + $0x378] sm:$0xff]
    %v1319 = vld [vmem:[#allocation2 + $0x380] sm:$0xff]
    %v1320 = vld [vmem:[#allocation2 + $0x388] sm:$0xff]
    %v1321 = vld [vmem:[#allocation2 + $0x390] sm:$0xff]
    %v1322 = vld [vmem:[#allocation2 + $0x398] sm:$0xff]
    %v1323 = vld [vmem:[#allocation2 + $0x3a0] sm:$0xff]
    %v1324 = vld [vmem:[#allocation2 + $0x3a8] sm:$0xff]
    %v1325 = vld [vmem:[#allocation2 + $0x3b0] sm:$0xff]
    %v1326 = vld [vmem:[#allocation2 + $0x3b8] sm:$0xff]
    %v1327 = vld [vmem:[#allocation2 + $0x3c0] sm:$0xff]
    %v1328 = vld [vmem:[#allocation2 + $0x3c8] sm:$0xff]
    %v1329 = vld [vmem:[#allocation2 + $0x3d0] sm:$0xff]
    %v1330 = vld [vmem:[#allocation2 + $0x3d8] sm:$0xff]
    %v1331 = vld [vmem:[#allocation2 + $0x3e0] sm:$0xff]
    %v1332 = vld [vmem:[#allocation2 + $0x3e8] sm:$0xff]
    %v1333 = vld [vmem:[#allocation2 + $0x3f0] sm:$0xff]
    %v1334 = vld [vmem:[#allocation2 + $0x3f8] sm:$0xff]
    %v1335 = vld [vmem:[#allocation2 + $0x400] sm:$0xff]
    %v1336 = vld [vmem:[#allocation2 + $0x408] sm:$0xff]
    %v1337 = vld [vmem:[#allocation2 + $0x410] sm:$0xff]
    %v1338 = vld [vmem:[#allocation2 + $0x418] sm:$0xff]
    %v1339 = vld [vmem:[#allocation2 + $0x420] sm:$0xff]
    %v1340 = vld [vmem:[#allocation2 + $0x428] sm:$0xff]
    %v1341 = vld [vmem:[#allocation2 + $0x430] sm:$0xff]
    %v1342 = vld [vmem:[#allocation2 + $0x438] sm:$0xff]
    %v1343 = vld [vmem:[#allocation2 + $0x440] sm:$0xff]
    %v1344 = vld [vmem:[#allocation2 + $0x448] sm:$0xff]
    %v1345 = vld [vmem:[#allocation2 + $0x450] sm:$0xff]
    %v1346 = vld [vmem:[#allocation2 + $0x458] sm:$0xff]
    %v1347 = vld [vmem:[#allocation2 + $0x460] sm:$0xff]
    %v1348 = vld [vmem:[#allocation2 + $0x468] sm:$0xff]
    %v1349 = vld [vmem:[#allocation2 + $0x470] sm:$0xff]
    %v1350 = vld [vmem:[#allocation2 + $0x478] sm:$0xff]
    %v1351 = vld [vmem:[#allocation2 + $0x480] sm:$0xff]
    %v1352 = vld [vmem:[#allocation2 + $0x488] sm:$0xff]
    %v1353 = vld [vmem:[#allocation2 + $0x490] sm:$0xff]
    %v1354 = vld [vmem:[#allocation2 + $0x498] sm:$0xff]
    %v1355 = vld [vmem:[#allocation2 + $0x4a0] sm:$0xff]
    %v1356 = vld [vmem:[#allocation2 + $0x4a8] sm:$0xff]
    %v1357 = vld [vmem:[#allocation2 + $0x4b0] sm:$0xff]
    %v1358 = vld [vmem:[#allocation2 + $0x4b8] sm:$0xff]
    %v1359 = vld [vmem:[#allocation2 + $0x4c0] sm:$0xff]
    %v1360 = vld [vmem:[#allocation2 + $0x4c8] sm:$0xff]
    %v1361 = vld [vmem:[#allocation2 + $0x4d0] sm:$0xff]
    %v1362 = vld [vmem:[#allocation2 + $0x4d8] sm:$0xff]
    %v1363 = vld [vmem:[#allocation2 + $0x4e0] sm:$0xff]
    %v1364 = vld [vmem:[#allocation2 + $0x4e8] sm:$0xff]
    %v1365 = vld [vmem:[#allocation2 + $0x4f0] sm:$0xff]
    %v1366 = vld [vmem:[#allocation2 + $0x4f8] sm:$0xff]
    %v1367 = vld [vmem:[#allocation2 + $0x500] sm:$0xff]
    %v1368 = vld [vmem:[#allocation2 + $0x508] sm:$0xff]
    %v1369 = vld [vmem:[#allocation2 + $0x510] sm:$0xff]
    %v1370 = vld [vmem:[#allocation2 + $0x518] sm:$0xff]
    %v1371 = vld [vmem:[#allocation2 + $0x520] sm:$0xff]
    %v1372 = vld [vmem:[#allocation2 + $0x528] sm:$0xff]
    %v1373 = vld [vmem:[#allocation2 + $0x530] sm:$0xff]
    %v1374 = vld [vmem:[#allocation2 + $0x538] sm:$0xff]
    %v1375 = vld [vmem:[#allocation2 + $0x540] sm:$0xff]
    %v1376 = vld [vmem:[#allocation2 + $0x548] sm:$0xff]
    %v1377 = vld [vmem:[#allocation2 + $0x550] sm:$0xff]
    %v1378 = vld [vmem:[#allocation2 + $0x558] sm:$0xff]
    %v1379 = vld [vmem:[#allocation2 + $0x560] sm:$0xff]
    %v1380 = vld [vmem:[#allocation2 + $0x568] sm:$0xff]
    %v1381 = vld [vmem:[#allocation2 + $0x570] sm:$0xff]
    %v1382 = vld [vmem:[#allocation2 + $0x578] sm:$0xff]
    %v1383 = vld [vmem:[#allocation2 + $0x580] sm:$0xff]
    %v1384 = vld [vmem:[#allocation2 + $0x588] sm:$0xff]
    %v1385 = vld [vmem:[#allocation2 + $0x590] sm:$0xff]
    %v1386 = vld [vmem:[#allocation2 + $0x598] sm:$0xff]
    %v1387 = vld [vmem:[#allocation2 + $0x5a0] sm:$0xff]
    %v1388 = vld [vmem:[#allocation2 + $0x5a8] sm:$0xff]
    %v1389 = vld [vmem:[#allocation2 + $0x5b0] sm:$0xff]
    %v1390 = vld [vmem:[#allocation2 + $0x5b8] sm:$0xff]
    %v1391 = vld [vmem:[#allocation2 + $0x5c0] sm:$0xff]
    %v1392 = vld [vmem:[#allocation2 + $0x5c8] sm:$0xff]
    %v1393 = vld [vmem:[#allocation2 + $0x5d0] sm:$0xff]
    %v1394 = vld [vmem:[#allocation2 + $0x5d8] sm:$0xff]
    %v1395 = vld [vmem:[#allocation2 + $0x5e0] sm:$0xff]
    %v1396 = vld [vmem:[#allocation2 + $0x5e8] sm:$0xff]
    %v1397 = vld [vmem:[#allocation2 + $0x5f0] sm:$0xff]
    %v1398 = vld [vmem:[#allocation2 + $0x5f8] sm:$0xff]
    %v1399 = vld [vmem:[#allocation2 + $0x600] sm:$0xff]
    %v1400 = vld [vmem:[#allocation2 + $0x608] sm:$0xff]
    %v1401 = vld [vmem:[#allocation2 + $0x610] sm:$0xff]
    %v1402 = vld [vmem:[#allocation2 + $0x618] sm:$0xff]
    %v1403 = vld [vmem:[#allocation2 + $0x620] sm:$0xff]
    %v1404 = vld [vmem:[#allocation2 + $0x628] sm:$0xff]
    %v1405 = vld [vmem:[#allocation2 + $0x630] sm:$0xff]
    %v1406 = vld [vmem:[#allocation2 + $0x638] sm:$0xff]
    %v1407 = vld [vmem:[#allocation2 + $0x640] sm:$0xff]
    %v1408 = vld [vmem:[#allocation2 + $0x648] sm:$0xff]
    %v1409 = vld [vmem:[#allocation2 + $0x650] sm:$0xff]
    %v1410 = vld [vmem:[#allocation2 + $0x658] sm:$0xff]
    %v1411 = vld [vmem:[#allocation2 + $0x660] sm:$0xff]
    %v1412 = vld [vmem:[#allocation2 + $0x668] sm:$0xff]
    %v1413 = vld [vmem:[#allocation2 + $0x670] sm:$0xff]
    %v1414 = vld [vmem:[#allocation2 + $0x678] sm:$0xff]
    %v1415 = vld [vmem:[#allocation2 + $0x680] sm:$0xff]
    %v1416 = vld [vmem:[#allocation2 + $0x688] sm:$0xff]
    %v1417 = vld [vmem:[#allocation2 + $0x690] sm:$0xff]
    %v1418 = vld [vmem:[#allocation2 + $0x698] sm:$0xff]
    %v1419 = vld [vmem:[#allocation2 + $0x6a0] sm:$0xff]
    %v1420 = vld [vmem:[#allocation2 + $0x6a8] sm:$0xff]
    %v1421 = vld [vmem:[#allocation2 + $0x6b0] sm:$0xff]
    %v1422 = vld [vmem:[#allocation2 + $0x6b8] sm:$0xff]
    %v1423 = vld [vmem:[#allocation2 + $0x6c0] sm:$0xff]
    %v1424 = vld [vmem:[#allocation2 + $0x6c8] sm:$0xff]
    %v1425 = vld [vmem:[#allocation2 + $0x6d0] sm:$0xff]
    %v1426 = vld [vmem:[#allocation2 + $0x6d8] sm:$0xff]
    %v1427 = vld [vmem:[#allocation2 + $0x6e0] sm:$0xff]
    %v1428 = vld [vmem:[#allocation2 + $0x6e8] sm:$0xff]
    %v1429 = vld [vmem:[#allocation2 + $0x6f0] sm:$0xff]
    %v1430 = vld [vmem:[#allocation2 + $0x6f8] sm:$0xff]
    %v1431 = vld [vmem:[#allocation2 + $0x700] sm:$0xff]
    %v1432 = vld [vmem:[#allocation2 + $0x708] sm:$0xff]
    %v1433 = vld [vmem:[#allocation2 + $0x710] sm:$0xff]
    %v1434 = vld [vmem:[#allocation2 + $0x718] sm:$0xff]
    %v1435 = vld [vmem:[#allocation2 + $0x720] sm:$0xff]
    %v1436 = vld [vmem:[#allocation2 + $0x728] sm:$0xff]
    %v1437 = vld [vmem:[#allocation2 + $0x730] sm:$0xff]
    %v1438 = vld [vmem:[#allocation2 + $0x738] sm:$0xff]
    %v1439 = vld [vmem:[#allocation2 + $0x740] sm:$0xff]
    %v1440 = vld [vmem:[#allocation2 + $0x748] sm:$0xff]
    %v1441 = vld [vmem:[#allocation2 + $0x750] sm:$0xff]
    %v1442 = vld [vmem:[#allocation2 + $0x758] sm:$0xff]
    %v1443 = vld [vmem:[#allocation2 + $0x760] sm:$0xff]
    %v1444 = vld [vmem:[#allocation2 + $0x768] sm:$0xff]
    %v1445 = vld [vmem:[#allocation2 + $0x770] sm:$0xff]
    %v1446 = vld [vmem:[#allocation2 + $0x778] sm:$0xff]
    %v1447 = vld [vmem:[#allocation2 + $0x780] sm:$0xff]
    %v1448 = vld [vmem:[#allocation2 + $0x788] sm:$0xff]
    %v1449 = vld [vmem:[#allocation2 + $0x790] sm:$0xff]
    %v1450 = vld [vmem:[#allocation2 + $0x798] sm:$0xff]
    %v1451 = vld [vmem:[#allocation2 + $0x7a0] sm:$0xff]
    %v1452 = vld [vmem:[#allocation2 + $0x7a8] sm:$0xff]
    %v1453 = vld [vmem:[#allocation2 + $0x7b0] sm:$0xff]
    %v1454 = vld [vmem:[#allocation2 + $0x7b8] sm:$0xff]
    %v1455 = vld [vmem:[#allocation2 + $0x7c0] sm:$0xff]
    %v1456 = vld [vmem:[#allocation2 + $0x7c8] sm:$0xff]
    %v1457 = vld [vmem:[#allocation2 + $0x7d0] sm:$0xff]
    %v1458 = vld [vmem:[#allocation2 + $0x7d8] sm:$0xff]
    %v1459 = vld [vmem:[#allocation2 + $0x7e0] sm:$0xff]
    %v1460 = vld [vmem:[#allocation2 + $0x7e8] sm:$0xff]
    %v1461 = vld [vmem:[#allocation2 + $0x7f0] sm:$0xff]
    %v1462 = vld [vmem:[#allocation2 + $0x7f8] sm:$0xff]
    %v1463 = vpack.c.bf16 %v1199, %v1199
    %v1464 = vpack.c.bf16 %v1200, %v1200
    %v1465 = vpack.c.bf16 %v1201, %v1201
    %v1466 = vpack.c.bf16 %v1202, %v1202
    %v1468 = vlaneseq
    %v1469 = vshrl.u32 %v1468, 7
    %v1470 = vsub.s32 0, %v1469
    %v1471 = vrot.slane %v137, %v1470
    %v1472 = vlaneseq
    %v1473 = vshrl.u32 %v1472, 7
    %v1474 = vsub.s32 1, %v1473
    %v1475 = vrot.slane %v137, %v1474
    %v1476 = vlaneseq
    %v1477 = vshrl.u32 %v1476, 7
    %v1478 = vsub.s32 2, %v1477
    %v1479 = vrot.slane %v137, %v1478
    %v1480 = vlaneseq
    %v1481 = vshrl.u32 %v1480, 7
    %v1482 = vsub.s32 3, %v1481
    %v1483 = vrot.slane %v137, %v1482
    %v1484 = vlaneseq
    %v1485 = vshrl.u32 %v1484, 7
    %v1486 = vsub.s32 4, %v1485
    %v1487 = vrot.slane %v137, %v1486
    %v1488 = vlaneseq
    %v1489 = vshrl.u32 %v1488, 7
    %v1490 = vsub.s32 5, %v1489
    %v1491 = vrot.slane %v137, %v1490
    %v1492 = vlaneseq
    %v1493 = vshrl.u32 %v1492, 7
    %v1494 = vsub.s32 6, %v1493
    %v1495 = vrot.slane %v137, %v1494
    %v1496 = vlaneseq
    %v1497 = vshrl.u32 %v1496, 7
    %v1498 = vsub.s32 7, %v1497
    %v1499 = vrot.slane %v137, %v1498
    %v1764 = vunpack.c.l.b16 %v1207
    %v1765 = vunpack.c.h.b16 %v1207
    %v1766 = vunpack.c.l.b16 %v1208
    %v1767 = vunpack.c.h.b16 %v1208
    %v1768 = vunpack.c.l.b16 %v1209
    %v1769 = vunpack.c.h.b16 %v1209
    %v1770 = vunpack.c.l.b16 %v1210
    %v1771 = vunpack.c.h.b16 %v1210
    %v1772 = vunpack.c.l.b16 %v1211
    %v1773 = vunpack.c.h.b16 %v1211
    %v1774 = vunpack.c.l.b16 %v1212
    %v1775 = vunpack.c.h.b16 %v1212
    %v1776 = vunpack.c.l.b16 %v1213
    %v1777 = vunpack.c.h.b16 %v1213
    %v1778 = vunpack.c.l.b16 %v1214
    %v1779 = vunpack.c.h.b16 %v1214
    %v1780 = vunpack.c.l.b16 %v1215
    %v1781 = vunpack.c.h.b16 %v1215
    %v1782 = vunpack.c.l.b16 %v1216
    %v1783 = vunpack.c.h.b16 %v1216
    %v1784 = vunpack.c.l.b16 %v1217
    %v1785 = vunpack.c.h.b16 %v1217
    %v1786 = vunpack.c.l.b16 %v1218
    %v1787 = vunpack.c.h.b16 %v1218
    %v1788 = vunpack.c.l.b16 %v1219
    %v1789 = vunpack.c.h.b16 %v1219
    %v1790 = vunpack.c.l.b16 %v1220
    %v1791 = vunpack.c.h.b16 %v1220
    %v1792 = vunpack.c.l.b16 %v1221
    %v1793 = vunpack.c.h.b16 %v1221
    %v1794 = vunpack.c.l.b16 %v1222
    %v1795 = vunpack.c.h.b16 %v1222
    %v1796 = vunpack.c.l.b16 %v1223
    %v1797 = vunpack.c.h.b16 %v1223
    %v1798 = vunpack.c.l.b16 %v1224
    %v1799 = vunpack.c.h.b16 %v1224
    %v1800 = vunpack.c.l.b16 %v1225
    %v1801 = vunpack.c.h.b16 %v1225
    %v1802 = vunpack.c.l.b16 %v1226
    %v1803 = vunpack.c.h.b16 %v1226
    %v1804 = vunpack.c.l.b16 %v1227
    %v1805 = vunpack.c.h.b16 %v1227
    %v1806 = vunpack.c.l.b16 %v1228
    %v1807 = vunpack.c.h.b16 %v1228
    %v1808 = vunpack.c.l.b16 %v1229
    %v1809 = vunpack.c.h.b16 %v1229
    %v1810 = vunpack.c.l.b16 %v1230
    %v1811 = vunpack.c.h.b16 %v1230
    %v1812 = vunpack.c.l.b16 %v1231
    %v1813 = vunpack.c.h.b16 %v1231
    %v1814 = vunpack.c.l.b16 %v1232
    %v1815 = vunpack.c.h.b16 %v1232
    %v1816 = vunpack.c.l.b16 %v1233
    %v1817 = vunpack.c.h.b16 %v1233
    %v1818 = vunpack.c.l.b16 %v1234
    %v1819 = vunpack.c.h.b16 %v1234
    %v1820 = vunpack.c.l.b16 %v1235
    %v1821 = vunpack.c.h.b16 %v1235
    %v1822 = vunpack.c.l.b16 %v1236
    %v1823 = vunpack.c.h.b16 %v1236
    %v1824 = vunpack.c.l.b16 %v1237
    %v1825 = vunpack.c.h.b16 %v1237
    %v1826 = vunpack.c.l.b16 %v1238
    %v1827 = vunpack.c.h.b16 %v1238
    %v1828 = vunpack.c.l.b16 %v1239
    %v1829 = vunpack.c.h.b16 %v1239
    %v1830 = vunpack.c.l.b16 %v1240
    %v1831 = vunpack.c.h.b16 %v1240
    %v1832 = vunpack.c.l.b16 %v1241
    %v1833 = vunpack.c.h.b16 %v1241
    %v1834 = vunpack.c.l.b16 %v1242
    %v1835 = vunpack.c.h.b16 %v1242
    %v1836 = vunpack.c.l.b16 %v1243
    %v1837 = vunpack.c.h.b16 %v1243
    %v1838 = vunpack.c.l.b16 %v1244
    %v1839 = vunpack.c.h.b16 %v1244
    %v1840 = vunpack.c.l.b16 %v1245
    %v1841 = vunpack.c.h.b16 %v1245
    %v1842 = vunpack.c.l.b16 %v1246
    %v1843 = vunpack.c.h.b16 %v1246
    %v1844 = vunpack.c.l.b16 %v1247
    %v1845 = vunpack.c.h.b16 %v1247
    %v1846 = vunpack.c.l.b16 %v1248
    %v1847 = vunpack.c.h.b16 %v1248
    %v1848 = vunpack.c.l.b16 %v1249
    %v1849 = vunpack.c.h.b16 %v1249
    %v1850 = vunpack.c.l.b16 %v1250
    %v1851 = vunpack.c.h.b16 %v1250
    %v1852 = vunpack.c.l.b16 %v1251
    %v1853 = vunpack.c.h.b16 %v1251
    %v1854 = vunpack.c.l.b16 %v1252
    %v1855 = vunpack.c.h.b16 %v1252
    %v1856 = vunpack.c.l.b16 %v1253
    %v1857 = vunpack.c.h.b16 %v1253
    %v1858 = vunpack.c.l.b16 %v1254
    %v1859 = vunpack.c.h.b16 %v1254
    %v1860 = vunpack.c.l.b16 %v1255
    %v1861 = vunpack.c.h.b16 %v1255
    %v1862 = vunpack.c.l.b16 %v1256
    %v1863 = vunpack.c.h.b16 %v1256
    %v1864 = vunpack.c.l.b16 %v1257
    %v1865 = vunpack.c.h.b16 %v1257
    %v1866 = vunpack.c.l.b16 %v1258
    %v1867 = vunpack.c.h.b16 %v1258
    %v1868 = vunpack.c.l.b16 %v1259
    %v1869 = vunpack.c.h.b16 %v1259
    %v1870 = vunpack.c.l.b16 %v1260
    %v1871 = vunpack.c.h.b16 %v1260
    %v1872 = vunpack.c.l.b16 %v1261
    %v1873 = vunpack.c.h.b16 %v1261
    %v1874 = vunpack.c.l.b16 %v1262
    %v1875 = vunpack.c.h.b16 %v1262
    %v1876 = vunpack.c.l.b16 %v1263
    %v1877 = vunpack.c.h.b16 %v1263
    %v1878 = vunpack.c.l.b16 %v1264
    %v1879 = vunpack.c.h.b16 %v1264
    %v1880 = vunpack.c.l.b16 %v1265
    %v1881 = vunpack.c.h.b16 %v1265
    %v1882 = vunpack.c.l.b16 %v1266
    %v1883 = vunpack.c.h.b16 %v1266
    %v1884 = vunpack.c.l.b16 %v1267
    %v1885 = vunpack.c.h.b16 %v1267
    %v1886 = vunpack.c.l.b16 %v1268
    %v1887 = vunpack.c.h.b16 %v1268
    %v1888 = vunpack.c.l.b16 %v1269
    %v1889 = vunpack.c.h.b16 %v1269
    %v1890 = vunpack.c.l.b16 %v1270
    %v1891 = vunpack.c.h.b16 %v1270
    %v1892 = vunpack.c.l.b16 %v1271
    %v1893 = vunpack.c.h.b16 %v1271
    %v1894 = vunpack.c.l.b16 %v1272
    %v1895 = vunpack.c.h.b16 %v1272
    %v1896 = vunpack.c.l.b16 %v1273
    %v1897 = vunpack.c.h.b16 %v1273
    %v1898 = vunpack.c.l.b16 %v1274
    %v1899 = vunpack.c.h.b16 %v1274
    %v1900 = vunpack.c.l.b16 %v1275
    %v1901 = vunpack.c.h.b16 %v1275
    %v1902 = vunpack.c.l.b16 %v1276
    %v1903 = vunpack.c.h.b16 %v1276
    %v1904 = vunpack.c.l.b16 %v1277
    %v1905 = vunpack.c.h.b16 %v1277
    %v1906 = vunpack.c.l.b16 %v1278
    %v1907 = vunpack.c.h.b16 %v1278
    %v1908 = vunpack.c.l.b16 %v1279
    %v1909 = vunpack.c.h.b16 %v1279
    %v1910 = vunpack.c.l.b16 %v1280
    %v1911 = vunpack.c.h.b16 %v1280
    %v1912 = vunpack.c.l.b16 %v1281
    %v1913 = vunpack.c.h.b16 %v1281
    %v1914 = vunpack.c.l.b16 %v1282
    %v1915 = vunpack.c.h.b16 %v1282
    %v1916 = vunpack.c.l.b16 %v1283
    %v1917 = vunpack.c.h.b16 %v1283
    %v1918 = vunpack.c.l.b16 %v1284
    %v1919 = vunpack.c.h.b16 %v1284
    %v1920 = vunpack.c.l.b16 %v1285
    %v1921 = vunpack.c.h.b16 %v1285
    %v1922 = vunpack.c.l.b16 %v1286
    %v1923 = vunpack.c.h.b16 %v1286
    %v1924 = vunpack.c.l.b16 %v1287
    %v1925 = vunpack.c.h.b16 %v1287
    %v1926 = vunpack.c.l.b16 %v1288
    %v1927 = vunpack.c.h.b16 %v1288
    %v1928 = vunpack.c.l.b16 %v1289
    %v1929 = vunpack.c.h.b16 %v1289
    %v1930 = vunpack.c.l.b16 %v1290
    %v1931 = vunpack.c.h.b16 %v1290
    %v1932 = vunpack.c.l.b16 %v1291
    %v1933 = vunpack.c.h.b16 %v1291
    %v1934 = vunpack.c.l.b16 %v1292
    %v1935 = vunpack.c.h.b16 %v1292
    %v1936 = vunpack.c.l.b16 %v1293
    %v1937 = vunpack.c.h.b16 %v1293
    %v1938 = vunpack.c.l.b16 %v1294
    %v1939 = vunpack.c.h.b16 %v1294
    %v1940 = vunpack.c.l.b16 %v1295
    %v1941 = vunpack.c.h.b16 %v1295
    %v1942 = vunpack.c.l.b16 %v1296
    %v1943 = vunpack.c.h.b16 %v1296
    %v1944 = vunpack.c.l.b16 %v1297
    %v1945 = vunpack.c.h.b16 %v1297
    %v1946 = vunpack.c.l.b16 %v1298
    %v1947 = vunpack.c.h.b16 %v1298
    %v1948 = vunpack.c.l.b16 %v1299
    %v1949 = vunpack.c.h.b16 %v1299
    %v1950 = vunpack.c.l.b16 %v1300
    %v1951 = vunpack.c.h.b16 %v1300
    %v1952 = vunpack.c.l.b16 %v1301
    %v1953 = vunpack.c.h.b16 %v1301
    %v1954 = vunpack.c.l.b16 %v1302
    %v1955 = vunpack.c.h.b16 %v1302
    %v1956 = vunpack.c.l.b16 %v1303
    %v1957 = vunpack.c.h.b16 %v1303
    %v1958 = vunpack.c.l.b16 %v1304
    %v1959 = vunpack.c.h.b16 %v1304
    %v1960 = vunpack.c.l.b16 %v1305
    %v1961 = vunpack.c.h.b16 %v1305
    %v1962 = vunpack.c.l.b16 %v1306
    %v1963 = vunpack.c.h.b16 %v1306
    %v1964 = vunpack.c.l.b16 %v1307
    %v1965 = vunpack.c.h.b16 %v1307
    %v1966 = vunpack.c.l.b16 %v1308
    %v1967 = vunpack.c.h.b16 %v1308
    %v1968 = vunpack.c.l.b16 %v1309
    %v1969 = vunpack.c.h.b16 %v1309
    %v1970 = vunpack.c.l.b16 %v1310
    %v1971 = vunpack.c.h.b16 %v1310
    %v1972 = vunpack.c.l.b16 %v1311
    %v1973 = vunpack.c.h.b16 %v1311
    %v1974 = vunpack.c.l.b16 %v1312
    %v1975 = vunpack.c.h.b16 %v1312
    %v1976 = vunpack.c.l.b16 %v1313
    %v1977 = vunpack.c.h.b16 %v1313
    %v1978 = vunpack.c.l.b16 %v1314
    %v1979 = vunpack.c.h.b16 %v1314
    %v1980 = vunpack.c.l.b16 %v1315
    %v1981 = vunpack.c.h.b16 %v1315
    %v1982 = vunpack.c.l.b16 %v1316
    %v1983 = vunpack.c.h.b16 %v1316
    %v1984 = vunpack.c.l.b16 %v1317
    %v1985 = vunpack.c.h.b16 %v1317
    %v1986 = vunpack.c.l.b16 %v1318
    %v1987 = vunpack.c.h.b16 %v1318
    %v1988 = vunpack.c.l.b16 %v1319
    %v1989 = vunpack.c.h.b16 %v1319
    %v1990 = vunpack.c.l.b16 %v1320
    %v1991 = vunpack.c.h.b16 %v1320
    %v1992 = vunpack.c.l.b16 %v1321
    %v1993 = vunpack.c.h.b16 %v1321
    %v1994 = vunpack.c.l.b16 %v1322
    %v1995 = vunpack.c.h.b16 %v1322
    %v1996 = vunpack.c.l.b16 %v1323
    %v1997 = vunpack.c.h.b16 %v1323
    %v1998 = vunpack.c.l.b16 %v1324
    %v1999 = vunpack.c.h.b16 %v1324
    %v2000 = vunpack.c.l.b16 %v1325
    %v2001 = vunpack.c.h.b16 %v1325
    %v2002 = vunpack.c.l.b16 %v1326
    %v2003 = vunpack.c.h.b16 %v1326
    %v2004 = vunpack.c.l.b16 %v1327
    %v2005 = vunpack.c.h.b16 %v1327
    %v2006 = vunpack.c.l.b16 %v1328
    %v2007 = vunpack.c.h.b16 %v1328
    %v2008 = vunpack.c.l.b16 %v1329
    %v2009 = vunpack.c.h.b16 %v1329
    %v2010 = vunpack.c.l.b16 %v1330
    %v2011 = vunpack.c.h.b16 %v1330
    %v2012 = vunpack.c.l.b16 %v1331
    %v2013 = vunpack.c.h.b16 %v1331
    %v2014 = vunpack.c.l.b16 %v1332
    %v2015 = vunpack.c.h.b16 %v1332
    %v2016 = vunpack.c.l.b16 %v1333
    %v2017 = vunpack.c.h.b16 %v1333
    %v2018 = vunpack.c.l.b16 %v1334
    %v2019 = vunpack.c.h.b16 %v1334
    %v2020 = vunpack.c.l.b16 %v1335
    %v2021 = vunpack.c.h.b16 %v1335
    %v2022 = vunpack.c.l.b16 %v1336
    %v2023 = vunpack.c.h.b16 %v1336
    %v2024 = vunpack.c.l.b16 %v1337
    %v2025 = vunpack.c.h.b16 %v1337
    %v2026 = vunpack.c.l.b16 %v1338
    %v2027 = vunpack.c.h.b16 %v1338
    %v2028 = vunpack.c.l.b16 %v1339
    %v2029 = vunpack.c.h.b16 %v1339
    %v2030 = vunpack.c.l.b16 %v1340
    %v2031 = vunpack.c.h.b16 %v1340
    %v2032 = vunpack.c.l.b16 %v1341
    %v2033 = vunpack.c.h.b16 %v1341
    %v2034 = vunpack.c.l.b16 %v1342
    %v2035 = vunpack.c.h.b16 %v1342
    %v2036 = vunpack.c.l.b16 %v1343
    %v2037 = vunpack.c.h.b16 %v1343
    %v2038 = vunpack.c.l.b16 %v1344
    %v2039 = vunpack.c.h.b16 %v1344
    %v2040 = vunpack.c.l.b16 %v1345
    %v2041 = vunpack.c.h.b16 %v1345
    %v2042 = vunpack.c.l.b16 %v1346
    %v2043 = vunpack.c.h.b16 %v1346
    %v2044 = vunpack.c.l.b16 %v1347
    %v2045 = vunpack.c.h.b16 %v1347
    %v2046 = vunpack.c.l.b16 %v1348
    %v2047 = vunpack.c.h.b16 %v1348
    %v2048 = vunpack.c.l.b16 %v1349
    %v2049 = vunpack.c.h.b16 %v1349
    %v2050 = vunpack.c.l.b16 %v1350
    %v2051 = vunpack.c.h.b16 %v1350
    %v2052 = vunpack.c.l.b16 %v1351
    %v2053 = vunpack.c.h.b16 %v1351
    %v2054 = vunpack.c.l.b16 %v1352
    %v2055 = vunpack.c.h.b16 %v1352
    %v2056 = vunpack.c.l.b16 %v1353
    %v2057 = vunpack.c.h.b16 %v1353
    %v2058 = vunpack.c.l.b16 %v1354
    %v2059 = vunpack.c.h.b16 %v1354
    %v2060 = vunpack.c.l.b16 %v1355
    %v2061 = vunpack.c.h.b16 %v1355
    %v2062 = vunpack.c.l.b16 %v1356
    %v2063 = vunpack.c.h.b16 %v1356
    %v2064 = vunpack.c.l.b16 %v1357
    %v2065 = vunpack.c.h.b16 %v1357
    %v2066 = vunpack.c.l.b16 %v1358
    %v2067 = vunpack.c.h.b16 %v1358
    %v2068 = vunpack.c.l.b16 %v1359
    %v2069 = vunpack.c.h.b16 %v1359
    %v2070 = vunpack.c.l.b16 %v1360
    %v2071 = vunpack.c.h.b16 %v1360
    %v2072 = vunpack.c.l.b16 %v1361
    %v2073 = vunpack.c.h.b16 %v1361
    %v2074 = vunpack.c.l.b16 %v1362
    %v2075 = vunpack.c.h.b16 %v1362
    %v2076 = vunpack.c.l.b16 %v1363
    %v2077 = vunpack.c.h.b16 %v1363
    %v2078 = vunpack.c.l.b16 %v1364
    %v2079 = vunpack.c.h.b16 %v1364
    %v2080 = vunpack.c.l.b16 %v1365
    %v2081 = vunpack.c.h.b16 %v1365
    %v2082 = vunpack.c.l.b16 %v1366
    %v2083 = vunpack.c.h.b16 %v1366
    %v2084 = vunpack.c.l.b16 %v1367
    %v2085 = vunpack.c.h.b16 %v1367
    %v2086 = vunpack.c.l.b16 %v1368
    %v2087 = vunpack.c.h.b16 %v1368
    %v2088 = vunpack.c.l.b16 %v1369
    %v2089 = vunpack.c.h.b16 %v1369
    %v2090 = vunpack.c.l.b16 %v1370
    %v2091 = vunpack.c.h.b16 %v1370
    %v2092 = vunpack.c.l.b16 %v1371
    %v2093 = vunpack.c.h.b16 %v1371
    %v2094 = vunpack.c.l.b16 %v1372
    %v2095 = vunpack.c.h.b16 %v1372
    %v2096 = vunpack.c.l.b16 %v1373
    %v2097 = vunpack.c.h.b16 %v1373
    %v2098 = vunpack.c.l.b16 %v1374
    %v2099 = vunpack.c.h.b16 %v1374
    %v2100 = vunpack.c.l.b16 %v1375
    %v2101 = vunpack.c.h.b16 %v1375
    %v2102 = vunpack.c.l.b16 %v1376
    %v2103 = vunpack.c.h.b16 %v1376
    %v2104 = vunpack.c.l.b16 %v1377
    %v2105 = vunpack.c.h.b16 %v1377
    %v2106 = vunpack.c.l.b16 %v1378
    %v2107 = vunpack.c.h.b16 %v1378
    %v2108 = vunpack.c.l.b16 %v1379
    %v2109 = vunpack.c.h.b16 %v1379
    %v2110 = vunpack.c.l.b16 %v1380
    %v2111 = vunpack.c.h.b16 %v1380
    %v2112 = vunpack.c.l.b16 %v1381
    %v2113 = vunpack.c.h.b16 %v1381
    %v2114 = vunpack.c.l.b16 %v1382
    %v2115 = vunpack.c.h.b16 %v1382
    %v2116 = vunpack.c.l.b16 %v1383
    %v2117 = vunpack.c.h.b16 %v1383
    %v2118 = vunpack.c.l.b16 %v1384
    %v2119 = vunpack.c.h.b16 %v1384
    %v2120 = vunpack.c.l.b16 %v1385
    %v2121 = vunpack.c.h.b16 %v1385
    %v2122 = vunpack.c.l.b16 %v1386
    %v2123 = vunpack.c.h.b16 %v1386
    %v2124 = vunpack.c.l.b16 %v1387
    %v2125 = vunpack.c.h.b16 %v1387
    %v2126 = vunpack.c.l.b16 %v1388
    %v2127 = vunpack.c.h.b16 %v1388
    %v2128 = vunpack.c.l.b16 %v1389
    %v2129 = vunpack.c.h.b16 %v1389
    %v2130 = vunpack.c.l.b16 %v1390
    %v2131 = vunpack.c.h.b16 %v1390
    %v2132 = vunpack.c.l.b16 %v1391
    %v2133 = vunpack.c.h.b16 %v1391
    %v2134 = vunpack.c.l.b16 %v1392
    %v2135 = vunpack.c.h.b16 %v1392
    %v2136 = vunpack.c.l.b16 %v1393
    %v2137 = vunpack.c.h.b16 %v1393
    %v2138 = vunpack.c.l.b16 %v1394
    %v2139 = vunpack.c.h.b16 %v1394
    %v2140 = vunpack.c.l.b16 %v1395
    %v2141 = vunpack.c.h.b16 %v1395
    %v2142 = vunpack.c.l.b16 %v1396
    %v2143 = vunpack.c.h.b16 %v1396
    %v2144 = vunpack.c.l.b16 %v1397
    %v2145 = vunpack.c.h.b16 %v1397
    %v2146 = vunpack.c.l.b16 %v1398
    %v2147 = vunpack.c.h.b16 %v1398
    %v2148 = vunpack.c.l.b16 %v1399
    %v2149 = vunpack.c.h.b16 %v1399
    %v2150 = vunpack.c.l.b16 %v1400
    %v2151 = vunpack.c.h.b16 %v1400
    %v2152 = vunpack.c.l.b16 %v1401
    %v2153 = vunpack.c.h.b16 %v1401
    %v2154 = vunpack.c.l.b16 %v1402
    %v2155 = vunpack.c.h.b16 %v1402
    %v2156 = vunpack.c.l.b16 %v1403
    %v2157 = vunpack.c.h.b16 %v1403
    %v2158 = vunpack.c.l.b16 %v1404
    %v2159 = vunpack.c.h.b16 %v1404
    %v2160 = vunpack.c.l.b16 %v1405
    %v2161 = vunpack.c.h.b16 %v1405
    %v2162 = vunpack.c.l.b16 %v1406
    %v2163 = vunpack.c.h.b16 %v1406
    %v2164 = vunpack.c.l.b16 %v1407
    %v2165 = vunpack.c.h.b16 %v1407
    %v2166 = vunpack.c.l.b16 %v1408
    %v2167 = vunpack.c.h.b16 %v1408
    %v2168 = vunpack.c.l.b16 %v1409
    %v2169 = vunpack.c.h.b16 %v1409
    %v2170 = vunpack.c.l.b16 %v1410
    %v2171 = vunpack.c.h.b16 %v1410
    %v2172 = vunpack.c.l.b16 %v1411
    %v2173 = vunpack.c.h.b16 %v1411
    %v2174 = vunpack.c.l.b16 %v1412
    %v2175 = vunpack.c.h.b16 %v1412
    %v2176 = vunpack.c.l.b16 %v1413
    %v2177 = vunpack.c.h.b16 %v1413
    %v2178 = vunpack.c.l.b16 %v1414
    %v2179 = vunpack.c.h.b16 %v1414
    %v2180 = vunpack.c.l.b16 %v1415
    %v2181 = vunpack.c.h.b16 %v1415
    %v2182 = vunpack.c.l.b16 %v1416
    %v2183 = vunpack.c.h.b16 %v1416
    %v2184 = vunpack.c.l.b16 %v1417
    %v2185 = vunpack.c.h.b16 %v1417
    %v2186 = vunpack.c.l.b16 %v1418
    %v2187 = vunpack.c.h.b16 %v1418
    %v2188 = vunpack.c.l.b16 %v1419
    %v2189 = vunpack.c.h.b16 %v1419
    %v2190 = vunpack.c.l.b16 %v1420
    %v2191 = vunpack.c.h.b16 %v1420
    %v2192 = vunpack.c.l.b16 %v1421
    %v2193 = vunpack.c.h.b16 %v1421
    %v2194 = vunpack.c.l.b16 %v1422
    %v2195 = vunpack.c.h.b16 %v1422
    %v2196 = vunpack.c.l.b16 %v1423
    %v2197 = vunpack.c.h.b16 %v1423
    %v2198 = vunpack.c.l.b16 %v1424
    %v2199 = vunpack.c.h.b16 %v1424
    %v2200 = vunpack.c.l.b16 %v1425
    %v2201 = vunpack.c.h.b16 %v1425
    %v2202 = vunpack.c.l.b16 %v1426
    %v2203 = vunpack.c.h.b16 %v1426
    %v2204 = vunpack.c.l.b16 %v1427
    %v2205 = vunpack.c.h.b16 %v1427
    %v2206 = vunpack.c.l.b16 %v1428
    %v2207 = vunpack.c.h.b16 %v1428
    %v2208 = vunpack.c.l.b16 %v1429
    %v2209 = vunpack.c.h.b16 %v1429
    %v2210 = vunpack.c.l.b16 %v1430
    %v2211 = vunpack.c.h.b16 %v1430
    %v2212 = vunpack.c.l.b16 %v1431
    %v2213 = vunpack.c.h.b16 %v1431
    %v2214 = vunpack.c.l.b16 %v1432
    %v2215 = vunpack.c.h.b16 %v1432
    %v2216 = vunpack.c.l.b16 %v1433
    %v2217 = vunpack.c.h.b16 %v1433
    %v2218 = vunpack.c.l.b16 %v1434
    %v2219 = vunpack.c.h.b16 %v1434
    %v2220 = vunpack.c.l.b16 %v1435
    %v2221 = vunpack.c.h.b16 %v1435
    %v2222 = vunpack.c.l.b16 %v1436
    %v2223 = vunpack.c.h.b16 %v1436
    %v2224 = vunpack.c.l.b16 %v1437
    %v2225 = vunpack.c.h.b16 %v1437
    %v2226 = vunpack.c.l.b16 %v1438
    %v2227 = vunpack.c.h.b16 %v1438
    %v2228 = vunpack.c.l.b16 %v1439
    %v2229 = vunpack.c.h.b16 %v1439
    %v2230 = vunpack.c.l.b16 %v1440
    %v2231 = vunpack.c.h.b16 %v1440
    %v2232 = vunpack.c.l.b16 %v1441
    %v2233 = vunpack.c.h.b16 %v1441
    %v2234 = vunpack.c.l.b16 %v1442
    %v2235 = vunpack.c.h.b16 %v1442
    %v2236 = vunpack.c.l.b16 %v1443
    %v2237 = vunpack.c.h.b16 %v1443
    %v2238 = vunpack.c.l.b16 %v1444
    %v2239 = vunpack.c.h.b16 %v1444
    %v2240 = vunpack.c.l.b16 %v1445
    %v2241 = vunpack.c.h.b16 %v1445
    %v2242 = vunpack.c.l.b16 %v1446
    %v2243 = vunpack.c.h.b16 %v1446
    %v2244 = vunpack.c.l.b16 %v1447
    %v2245 = vunpack.c.h.b16 %v1447
    %v2246 = vunpack.c.l.b16 %v1448
    %v2247 = vunpack.c.h.b16 %v1448
    %v2248 = vunpack.c.l.b16 %v1449
    %v2249 = vunpack.c.h.b16 %v1449
    %v2250 = vunpack.c.l.b16 %v1450
    %v2251 = vunpack.c.h.b16 %v1450
    %v2252 = vunpack.c.l.b16 %v1451
    %v2253 = vunpack.c.h.b16 %v1451
    %v2254 = vunpack.c.l.b16 %v1452
    %v2255 = vunpack.c.h.b16 %v1452
    %v2256 = vunpack.c.l.b16 %v1453
    %v2257 = vunpack.c.h.b16 %v1453
    %v2258 = vunpack.c.l.b16 %v1454
    %v2259 = vunpack.c.h.b16 %v1454
    %v2260 = vunpack.c.l.b16 %v1455
    %v2261 = vunpack.c.h.b16 %v1455
    %v2262 = vunpack.c.l.b16 %v1456
    %v2263 = vunpack.c.h.b16 %v1456
    %v2264 = vunpack.c.l.b16 %v1457
    %v2265 = vunpack.c.h.b16 %v1457
    %v2266 = vunpack.c.l.b16 %v1458
    %v2267 = vunpack.c.h.b16 %v1458
    %v2268 = vunpack.c.l.b16 %v1459
    %v2269 = vunpack.c.h.b16 %v1459
    %v2270 = vunpack.c.l.b16 %v1460
    %v2271 = vunpack.c.h.b16 %v1460
    %v2272 = vunpack.c.l.b16 %v1461
    %v2273 = vunpack.c.h.b16 %v1461
    %v2274 = vunpack.c.l.b16 %v1462
    %v2275 = vunpack.c.h.b16 %v1462
    %v2276 = vpack.c.b16 %v1772, %v1764
    %v2277 = vpack.c.b16 %v1773, %v1765
    %v2278 = vpack.c.b16 %v1774, %v1766
    %v2279 = vpack.c.b16 %v1775, %v1767
    %v2280 = vpack.c.b16 %v1776, %v1768
    %v2281 = vpack.c.b16 %v1777, %v1769
    %v2282 = vpack.c.b16 %v1778, %v1770
    %v2283 = vpack.c.b16 %v1779, %v1771
    %v2284 = vpack.c.b16 %v1788, %v1780
    %v2285 = vpack.c.b16 %v1789, %v1781
    %v2286 = vpack.c.b16 %v1790, %v1782
    %v2287 = vpack.c.b16 %v1791, %v1783
    %v2288 = vpack.c.b16 %v1792, %v1784
    %v2289 = vpack.c.b16 %v1793, %v1785
    %v2290 = vpack.c.b16 %v1794, %v1786
    %v2291 = vpack.c.b16 %v1795, %v1787
    %v2292 = vpack.c.b16 %v1804, %v1796
    %v2293 = vpack.c.b16 %v1805, %v1797
    %v2294 = vpack.c.b16 %v1806, %v1798
    %v2295 = vpack.c.b16 %v1807, %v1799
    %v2296 = vpack.c.b16 %v1808, %v1800
    %v2297 = vpack.c.b16 %v1809, %v1801
    %v2298 = vpack.c.b16 %v1810, %v1802
    %v2299 = vpack.c.b16 %v1811, %v1803
    %v2300 = vpack.c.b16 %v1820, %v1812
    %v2301 = vpack.c.b16 %v1821, %v1813
    %v2302 = vpack.c.b16 %v1822, %v1814
    %v2303 = vpack.c.b16 %v1823, %v1815
    %v2304 = vpack.c.b16 %v1824, %v1816
    %v2305 = vpack.c.b16 %v1825, %v1817
    %v2306 = vpack.c.b16 %v1826, %v1818
    %v2307 = vpack.c.b16 %v1827, %v1819
    %v2308 = vpack.c.b16 %v1836, %v1828
    %v2309 = vpack.c.b16 %v1837, %v1829
    %v2310 = vpack.c.b16 %v1838, %v1830
    %v2311 = vpack.c.b16 %v1839, %v1831
    %v2312 = vpack.c.b16 %v1840, %v1832
    %v2313 = vpack.c.b16 %v1841, %v1833
    %v2314 = vpack.c.b16 %v1842, %v1834
    %v2315 = vpack.c.b16 %v1843, %v1835
    %v2316 = vpack.c.b16 %v1852, %v1844
    %v2317 = vpack.c.b16 %v1853, %v1845
    %v2318 = vpack.c.b16 %v1854, %v1846
    %v2319 = vpack.c.b16 %v1855, %v1847
    %v2320 = vpack.c.b16 %v1856, %v1848
    %v2321 = vpack.c.b16 %v1857, %v1849
    %v2322 = vpack.c.b16 %v1858, %v1850
    %v2323 = vpack.c.b16 %v1859, %v1851
    %v2324 = vpack.c.b16 %v1868, %v1860
    %v2325 = vpack.c.b16 %v1869, %v1861
    %v2326 = vpack.c.b16 %v1870, %v1862
    %v2327 = vpack.c.b16 %v1871, %v1863
    %v2328 = vpack.c.b16 %v1872, %v1864
    %v2329 = vpack.c.b16 %v1873, %v1865
    %v2330 = vpack.c.b16 %v1874, %v1866
    %v2331 = vpack.c.b16 %v1875, %v1867
    %v2332 = vpack.c.b16 %v1884, %v1876
    %v2333 = vpack.c.b16 %v1885, %v1877
    %v2334 = vpack.c.b16 %v1886, %v1878
    %v2335 = vpack.c.b16 %v1887, %v1879
    %v2336 = vpack.c.b16 %v1888, %v1880
    %v2337 = vpack.c.b16 %v1889, %v1881
    %v2338 = vpack.c.b16 %v1890, %v1882
    %v2339 = vpack.c.b16 %v1891, %v1883
    %v2340 = vpack.c.b16 %v1900, %v1892
    %v2341 = vpack.c.b16 %v1901, %v1893
    %v2342 = vpack.c.b16 %v1902, %v1894
    %v2343 = vpack.c.b16 %v1903, %v1895
    %v2344 = vpack.c.b16 %v1904, %v1896
    %v2345 = vpack.c.b16 %v1905, %v1897
    %v2346 = vpack.c.b16 %v1906, %v1898
    %v2347 = vpack.c.b16 %v1907, %v1899
    %v2348 = vpack.c.b16 %v1916, %v1908
    %v2349 = vpack.c.b16 %v1917, %v1909
    %v2350 = vpack.c.b16 %v1918, %v1910
    %v2351 = vpack.c.b16 %v1919, %v1911
    %v2352 = vpack.c.b16 %v1920, %v1912
    %v2353 = vpack.c.b16 %v1921, %v1913
    %v2354 = vpack.c.b16 %v1922, %v1914
    %v2355 = vpack.c.b16 %v1923, %v1915
    %v2356 = vpack.c.b16 %v1932, %v1924
    %v2357 = vpack.c.b16 %v1933, %v1925
    %v2358 = vpack.c.b16 %v1934, %v1926
    %v2359 = vpack.c.b16 %v1935, %v1927
    %v2360 = vpack.c.b16 %v1936, %v1928
    %v2361 = vpack.c.b16 %v1937, %v1929
    %v2362 = vpack.c.b16 %v1938, %v1930
    %v2363 = vpack.c.b16 %v1939, %v1931
    %v2364 = vpack.c.b16 %v1948, %v1940
    %v2365 = vpack.c.b16 %v1949, %v1941
    %v2366 = vpack.c.b16 %v1950, %v1942
    %v2367 = vpack.c.b16 %v1951, %v1943
    %v2368 = vpack.c.b16 %v1952, %v1944
    %v2369 = vpack.c.b16 %v1953, %v1945
    %v2370 = vpack.c.b16 %v1954, %v1946
    %v2371 = vpack.c.b16 %v1955, %v1947
    %v2372 = vpack.c.b16 %v1964, %v1956
    %v2373 = vpack.c.b16 %v1965, %v1957
    %v2374 = vpack.c.b16 %v1966, %v1958
    %v2375 = vpack.c.b16 %v1967, %v1959
    %v2376 = vpack.c.b16 %v1968, %v1960
    %v2377 = vpack.c.b16 %v1969, %v1961
    %v2378 = vpack.c.b16 %v1970, %v1962
    %v2379 = vpack.c.b16 %v1971, %v1963
    %v2380 = vpack.c.b16 %v1980, %v1972
    %v2381 = vpack.c.b16 %v1981, %v1973
    %v2382 = vpack.c.b16 %v1982, %v1974
    %v2383 = vpack.c.b16 %v1983, %v1975
    %v2384 = vpack.c.b16 %v1984, %v1976
    %v2385 = vpack.c.b16 %v1985, %v1977
    %v2386 = vpack.c.b16 %v1986, %v1978
    %v2387 = vpack.c.b16 %v1987, %v1979
    %v2388 = vpack.c.b16 %v1996, %v1988
    %v2389 = vpack.c.b16 %v1997, %v1989
    %v2390 = vpack.c.b16 %v1998, %v1990
    %v2391 = vpack.c.b16 %v1999, %v1991
    %v2392 = vpack.c.b16 %v2000, %v1992
    %v2393 = vpack.c.b16 %v2001, %v1993
    %v2394 = vpack.c.b16 %v2002, %v1994
    %v2395 = vpack.c.b16 %v2003, %v1995
    %v2396 = vpack.c.b16 %v2012, %v2004
    %v2397 = vpack.c.b16 %v2013, %v2005
    %v2398 = vpack.c.b16 %v2014, %v2006
    %v2399 = vpack.c.b16 %v2015, %v2007
    %v2400 = vpack.c.b16 %v2016, %v2008
    %v2401 = vpack.c.b16 %v2017, %v2009
    %v2402 = vpack.c.b16 %v2018, %v2010
    %v2403 = vpack.c.b16 %v2019, %v2011
    %v2404 = vpack.c.b16 %v2028, %v2020
    %v2405 = vpack.c.b16 %v2029, %v2021
    %v2406 = vpack.c.b16 %v2030, %v2022
    %v2407 = vpack.c.b16 %v2031, %v2023
    %v2408 = vpack.c.b16 %v2032, %v2024
    %v2409 = vpack.c.b16 %v2033, %v2025
    %v2410 = vpack.c.b16 %v2034, %v2026
    %v2411 = vpack.c.b16 %v2035, %v2027
    %v2412 = vpack.c.b16 %v2044, %v2036
    %v2413 = vpack.c.b16 %v2045, %v2037
    %v2414 = vpack.c.b16 %v2046, %v2038
    %v2415 = vpack.c.b16 %v2047, %v2039
    %v2416 = vpack.c.b16 %v2048, %v2040
    %v2417 = vpack.c.b16 %v2049, %v2041
    %v2418 = vpack.c.b16 %v2050, %v2042
    %v2419 = vpack.c.b16 %v2051, %v2043
    %v2420 = vpack.c.b16 %v2060, %v2052
    %v2421 = vpack.c.b16 %v2061, %v2053
    %v2422 = vpack.c.b16 %v2062, %v2054
    %v2423 = vpack.c.b16 %v2063, %v2055
    %v2424 = vpack.c.b16 %v2064, %v2056
    %v2425 = vpack.c.b16 %v2065, %v2057
    %v2426 = vpack.c.b16 %v2066, %v2058
    %v2427 = vpack.c.b16 %v2067, %v2059
    %v2428 = vpack.c.b16 %v2076, %v2068
    %v2429 = vpack.c.b16 %v2077, %v2069
    %v2430 = vpack.c.b16 %v2078, %v2070
    %v2431 = vpack.c.b16 %v2079, %v2071
    %v2432 = vpack.c.b16 %v2080, %v2072
    %v2433 = vpack.c.b16 %v2081, %v2073
    %v2434 = vpack.c.b16 %v2082, %v2074
    %v2435 = vpack.c.b16 %v2083, %v2075
    %v2436 = vpack.c.b16 %v2092, %v2084
    %v2437 = vpack.c.b16 %v2093, %v2085
    %v2438 = vpack.c.b16 %v2094, %v2086
    %v2439 = vpack.c.b16 %v2095, %v2087
    %v2440 = vpack.c.b16 %v2096, %v2088
    %v2441 = vpack.c.b16 %v2097, %v2089
    %v2442 = vpack.c.b16 %v2098, %v2090
    %v2443 = vpack.c.b16 %v2099, %v2091
    %v2444 = vpack.c.b16 %v2108, %v2100
    %v2445 = vpack.c.b16 %v2109, %v2101
    %v2446 = vpack.c.b16 %v2110, %v2102
    %v2447 = vpack.c.b16 %v2111, %v2103
    %v2448 = vpack.c.b16 %v2112, %v2104
    %v2449 = vpack.c.b16 %v2113, %v2105
    %v2450 = vpack.c.b16 %v2114, %v2106
    %v2451 = vpack.c.b16 %v2115, %v2107
    %v2452 = vpack.c.b16 %v2124, %v2116
    %v2453 = vpack.c.b16 %v2125, %v2117
    %v2454 = vpack.c.b16 %v2126, %v2118
    %v2455 = vpack.c.b16 %v2127, %v2119
    %v2456 = vpack.c.b16 %v2128, %v2120
    %v2457 = vpack.c.b16 %v2129, %v2121
    %v2458 = vpack.c.b16 %v2130, %v2122
    %v2459 = vpack.c.b16 %v2131, %v2123
    %v2460 = vpack.c.b16 %v2140, %v2132
    %v2461 = vpack.c.b16 %v2141, %v2133
    %v2462 = vpack.c.b16 %v2142, %v2134
    %v2463 = vpack.c.b16 %v2143, %v2135
    %v2464 = vpack.c.b16 %v2144, %v2136
    %v2465 = vpack.c.b16 %v2145, %v2137
    %v2466 = vpack.c.b16 %v2146, %v2138
    %v2467 = vpack.c.b16 %v2147, %v2139
    %v2468 = vpack.c.b16 %v2156, %v2148
    %v2469 = vpack.c.b16 %v2157, %v2149
    %v2470 = vpack.c.b16 %v2158, %v2150
    %v2471 = vpack.c.b16 %v2159, %v2151
    %v2472 = vpack.c.b16 %v2160, %v2152
    %v2473 = vpack.c.b16 %v2161, %v2153
    %v2474 = vpack.c.b16 %v2162, %v2154
    %v2475 = vpack.c.b16 %v2163, %v2155
    %v2476 = vpack.c.b16 %v2172, %v2164
    %v2477 = vpack.c.b16 %v2173, %v2165
    %v2478 = vpack.c.b16 %v2174, %v2166
    %v2479 = vpack.c.b16 %v2175, %v2167
    %v2480 = vpack.c.b16 %v2176, %v2168
    %v2481 = vpack.c.b16 %v2177, %v2169
    %v2482 = vpack.c.b16 %v2178, %v2170
    %v2483 = vpack.c.b16 %v2179, %v2171
    %v2484 = vpack.c.b16 %v2188, %v2180
    %v2485 = vpack.c.b16 %v2189, %v2181
    %v2486 = vpack.c.b16 %v2190, %v2182
    %v2487 = vpack.c.b16 %v2191, %v2183
    %v2488 = vpack.c.b16 %v2192, %v2184
    %v2489 = vpack.c.b16 %v2193, %v2185
    %v2490 = vpack.c.b16 %v2194, %v2186
    %v2491 = vpack.c.b16 %v2195, %v2187
    %v2492 = vpack.c.b16 %v2204, %v2196
    %v2493 = vpack.c.b16 %v2205, %v2197
    %v2494 = vpack.c.b16 %v2206, %v2198
    %v2495 = vpack.c.b16 %v2207, %v2199
    %v2496 = vpack.c.b16 %v2208, %v2200
    %v2497 = vpack.c.b16 %v2209, %v2201
    %v2498 = vpack.c.b16 %v2210, %v2202
    %v2499 = vpack.c.b16 %v2211, %v2203
    %v2500 = vpack.c.b16 %v2220, %v2212
    %v2501 = vpack.c.b16 %v2221, %v2213
    %v2502 = vpack.c.b16 %v2222, %v2214
    %v2503 = vpack.c.b16 %v2223, %v2215
    %v2504 = vpack.c.b16 %v2224, %v2216
    %v2505 = vpack.c.b16 %v2225, %v2217
    %v2506 = vpack.c.b16 %v2226, %v2218
    %v2507 = vpack.c.b16 %v2227, %v2219
    %v2508 = vpack.c.b16 %v2236, %v2228
    %v2509 = vpack.c.b16 %v2237, %v2229
    %v2510 = vpack.c.b16 %v2238, %v2230
    %v2511 = vpack.c.b16 %v2239, %v2231
    %v2512 = vpack.c.b16 %v2240, %v2232
    %v2513 = vpack.c.b16 %v2241, %v2233
    %v2514 = vpack.c.b16 %v2242, %v2234
    %v2515 = vpack.c.b16 %v2243, %v2235
    %v2516 = vpack.c.b16 %v2252, %v2244
    %v2517 = vpack.c.b16 %v2253, %v2245
    %v2518 = vpack.c.b16 %v2254, %v2246
    %v2519 = vpack.c.b16 %v2255, %v2247
    %v2520 = vpack.c.b16 %v2256, %v2248
    %v2521 = vpack.c.b16 %v2257, %v2249
    %v2522 = vpack.c.b16 %v2258, %v2250
    %v2523 = vpack.c.b16 %v2259, %v2251
    %v2524 = vpack.c.b16 %v2268, %v2260
    %v2525 = vpack.c.b16 %v2269, %v2261
    %v2526 = vpack.c.b16 %v2270, %v2262
    %v2527 = vpack.c.b16 %v2271, %v2263
    %v2528 = vpack.c.b16 %v2272, %v2264
    %v2529 = vpack.c.b16 %v2273, %v2265
    %v2530 = vpack.c.b16 %v2274, %v2266
    %v2531 = vpack.c.b16 %v2275, %v2267
    %2788 = vmatprep.subr.bf16.mxu0 %v2333
    %2789 = vmatpush1.bf16.msra.mxu0 %v2332
    %2790 = vmatprep.subr.bf16.mxu0 %v2325
    %2791 = vmatpush1.bf16.msra.mxu0 %v2324
    %2792 = vmatprep.subr.bf16.mxu0 %v2317
    %2793 = vmatpush1.bf16.msra.mxu0 %v2316
    %2794 = vmatprep.subr.bf16.mxu0 %v2309
    %2795 = vmatpush1.bf16.msra.mxu0 %v2308
    %2796 = vmatprep.subr.bf16.mxu0 %v2301
    %2797 = vmatpush1.bf16.msra.mxu0 %v2300
    %2798 = vmatprep.subr.bf16.mxu0 %v2293
    %2799 = vmatpush1.bf16.msra.mxu0 %v2292
    %2800 = vmatprep.subr.bf16.mxu0 %v2285
    %2801 = vmatpush1.bf16.msra.mxu0 %v2284
    %2802 = vmatprep.subr.bf16.mxu0 %v2277
    %2803 = vmatpush1.bf16.msra.mxu0 %v2276
    %2804 = vmatprep.subr.bf16.mxu0 %v2397
    %2805 = vmatpush2.bf16.msra.mxu0 %v2396
    %2806 = vmatprep.subr.bf16.mxu0 %v2389
    %2807 = vmatpush2.bf16.msra.mxu0 %v2388
    %2808 = vmatprep.subr.bf16.mxu0 %v2381
    %2809 = vmatpush2.bf16.msra.mxu0 %v2380
    %2810 = vmatprep.subr.bf16.mxu0 %v2373
    %2811 = vmatpush2.bf16.msra.mxu0 %v2372
    %2812 = vmatprep.subr.bf16.mxu0 %v2365
    %2813 = vmatpush2.bf16.msra.mxu0 %v2364
    %2814 = vmatprep.subr.bf16.mxu0 %v2357
    %2815 = vmatpush2.bf16.msra.mxu0 %v2356
    %2816 = vmatprep.subr.bf16.mxu0 %v2349
    %2817 = vmatpush2.bf16.msra.mxu0 %v2348
    %2818 = vmatprep.subr.bf16.mxu0 %v2341
    %2819 = vmatpush2.bf16.msra.mxu0 %v2340
    %2820 = vmatprep.mubr.bf16.mxu0 %v1464
    %2821 = vmatmul.mubr.bf16.gmra.mxu0 %v1463
    %v2822 = vpop.f32.mrf.mxu0
    %v2823 = vadd.f32 %v1471, %v2822
    %v2824 = vpop.f32.mrf.mxu0
    %v2825 = vadd.f32 %v1475, %v2824
    %v2826 = vpop.f32.mrf.mxu0
    %v2827 = vpop.f32.mrf.mxu0
    %2828 = vdwg.mxu0
    %2829 = vmatprep.subr.bf16.mxu0 %v2461
    %2830 = vmatpush1.bf16.msra.mxu0 %v2460
    %2831 = vmatprep.subr.bf16.mxu0 %v2453
    %2832 = vmatpush1.bf16.msra.mxu0 %v2452
    %2833 = vmatprep.subr.bf16.mxu0 %v2445
    %2834 = vmatpush1.bf16.msra.mxu0 %v2444
    %2835 = vmatprep.subr.bf16.mxu0 %v2437
    %2836 = vmatpush1.bf16.msra.mxu0 %v2436
    %2837 = vmatprep.subr.bf16.mxu0 %v2429
    %2838 = vmatpush1.bf16.msra.mxu0 %v2428
    %2839 = vmatprep.subr.bf16.mxu0 %v2421
    %2840 = vmatpush1.bf16.msra.mxu0 %v2420
    %2841 = vmatprep.subr.bf16.mxu0 %v2413
    %2842 = vmatpush1.bf16.msra.mxu0 %v2412
    %2843 = vmatprep.subr.bf16.mxu0 %v2405
    %2844 = vmatpush1.bf16.msra.mxu0 %v2404
    %2845 = vmatprep.subr.bf16.mxu0 %v2525
    %2846 = vmatpush2.bf16.msra.mxu0 %v2524
    %2847 = vmatprep.subr.bf16.mxu0 %v2517
    %2848 = vmatpush2.bf16.msra.mxu0 %v2516
    %2849 = vmatprep.subr.bf16.mxu0 %v2509
    %2850 = vmatpush2.bf16.msra.mxu0 %v2508
    %2851 = vmatprep.subr.bf16.mxu0 %v2501
    %2852 = vmatpush2.bf16.msra.mxu0 %v2500
    %2853 = vmatprep.subr.bf16.mxu0 %v2493
    %2854 = vmatpush2.bf16.msra.mxu0 %v2492
    %2855 = vmatprep.subr.bf16.mxu0 %v2485
    %2856 = vmatpush2.bf16.msra.mxu0 %v2484
    %2857 = vmatprep.subr.bf16.mxu0 %v2477
    %2858 = vmatpush2.bf16.msra.mxu0 %v2476
    %2859 = vmatprep.subr.bf16.mxu0 %v2469
    %2860 = vmatpush2.bf16.msra.mxu0 %v2468
    %2861 = vmatprep.mubr.bf16.mxu0 %v1466
    %2862 = vmatmul.mubr.bf16.gmra.mxu0 %v1465
    %v2863 = vpop.f32.mrf.mxu0
    %v2864 = vadd.f32 %v2823, %v2863
    %v2865 = vpop.f32.mrf.mxu0
    %v2866 = vadd.f32 %v2825, %v2865
    %v2867 = vpop.f32.mrf.mxu0
    %v2868 = vpop.f32.mrf.mxu0
    %2869 = vdwg.mxu0
    %2870 = vmatprep.subr.bf16.mxu0 %v2335
    %2871 = vmatpush1.bf16.msra.mxu0 %v2334
    %2872 = vmatprep.subr.bf16.mxu0 %v2327
    %2873 = vmatpush1.bf16.msra.mxu0 %v2326
    %2874 = vmatprep.subr.bf16.mxu0 %v2319
    %2875 = vmatpush1.bf16.msra.mxu0 %v2318
    %2876 = vmatprep.subr.bf16.mxu0 %v2311
    %2877 = vmatpush1.bf16.msra.mxu0 %v2310
    %2878 = vmatprep.subr.bf16.mxu0 %v2303
    %2879 = vmatpush1.bf16.msra.mxu0 %v2302
    %2880 = vmatprep.subr.bf16.mxu0 %v2295
    %2881 = vmatpush1.bf16.msra.mxu0 %v2294
    %2882 = vmatprep.subr.bf16.mxu0 %v2287
    %2883 = vmatpush1.bf16.msra.mxu0 %v2286
    %2884 = vmatprep.subr.bf16.mxu0 %v2279
    %2885 = vmatpush1.bf16.msra.mxu0 %v2278
    %2886 = vmatprep.subr.bf16.mxu0 %v2399
    %2887 = vmatpush2.bf16.msra.mxu0 %v2398
    %2888 = vmatprep.subr.bf16.mxu0 %v2391
    %2889 = vmatpush2.bf16.msra.mxu0 %v2390
    %2890 = vmatprep.subr.bf16.mxu0 %v2383
    %2891 = vmatpush2.bf16.msra.mxu0 %v2382
    %2892 = vmatprep.subr.bf16.mxu0 %v2375
    %2893 = vmatpush2.bf16.msra.mxu0 %v2374
    %2894 = vmatprep.subr.bf16.mxu0 %v2367
    %2895 = vmatpush2.bf16.msra.mxu0 %v2366
    %2896 = vmatprep.subr.bf16.mxu0 %v2359
    %2897 = vmatpush2.bf16.msra.mxu0 %v2358
    %2898 = vmatprep.subr.bf16.mxu0 %v2351
    %2899 = vmatpush2.bf16.msra.mxu0 %v2350
    %2900 = vmatprep.subr.bf16.mxu0 %v2343
    %2901 = vmatpush2.bf16.msra.mxu0 %v2342
    %2902 = vmatprep.mubr.bf16.mxu0 %v1464
    %2903 = vmatmul.mubr.bf16.gmra.mxu0 %v1463
    %v2904 = vpop.f32.mrf.mxu0
    %v2905 = vadd.f32 %v1479, %v2904
    %v2906 = vpop.f32.mrf.mxu0
    %v2907 = vadd.f32 %v1483, %v2906
    %v2908 = vpop.f32.mrf.mxu0
    %v2909 = vpop.f32.mrf.mxu0
    %2910 = vdwg.mxu0
    %2911 = vmatprep.subr.bf16.mxu0 %v2463
    %2912 = vmatpush1.bf16.msra.mxu0 %v2462
    %2913 = vmatprep.subr.bf16.mxu0 %v2455
    %2914 = vmatpush1.bf16.msra.mxu0 %v2454
    %2915 = vmatprep.subr.bf16.mxu0 %v2447
    %2916 = vmatpush1.bf16.msra.mxu0 %v2446
    %2917 = vmatprep.subr.bf16.mxu0 %v2439
    %2918 = vmatpush1.bf16.msra.mxu0 %v2438
    %2919 = vmatprep.subr.bf16.mxu0 %v2431
    %2920 = vmatpush1.bf16.msra.mxu0 %v2430
    %2921 = vmatprep.subr.bf16.mxu0 %v2423
    %2922 = vmatpush1.bf16.msra.mxu0 %v2422
    %2923 = vmatprep.subr.bf16.mxu0 %v2415
    %2924 = vmatpush1.bf16.msra.mxu0 %v2414
    %2925 = vmatprep.subr.bf16.mxu0 %v2407
    %2926 = vmatpush1.bf16.msra.mxu0 %v2406
    %2927 = vmatprep.subr.bf16.mxu0 %v2527
    %2928 = vmatpush2.bf16.msra.mxu0 %v2526
    %2929 = vmatprep.subr.bf16.mxu0 %v2519
    %2930 = vmatpush2.bf16.msra.mxu0 %v2518
    %2931 = vmatprep.subr.bf16.mxu0 %v2511
    %2932 = vmatpush2.bf16.msra.mxu0 %v2510
    %2933 = vmatprep.subr.bf16.mxu0 %v2503
    %2934 = vmatpush2.bf16.msra.mxu0 %v2502
    %2935 = vmatprep.subr.bf16.mxu0 %v2495
    %2936 = vmatpush2.bf16.msra.mxu0 %v2494
    %2937 = vmatprep.subr.bf16.mxu0 %v2487
    %2938 = vmatpush2.bf16.msra.mxu0 %v2486
    %2939 = vmatprep.subr.bf16.mxu0 %v2479
    %2940 = vmatpush2.bf16.msra.mxu0 %v2478
    %2941 = vmatprep.subr.bf16.mxu0 %v2471
    %2942 = vmatpush2.bf16.msra.mxu0 %v2470
    %2943 = vmatprep.mubr.bf16.mxu0 %v1466
    %2944 = vmatmul.mubr.bf16.gmra.mxu0 %v1465
    %v2945 = vpop.f32.mrf.mxu0
    %v2946 = vadd.f32 %v2905, %v2945
    %v2947 = vpop.f32.mrf.mxu0
    %v2948 = vadd.f32 %v2907, %v2947
    %v2949 = vpop.f32.mrf.mxu0
    %v2950 = vpop.f32.mrf.mxu0
    %2951 = vdwg.mxu0
    %2952 = vmatprep.subr.bf16.mxu0 %v2337
    %2953 = vmatpush1.bf16.msra.mxu0 %v2336
    %2954 = vmatprep.subr.bf16.mxu0 %v2329
    %2955 = vmatpush1.bf16.msra.mxu0 %v2328
    %2956 = vmatprep.subr.bf16.mxu0 %v2321
    %2957 = vmatpush1.bf16.msra.mxu0 %v2320
    %2958 = vmatprep.subr.bf16.mxu0 %v2313
    %2959 = vmatpush1.bf16.msra.mxu0 %v2312
    %2960 = vmatprep.subr.bf16.mxu0 %v2305
    %2961 = vmatpush1.bf16.msra.mxu0 %v2304
    %2962 = vmatprep.subr.bf16.mxu0 %v2297
    %2963 = vmatpush1.bf16.msra.mxu0 %v2296
    %2964 = vmatprep.subr.bf16.mxu0 %v2289
    %2965 = vmatpush1.bf16.msra.mxu0 %v2288
    %2966 = vmatprep.subr.bf16.mxu0 %v2281
    %2967 = vmatpush1.bf16.msra.mxu0 %v2280
    %2968 = vmatprep.subr.bf16.mxu0 %v2401
    %2969 = vmatpush2.bf16.msra.mxu0 %v2400
    %2970 = vmatprep.subr.bf16.mxu0 %v2393
    %2971 = vmatpush2.bf16.msra.mxu0 %v2392
    %2972 = vmatprep.subr.bf16.mxu0 %v2385
    %2973 = vmatpush2.bf16.msra.mxu0 %v2384
    %2974 = vmatprep.subr.bf16.mxu0 %v2377
    %2975 = vmatpush2.bf16.msra.mxu0 %v2376
    %2976 = vmatprep.subr.bf16.mxu0 %v2369
    %2977 = vmatpush2.bf16.msra.mxu0 %v2368
    %2978 = vmatprep.subr.bf16.mxu0 %v2361
    %2979 = vmatpush2.bf16.msra.mxu0 %v2360
    %2980 = vmatprep.subr.bf16.mxu0 %v2353
    %2981 = vmatpush2.bf16.msra.mxu0 %v2352
    %2982 = vmatprep.subr.bf16.mxu0 %v2345
    %2983 = vmatpush2.bf16.msra.mxu0 %v2344
    %2984 = vmatprep.mubr.bf16.mxu0 %v1464
    %2985 = vmatmul.mubr.bf16.gmra.mxu0 %v1463
    %v2986 = vpop.f32.mrf.mxu0
    %v2987 = vadd.f32 %v1487, %v2986
    %v2988 = vpop.f32.mrf.mxu0
    %v2989 = vadd.f32 %v1491, %v2988
    %v2990 = vpop.f32.mrf.mxu0
    %v2991 = vpop.f32.mrf.mxu0
    %2992 = vdwg.mxu0
    %2993 = vmatprep.subr.bf16.mxu0 %v2465
    %2994 = vmatpush1.bf16.msra.mxu0 %v2464
    %2995 = vmatprep.subr.bf16.mxu0 %v2457
    %2996 = vmatpush1.bf16.msra.mxu0 %v2456
    %2997 = vmatprep.subr.bf16.mxu0 %v2449
    %2998 = vmatpush1.bf16.msra.mxu0 %v2448
    %2999 = vmatprep.subr.bf16.mxu0 %v2441
    %3000 = vmatpush1.bf16.msra.mxu0 %v2440
    %3001 = vmatprep.subr.bf16.mxu0 %v2433
    %3002 = vmatpush1.bf16.msra.mxu0 %v2432
    %3003 = vmatprep.subr.bf16.mxu0 %v2425
    %3004 = vmatpush1.bf16.msra.mxu0 %v2424
    %3005 = vmatprep.subr.bf16.mxu0 %v2417
    %3006 = vmatpush1.bf16.msra.mxu0 %v2416
    %3007 = vmatprep.subr.bf16.mxu0 %v2409
    %3008 = vmatpush1.bf16.msra.mxu0 %v2408
    %3009 = vmatprep.subr.bf16.mxu0 %v2529
    %3010 = vmatpush2.bf16.msra.mxu0 %v2528
    %3011 = vmatprep.subr.bf16.mxu0 %v2521
    %3012 = vmatpush2.bf16.msra.mxu0 %v2520
    %3013 = vmatprep.subr.bf16.mxu0 %v2513
    %3014 = vmatpush2.bf16.msra.mxu0 %v2512
    %3015 = vmatprep.subr.bf16.mxu0 %v2505
    %3016 = vmatpush2.bf16.msra.mxu0 %v2504
    %3017 = vmatprep.subr.bf16.mxu0 %v2497
    %3018 = vmatpush2.bf16.msra.mxu0 %v2496
    %3019 = vmatprep.subr.bf16.mxu0 %v2489
    %3020 = vmatpush2.bf16.msra.mxu0 %v2488
    %3021 = vmatprep.subr.bf16.mxu0 %v2481
    %3022 = vmatpush2.bf16.msra.mxu0 %v2480
    %3023 = vmatprep.subr.bf16.mxu0 %v2473
    %3024 = vmatpush2.bf16.msra.mxu0 %v2472
    %3025 = vmatprep.mubr.bf16.mxu0 %v1466
    %3026 = vmatmul.mubr.bf16.gmra.mxu0 %v1465
    %v3027 = vpop.f32.mrf.mxu0
    %v3028 = vadd.f32 %v2987, %v3027
    %v3029 = vpop.f32.mrf.mxu0
    %v3030 = vadd.f32 %v2989, %v3029
    %v3031 = vpop.f32.mrf.mxu0
    %v3032 = vpop.f32.mrf.mxu0
    %3033 = vdwg.mxu0
    %3034 = vmatprep.subr.bf16.mxu0 %v2339
    %3035 = vmatpush1.bf16.msra.mxu0 %v2338
    %3036 = vmatprep.subr.bf16.mxu0 %v2331
    %3037 = vmatpush1.bf16.msra.mxu0 %v2330
    %3038 = vmatprep.subr.bf16.mxu0 %v2323
    %3039 = vmatpush1.bf16.msra.mxu0 %v2322
    %3040 = vmatprep.subr.bf16.mxu0 %v2315
    %3041 = vmatpush1.bf16.msra.mxu0 %v2314
    %3042 = vmatprep.subr.bf16.mxu0 %v2307
    %3043 = vmatpush1.bf16.msra.mxu0 %v2306
    %3044 = vmatprep.subr.bf16.mxu0 %v2299
    %3045 = vmatpush1.bf16.msra.mxu0 %v2298
    %3046 = vmatprep.subr.bf16.mxu0 %v2291
    %3047 = vmatpush1.bf16.msra.mxu0 %v2290
    %3048 = vmatprep.subr.bf16.mxu0 %v2283
    %3049 = vmatpush1.bf16.msra.mxu0 %v2282
    %3050 = vmatprep.subr.bf16.mxu0 %v2403
    %3051 = vmatpush2.bf16.msra.mxu0 %v2402
    %3052 = vmatprep.subr.bf16.mxu0 %v2395
    %3053 = vmatpush2.bf16.msra.mxu0 %v2394
    %3054 = vmatprep.subr.bf16.mxu0 %v2387
    %3055 = vmatpush2.bf16.msra.mxu0 %v2386
    %3056 = vmatprep.subr.bf16.mxu0 %v2379
    %3057 = vmatpush2.bf16.msra.mxu0 %v2378
    %3058 = vmatprep.subr.bf16.mxu0 %v2371
    %3059 = vmatpush2.bf16.msra.mxu0 %v2370
    %3060 = vmatprep.subr.bf16.mxu0 %v2363
    %3061 = vmatpush2.bf16.msra.mxu0 %v2362
    %3062 = vmatprep.subr.bf16.mxu0 %v2355
    %3063 = vmatpush2.bf16.msra.mxu0 %v2354
    %3064 = vmatprep.subr.bf16.mxu0 %v2347
    %3065 = vmatpush2.bf16.msra.mxu0 %v2346
    %3066 = vmatprep.mubr.bf16.mxu0 %v1464
    %3067 = vmatmul.mubr.bf16.gmra.mxu0 %v1463
    %v3068 = vpop.f32.mrf.mxu0
    %v3069 = vadd.f32 %v1495, %v3068
    %v3070 = vpop.f32.mrf.mxu0
    %v3071 = vadd.f32 %v1499, %v3070
    %v3072 = vpop.f32.mrf.mxu0
    %v3073 = vpop.f32.mrf.mxu0
    %3074 = vdwg.mxu0
    %3075 = vmatprep.subr.bf16.mxu0 %v2467
    %3076 = vmatpush1.bf16.msra.mxu0 %v2466
    %3077 = vmatprep.subr.bf16.mxu0 %v2459
    %3078 = vmatpush1.bf16.msra.mxu0 %v2458
    %3079 = vmatprep.subr.bf16.mxu0 %v2451
    %3080 = vmatpush1.bf16.msra.mxu0 %v2450
    %3081 = vmatprep.subr.bf16.mxu0 %v2443
    %3082 = vmatpush1.bf16.msra.mxu0 %v2442
    %3083 = vmatprep.subr.bf16.mxu0 %v2435
    %3084 = vmatpush1.bf16.msra.mxu0 %v2434
    %3085 = vmatprep.subr.bf16.mxu0 %v2427
    %3086 = vmatpush1.bf16.msra.mxu0 %v2426
    %3087 = vmatprep.subr.bf16.mxu0 %v2419
    %3088 = vmatpush1.bf16.msra.mxu0 %v2418
    %3089 = vmatprep.subr.bf16.mxu0 %v2411
    %3090 = vmatpush1.bf16.msra.mxu0 %v2410
    %3091 = vmatprep.subr.bf16.mxu0 %v2531
    %3092 = vmatpush2.bf16.msra.mxu0 %v2530
    %3093 = vmatprep.subr.bf16.mxu0 %v2523
    %3094 = vmatpush2.bf16.msra.mxu0 %v2522
    %3095 = vmatprep.subr.bf16.mxu0 %v2515
    %3096 = vmatpush2.bf16.msra.mxu0 %v2514
    %3097 = vmatprep.subr.bf16.mxu0 %v2507
    %3098 = vmatpush2.bf16.msra.mxu0 %v2506
    %3099 = vmatprep.subr.bf16.mxu0 %v2499
    %3100 = vmatpush2.bf16.msra.mxu0 %v2498
    %3101 = vmatprep.subr.bf16.mxu0 %v2491
    %3102 = vmatpush2.bf16.msra.mxu0 %v2490
    %3103 = vmatprep.subr.bf16.mxu0 %v2483
    %3104 = vmatpush2.bf16.msra.mxu0 %v2482
    %3105 = vmatprep.subr.bf16.mxu0 %v2475
    %3106 = vmatpush2.bf16.msra.mxu0 %v2474
    %3107 = vmatprep.mubr.bf16.mxu0 %v1466
    %3108 = vmatmul.mubr.bf16.gmra.mxu0 %v1465
    %v3109 = vpop.f32.mrf.mxu0
    %v3110 = vadd.f32 %v3069, %v3109
    %v3111 = vpop.f32.mrf.mxu0
    %v3112 = vadd.f32 %v3071, %v3111
    %v3113 = vpop.f32.mrf.mxu0
    %v3114 = vpop.f32.mrf.mxu0
    %3115 = vdwg.mxu0
    %v3116 = vrot.slane %v2864, 4
    %v3117 = vadd.f32 %v2864, %v3116
    %v3118 = vrot.slane %v3117, 2
    %v3119 = vadd.f32 %v3117, %v3118
    %v3120 = vrot.slane %v3119, 1
    %v3121 = vadd.f32 %v3119, %v3120
    %v3122 = vrot.slane %v2866, 4
    %v3123 = vadd.f32 %v2866, %v3122
    %v3124 = vrot.slane %v3123, 2
    %v3125 = vadd.f32 %v3123, %v3124
    %v3126 = vrot.slane %v3125, 1
    %v3127 = vadd.f32 %v3125, %v3126
    %v3128 = vrot.slane %v2946, 4
    %v3129 = vadd.f32 %v2946, %v3128
    %v3130 = vrot.slane %v3129, 2
    %v3131 = vadd.f32 %v3129, %v3130
    %v3132 = vrot.slane %v3131, 1
    %v3133 = vadd.f32 %v3131, %v3132
    %v3134 = vrot.slane %v2948, 4
    %v3135 = vadd.f32 %v2948, %v3134
    %v3136 = vrot.slane %v3135, 2
    %v3137 = vadd.f32 %v3135, %v3136
    %v3138 = vrot.slane %v3137, 1
    %v3139 = vadd.f32 %v3137, %v3138
    %v3140 = vrot.slane %v3028, 4
    %v3141 = vadd.f32 %v3028, %v3140
    %v3142 = vrot.slane %v3141, 2
    %v3143 = vadd.f32 %v3141, %v3142
    %v3144 = vrot.slane %v3143, 1
    %v3145 = vadd.f32 %v3143, %v3144
    %v3146 = vrot.slane %v3030, 4
    %v3147 = vadd.f32 %v3030, %v3146
    %v3148 = vrot.slane %v3147, 2
    %v3149 = vadd.f32 %v3147, %v3148
    %v3150 = vrot.slane %v3149, 1
    %v3151 = vadd.f32 %v3149, %v3150
    %v3152 = vrot.slane %v3110, 4
    %v3153 = vadd.f32 %v3110, %v3152
    %v3154 = vrot.slane %v3153, 2
    %v3155 = vadd.f32 %v3153, %v3154
    %v3156 = vrot.slane %v3155, 1
    %v3157 = vadd.f32 %v3155, %v3156
    %v3158 = vrot.slane %v3112, 4
    %v3159 = vadd.f32 %v3112, %v3158
    %v3160 = vrot.slane %v3159, 2
    %v3161 = vadd.f32 %v3159, %v3160
    %v3162 = vrot.slane %v3161, 1
    %v3163 = vadd.f32 %v3161, %v3162
    %v3164 = vmul.f32 %v3121, %v523
    %v3165 = vmul.f32 %v3127, %v523
    %v3166 = vmul.f32 %v3133, %v523
    %v3167 = vmul.f32 %v3139, %v523
    %v3168 = vmul.f32 %v3145, %v523
    %v3169 = vmul.f32 %v3151, %v523
    %v3170 = vmul.f32 %v3157, %v523
    %v3171 = vmul.f32 %v3163, %v523
    %v3172 = vsub.f32 %v2864, %v3164
    %v3173 = vsub.f32 %v2866, %v3165
    %v3174 = vsub.f32 %v2946, %v3166
    %v3175 = vsub.f32 %v2948, %v3167
    %v3176 = vsub.f32 %v3028, %v3168
    %v3177 = vsub.f32 %v3030, %v3169
    %v3178 = vsub.f32 %v3110, %v3170
    %v3179 = vsub.f32 %v3112, %v3171
    %v3180 = vmul.f32 %v3172, %v3172
    %v3181 = vmul.f32 %v3173, %v3173
    %v3182 = vmul.f32 %v3174, %v3174
    %v3183 = vmul.f32 %v3175, %v3175
    %v3184 = vmul.f32 %v3176, %v3176
    %v3185 = vmul.f32 %v3177, %v3177
    %v3186 = vmul.f32 %v3178, %v3178
    %v3187 = vmul.f32 %v3179, %v3179
    %v3188 = vrot.slane %v3180, 4
    %v3189 = vadd.f32 %v3180, %v3188
    %v3190 = vrot.slane %v3189, 2
    %v3191 = vadd.f32 %v3189, %v3190
    %v3192 = vrot.slane %v3191, 1
    %v3193 = vadd.f32 %v3191, %v3192
    %v3194 = vrot.slane %v3181, 4
    %v3195 = vadd.f32 %v3181, %v3194
    %v3196 = vrot.slane %v3195, 2
    %v3197 = vadd.f32 %v3195, %v3196
    %v3198 = vrot.slane %v3197, 1
    %v3199 = vadd.f32 %v3197, %v3198
    %v3200 = vrot.slane %v3182, 4
    %v3201 = vadd.f32 %v3182, %v3200
    %v3202 = vrot.slane %v3201, 2
    %v3203 = vadd.f32 %v3201, %v3202
    %v3204 = vrot.slane %v3203, 1
    %v3205 = vadd.f32 %v3203, %v3204
    %v3206 = vrot.slane %v3183, 4
    %v3207 = vadd.f32 %v3183, %v3206
    %v3208 = vrot.slane %v3207, 2
    %v3209 = vadd.f32 %v3207, %v3208
    %v3210 = vrot.slane %v3209, 1
    %v3211 = vadd.f32 %v3209, %v3210
    %v3212 = vrot.slane %v3184, 4
    %v3213 = vadd.f32 %v3184, %v3212
    %v3214 = vrot.slane %v3213, 2
    %v3215 = vadd.f32 %v3213, %v3214
    %v3216 = vrot.slane %v3215, 1
    %v3217 = vadd.f32 %v3215, %v3216
    %v3218 = vrot.slane %v3185, 4
    %v3219 = vadd.f32 %v3185, %v3218
    %v3220 = vrot.slane %v3219, 2
    %v3221 = vadd.f32 %v3219, %v3220
    %v3222 = vrot.slane %v3221, 1
    %v3223 = vadd.f32 %v3221, %v3222
    %v3224 = vrot.slane %v3186, 4
    %v3225 = vadd.f32 %v3186, %v3224
    %v3226 = vrot.slane %v3225, 2
    %v3227 = vadd.f32 %v3225, %v3226
    %v3228 = vrot.slane %v3227, 1
    %v3229 = vadd.f32 %v3227, %v3228
    %v3230 = vrot.slane %v3187, 4
    %v3231 = vadd.f32 %v3187, %v3230
    %v3232 = vrot.slane %v3231, 2
    %v3233 = vadd.f32 %v3231, %v3232
    %v3234 = vrot.slane %v3233, 1
    %v3235 = vadd.f32 %v3233, %v3234
    %v3236 = vmul.f32 %v3193, %v523
    %v3237 = vmul.f32 %v3199, %v523
    %v3238 = vmul.f32 %v3205, %v523
    %v3239 = vmul.f32 %v3211, %v523
    %v3240 = vmul.f32 %v3217, %v523
    %v3241 = vmul.f32 %v3223, %v523
    %v3242 = vmul.f32 %v3229, %v523
    %v3243 = vmul.f32 %v3235, %v523
    %v3244 = vadd.f32 %v3236, 0.8
    %v3245 = vadd.f32 %v3237, 0.8
    %v3246 = vadd.f32 %v3238, 0.8
    %v3247 = vadd.f32 %v3239, 0.8
    %v3248 = vadd.f32 %v3240, 0.8
    %v3249 = vadd.f32 %v3241, 0.8
    %v3250 = vadd.f32 %v3242, 0.8
    %v3251 = vadd.f32 %v3243, 0.8
    %v3252 = vrsqrt.pop %v3244
    %v3253 = vrsqrt.pop %v3245
    %v3254 = vrsqrt.pop %v3246
    %v3255 = vrsqrt.pop %v3247
    %v3256 = vrsqrt.pop %v3248
    %v3257 = vrsqrt.pop %v3249
    %v3258 = vrsqrt.pop %v3250
    %v3259 = vrsqrt.pop %v3251
    %v3260 = vmul.f32 %v3172, %v3252
    %v3261 = vmul.f32 %v3173, %v3253
    %v3262 = vmul.f32 %v3174, %v3254
    %v3263 = vmul.f32 %v3175, %v3255
    %v3264 = vmul.f32 %v3176, %v3256
    %v3265 = vmul.f32 %v3177, %v3257
    %v3266 = vmul.f32 %v3178, %v3258
    %v3267 = vmul.f32 %v3179, %v3259
    %v3269 = vlaneseq
    %v3270 = vshrl.u32 %v3269, 7
    %v3271 = vsub.s32 0, %v3270
    %v3272 = vrot.slane %v138, %v3271
    %v3273 = vlaneseq
    %v3274 = vshrl.u32 %v3273, 7
    %v3275 = vsub.s32 1, %v3274
    %v3276 = vrot.slane %v138, %v3275
    %v3277 = vlaneseq
    %v3278 = vshrl.u32 %v3277, 7
    %v3279 = vsub.s32 2, %v3278
    %v3280 = vrot.slane %v138, %v3279
    %v3281 = vlaneseq
    %v3282 = vshrl.u32 %v3281, 7
    %v3283 = vsub.s32 3, %v3282
    %v3284 = vrot.slane %v138, %v3283
    %v3285 = vlaneseq
    %v3286 = vshrl.u32 %v3285, 7
    %v3287 = vsub.s32 4, %v3286
    %v3288 = vrot.slane %v138, %v3287
    %v3289 = vlaneseq
    %v3290 = vshrl.u32 %v3289, 7
    %v3291 = vsub.s32 5, %v3290
    %v3292 = vrot.slane %v138, %v3291
    %v3293 = vlaneseq
    %v3294 = vshrl.u32 %v3293, 7
    %v3295 = vsub.s32 6, %v3294
    %v3296 = vrot.slane %v138, %v3295
    %v3297 = vlaneseq
    %v3298 = vshrl.u32 %v3297, 7
    %v3299 = vsub.s32 7, %v3298
    %v3300 = vrot.slane %v138, %v3299
    %v3309 = vmul.f32 %v3260, %v3272
    %v3310 = vmul.f32 %v3261, %v3276
    %v3311 = vmul.f32 %v3262, %v3280
    %v3312 = vmul.f32 %v3263, %v3284
    %v3313 = vmul.f32 %v3264, %v3288
    %v3314 = vmul.f32 %v3265, %v3292
    %v3315 = vmul.f32 %v3266, %v3296
    %v3316 = vmul.f32 %v3267, %v3300
    %v3318 = vlaneseq
    %v3319 = vshrl.u32 %v3318, 7
    %v3320 = vsub.s32 0, %v3319
    %v3321 = vrot.slane %v139, %v3320
    %v3322 = vlaneseq
    %v3323 = vshrl.u32 %v3322, 7
    %v3324 = vsub.s32 1, %v3323
    %v3325 = vrot.slane %v139, %v3324
    %v3326 = vlaneseq
    %v3327 = vshrl.u32 %v3326, 7
    %v3328 = vsub.s32 2, %v3327
    %v3329 = vrot.slane %v139, %v3328
    %v3330 = vlaneseq
    %v3331 = vshrl.u32 %v3330, 7
    %v3332 = vsub.s32 3, %v3331
    %v3333 = vrot.slane %v139, %v3332
    %v3334 = vlaneseq
    %v3335 = vshrl.u32 %v3334, 7
    %v3336 = vsub.s32 4, %v3335
    %v3337 = vrot.slane %v139, %v3336
    %v3338 = vlaneseq
    %v3339 = vshrl.u32 %v3338, 7
    %v3340 = vsub.s32 5, %v3339
    %v3341 = vrot.slane %v139, %v3340
    %v3342 = vlaneseq
    %v3343 = vshrl.u32 %v3342, 7
    %v3344 = vsub.s32 6, %v3343
    %v3345 = vrot.slane %v139, %v3344
    %v3346 = vlaneseq
    %v3347 = vshrl.u32 %v3346, 7
    %v3348 = vsub.s32 7, %v3347
    %v3349 = vrot.slane %v139, %v3348
    %v3358 = vadd.f32 %v3309, %v3321
    %v3359 = vadd.f32 %v3310, %v3325
    %v3360 = vadd.f32 %v3311, %v3329
    %v3361 = vadd.f32 %v3312, %v3333
    %v3362 = vadd.f32 %v3313, %v3337
    %v3363 = vadd.f32 %v3314, %v3341
    %v3364 = vadd.f32 %v3315, %v3345
    %v3365 = vadd.f32 %v3316, %v3349
    %v3366 = vmul.f32 %v3358, 0.2
    %v3367 = vmul.f32 %v3359, 0.2
    %v3368 = vmul.f32 %v3360, 0.2
    %v3369 = vmul.f32 %v3361, 0.2
    %v3370 = vmul.f32 %v3362, 0.2
    %v3371 = vmul.f32 %v3363, 0.2
    %v3372 = vmul.f32 %v3364, 0.2
    %v3373 = vmul.f32 %v3365, 0.2
    %v3374 = vmax.f32 %v3358, %v3366
    %v3375 = vmax.f32 %v3359, %v3367
    %v3376 = vmax.f32 %v3360, %v3368
    %v3377 = vmax.f32 %v3361, %v3369
    %v3378 = vmax.f32 %v3362, %v3370
    %v3379 = vmax.f32 %v3363, %v3371
    %v3380 = vmax.f32 %v3364, %v3372
    %v3381 = vmax.f32 %v3365, %v3373
    %s3382 = smul.u32 4, 128
    %s3383 = smul.u32 %s3382, 6
    %s3384 = sshll.u32 %s3383, 4
    %3385 = dma.done %s118, %s3384
    %v3386 = vld [vmem:[#allocation3] sm:$0xff]
    %v3387 = vld [vmem:[#allocation3 + $0x8] sm:$0xff]
    %v3388 = vld [vmem:[#allocation3 + $0x10] sm:$0xff]
    %v3389 = vld [vmem:[#allocation3 + $0x18] sm:$0xff]
    %v3390 = vld [vmem:[#allocation3 + $0x20] sm:$0xff]
    %v3391 = vld [vmem:[#allocation3 + $0x28] sm:$0xff]
    %v3392 = vld [vmem:[#allocation3 + $0x30] sm:$0xff]
    %v3393 = vld [vmem:[#allocation3 + $0x38] sm:$0xff]
    %v3394 = vld [vmem:[#allocation3 + $0x40] sm:$0xff]
    %v3395 = vld [vmem:[#allocation3 + $0x48] sm:$0xff]
    %v3396 = vld [vmem:[#allocation3 + $0x50] sm:$0xff]
    %v3397 = vld [vmem:[#allocation3 + $0x58] sm:$0xff]
    %v3398 = vld [vmem:[#allocation3 + $0x60] sm:$0xff]
    %v3399 = vld [vmem:[#allocation3 + $0x68] sm:$0xff]
    %v3400 = vld [vmem:[#allocation3 + $0x70] sm:$0xff]
    %v3401 = vld [vmem:[#allocation3 + $0x78] sm:$0xff]
    %v3402 = vld [vmem:[#allocation3 + $0x80] sm:$0xff]
    %v3403 = vld [vmem:[#allocation3 + $0x88] sm:$0xff]
    %v3404 = vld [vmem:[#allocation3 + $0x90] sm:$0xff]
    %v3405 = vld [vmem:[#allocation3 + $0x98] sm:$0xff]
    %v3406 = vld [vmem:[#allocation3 + $0xa0] sm:$0xff]
    %v3407 = vld [vmem:[#allocation3 + $0xa8] sm:$0xff]
    %v3408 = vld [vmem:[#allocation3 + $0xb0] sm:$0xff]
    %v3409 = vld [vmem:[#allocation3 + $0xb8] sm:$0xff]
    %v3410 = vld [vmem:[#allocation3 + $0xc0] sm:$0xff]
    %v3411 = vld [vmem:[#allocation3 + $0xc8] sm:$0xff]
    %v3412 = vld [vmem:[#allocation3 + $0xd0] sm:$0xff]
    %v3413 = vld [vmem:[#allocation3 + $0xd8] sm:$0xff]
    %v3414 = vld [vmem:[#allocation3 + $0xe0] sm:$0xff]
    %v3415 = vld [vmem:[#allocation3 + $0xe8] sm:$0xff]
    %v3416 = vld [vmem:[#allocation3 + $0xf0] sm:$0xff]
    %v3417 = vld [vmem:[#allocation3 + $0xf8] sm:$0xff]
    %v3418 = vld [vmem:[#allocation3 + $0x100] sm:$0xff]
    %v3419 = vld [vmem:[#allocation3 + $0x108] sm:$0xff]
    %v3420 = vld [vmem:[#allocation3 + $0x110] sm:$0xff]
    %v3421 = vld [vmem:[#allocation3 + $0x118] sm:$0xff]
    %v3422 = vld [vmem:[#allocation3 + $0x120] sm:$0xff]
    %v3423 = vld [vmem:[#allocation3 + $0x128] sm:$0xff]
    %v3424 = vld [vmem:[#allocation3 + $0x130] sm:$0xff]
    %v3425 = vld [vmem:[#allocation3 + $0x138] sm:$0xff]
    %v3426 = vld [vmem:[#allocation3 + $0x140] sm:$0xff]
    %v3427 = vld [vmem:[#allocation3 + $0x148] sm:$0xff]
    %v3428 = vld [vmem:[#allocation3 + $0x150] sm:$0xff]
    %v3429 = vld [vmem:[#allocation3 + $0x158] sm:$0xff]
    %v3430 = vld [vmem:[#allocation3 + $0x160] sm:$0xff]
    %v3431 = vld [vmem:[#allocation3 + $0x168] sm:$0xff]
    %v3432 = vld [vmem:[#allocation3 + $0x170] sm:$0xff]
    %v3433 = vld [vmem:[#allocation3 + $0x178] sm:$0xff]
    %v3434 = vld [vmem:[#allocation3 + $0x180] sm:$0xff]
    %v3435 = vld [vmem:[#allocation3 + $0x188] sm:$0xff]
    %v3436 = vld [vmem:[#allocation3 + $0x190] sm:$0xff]
    %v3437 = vld [vmem:[#allocation3 + $0x198] sm:$0xff]
    %v3438 = vld [vmem:[#allocation3 + $0x1a0] sm:$0xff]
    %v3439 = vld [vmem:[#allocation3 + $0x1a8] sm:$0xff]
    %v3440 = vld [vmem:[#allocation3 + $0x1b0] sm:$0xff]
    %v3441 = vld [vmem:[#allocation3 + $0x1b8] sm:$0xff]
    %v3442 = vld [vmem:[#allocation3 + $0x1c0] sm:$0xff]
    %v3443 = vld [vmem:[#allocation3 + $0x1c8] sm:$0xff]
    %v3444 = vld [vmem:[#allocation3 + $0x1d0] sm:$0xff]
    %v3445 = vld [vmem:[#allocation3 + $0x1d8] sm:$0xff]
    %v3446 = vld [vmem:[#allocation3 + $0x1e0] sm:$0xff]
    %v3447 = vld [vmem:[#allocation3 + $0x1e8] sm:$0xff]
    %v3448 = vld [vmem:[#allocation3 + $0x1f0] sm:$0xff]
    %v3449 = vld [vmem:[#allocation3 + $0x1f8] sm:$0xff]
    %v3450 = vld [vmem:[#allocation3 + $0x200] sm:$0xff]
    %v3451 = vld [vmem:[#allocation3 + $0x208] sm:$0xff]
    %v3452 = vld [vmem:[#allocation3 + $0x210] sm:$0xff]
    %v3453 = vld [vmem:[#allocation3 + $0x218] sm:$0xff]
    %v3454 = vld [vmem:[#allocation3 + $0x220] sm:$0xff]
    %v3455 = vld [vmem:[#allocation3 + $0x228] sm:$0xff]
    %v3456 = vld [vmem:[#allocation3 + $0x230] sm:$0xff]
    %v3457 = vld [vmem:[#allocation3 + $0x238] sm:$0xff]
    %v3458 = vld [vmem:[#allocation3 + $0x240] sm:$0xff]
    %v3459 = vld [vmem:[#allocation3 + $0x248] sm:$0xff]
    %v3460 = vld [vmem:[#allocation3 + $0x250] sm:$0xff]
    %v3461 = vld [vmem:[#allocation3 + $0x258] sm:$0xff]
    %v3462 = vld [vmem:[#allocation3 + $0x260] sm:$0xff]
    %v3463 = vld [vmem:[#allocation3 + $0x268] sm:$0xff]
    %v3464 = vld [vmem:[#allocation3 + $0x270] sm:$0xff]
    %v3465 = vld [vmem:[#allocation3 + $0x278] sm:$0xff]
    %v3466 = vld [vmem:[#allocation3 + $0x280] sm:$0xff]
    %v3467 = vld [vmem:[#allocation3 + $0x288] sm:$0xff]
    %v3468 = vld [vmem:[#allocation3 + $0x290] sm:$0xff]
    %v3469 = vld [vmem:[#allocation3 + $0x298] sm:$0xff]
    %v3470 = vld [vmem:[#allocation3 + $0x2a0] sm:$0xff]
    %v3471 = vld [vmem:[#allocation3 + $0x2a8] sm:$0xff]
    %v3472 = vld [vmem:[#allocation3 + $0x2b0] sm:$0xff]
    %v3473 = vld [vmem:[#allocation3 + $0x2b8] sm:$0xff]
    %v3474 = vld [vmem:[#allocation3 + $0x2c0] sm:$0xff]
    %v3475 = vld [vmem:[#allocation3 + $0x2c8] sm:$0xff]
    %v3476 = vld [vmem:[#allocation3 + $0x2d0] sm:$0xff]
    %v3477 = vld [vmem:[#allocation3 + $0x2d8] sm:$0xff]
    %v3478 = vld [vmem:[#allocation3 + $0x2e0] sm:$0xff]
    %v3479 = vld [vmem:[#allocation3 + $0x2e8] sm:$0xff]
    %v3480 = vld [vmem:[#allocation3 + $0x2f0] sm:$0xff]
    %v3481 = vld [vmem:[#allocation3 + $0x2f8] sm:$0xff]
    %v3482 = vld [vmem:[#allocation3 + $0x300] sm:$0xff]
    %v3483 = vld [vmem:[#allocation3 + $0x308] sm:$0xff]
    %v3484 = vld [vmem:[#allocation3 + $0x310] sm:$0xff]
    %v3485 = vld [vmem:[#allocation3 + $0x318] sm:$0xff]
    %v3486 = vld [vmem:[#allocation3 + $0x320] sm:$0xff]
    %v3487 = vld [vmem:[#allocation3 + $0x328] sm:$0xff]
    %v3488 = vld [vmem:[#allocation3 + $0x330] sm:$0xff]
    %v3489 = vld [vmem:[#allocation3 + $0x338] sm:$0xff]
    %v3490 = vld [vmem:[#allocation3 + $0x340] sm:$0xff]
    %v3491 = vld [vmem:[#allocation3 + $0x348] sm:$0xff]
    %v3492 = vld [vmem:[#allocation3 + $0x350] sm:$0xff]
    %v3493 = vld [vmem:[#allocation3 + $0x358] sm:$0xff]
    %v3494 = vld [vmem:[#allocation3 + $0x360] sm:$0xff]
    %v3495 = vld [vmem:[#allocation3 + $0x368] sm:$0xff]
    %v3496 = vld [vmem:[#allocation3 + $0x370] sm:$0xff]
    %v3497 = vld [vmem:[#allocation3 + $0x378] sm:$0xff]
    %v3498 = vld [vmem:[#allocation3 + $0x380] sm:$0xff]
    %v3499 = vld [vmem:[#allocation3 + $0x388] sm:$0xff]
    %v3500 = vld [vmem:[#allocation3 + $0x390] sm:$0xff]
    %v3501 = vld [vmem:[#allocation3 + $0x398] sm:$0xff]
    %v3502 = vld [vmem:[#allocation3 + $0x3a0] sm:$0xff]
    %v3503 = vld [vmem:[#allocation3 + $0x3a8] sm:$0xff]
    %v3504 = vld [vmem:[#allocation3 + $0x3b0] sm:$0xff]
    %v3505 = vld [vmem:[#allocation3 + $0x3b8] sm:$0xff]
    %v3506 = vld [vmem:[#allocation3 + $0x3c0] sm:$0xff]
    %v3507 = vld [vmem:[#allocation3 + $0x3c8] sm:$0xff]
    %v3508 = vld [vmem:[#allocation3 + $0x3d0] sm:$0xff]
    %v3509 = vld [vmem:[#allocation3 + $0x3d8] sm:$0xff]
    %v3510 = vld [vmem:[#allocation3 + $0x3e0] sm:$0xff]
    %v3511 = vld [vmem:[#allocation3 + $0x3e8] sm:$0xff]
    %v3512 = vld [vmem:[#allocation3 + $0x3f0] sm:$0xff]
    %v3513 = vld [vmem:[#allocation3 + $0x3f8] sm:$0xff]
    %v3514 = vld [vmem:[#allocation3 + $0x400] sm:$0xff]
    %v3515 = vld [vmem:[#allocation3 + $0x408] sm:$0xff]
    %v3516 = vld [vmem:[#allocation3 + $0x410] sm:$0xff]
    %v3517 = vld [vmem:[#allocation3 + $0x418] sm:$0xff]
    %v3518 = vld [vmem:[#allocation3 + $0x420] sm:$0xff]
    %v3519 = vld [vmem:[#allocation3 + $0x428] sm:$0xff]
    %v3520 = vld [vmem:[#allocation3 + $0x430] sm:$0xff]
    %v3521 = vld [vmem:[#allocation3 + $0x438] sm:$0xff]
    %v3522 = vld [vmem:[#allocation3 + $0x440] sm:$0xff]
    %v3523 = vld [vmem:[#allocation3 + $0x448] sm:$0xff]
    %v3524 = vld [vmem:[#allocation3 + $0x450] sm:$0xff]
    %v3525 = vld [vmem:[#allocation3 + $0x458] sm:$0xff]
    %v3526 = vld [vmem:[#allocation3 + $0x460] sm:$0xff]
    %v3527 = vld [vmem:[#allocation3 + $0x468] sm:$0xff]
    %v3528 = vld [vmem:[#allocation3 + $0x470] sm:$0xff]
    %v3529 = vld [vmem:[#allocation3 + $0x478] sm:$0xff]
    %v3530 = vld [vmem:[#allocation3 + $0x480] sm:$0xff]
    %v3531 = vld [vmem:[#allocation3 + $0x488] sm:$0xff]
    %v3532 = vld [vmem:[#allocation3 + $0x490] sm:$0xff]
    %v3533 = vld [vmem:[#allocation3 + $0x498] sm:$0xff]
    %v3534 = vld [vmem:[#allocation3 + $0x4a0] sm:$0xff]
    %v3535 = vld [vmem:[#allocation3 + $0x4a8] sm:$0xff]
    %v3536 = vld [vmem:[#allocation3 + $0x4b0] sm:$0xff]
    %v3537 = vld [vmem:[#allocation3 + $0x4b8] sm:$0xff]
    %v3538 = vld [vmem:[#allocation3 + $0x4c0] sm:$0xff]
    %v3539 = vld [vmem:[#allocation3 + $0x4c8] sm:$0xff]
    %v3540 = vld [vmem:[#allocation3 + $0x4d0] sm:$0xff]
    %v3541 = vld [vmem:[#allocation3 + $0x4d8] sm:$0xff]
    %v3542 = vld [vmem:[#allocation3 + $0x4e0] sm:$0xff]
    %v3543 = vld [vmem:[#allocation3 + $0x4e8] sm:$0xff]
    %v3544 = vld [vmem:[#allocation3 + $0x4f0] sm:$0xff]
    %v3545 = vld [vmem:[#allocation3 + $0x4f8] sm:$0xff]
    %v3546 = vld [vmem:[#allocation3 + $0x500] sm:$0xff]
    %v3547 = vld [vmem:[#allocation3 + $0x508] sm:$0xff]
    %v3548 = vld [vmem:[#allocation3 + $0x510] sm:$0xff]
    %v3549 = vld [vmem:[#allocation3 + $0x518] sm:$0xff]
    %v3550 = vld [vmem:[#allocation3 + $0x520] sm:$0xff]
    %v3551 = vld [vmem:[#allocation3 + $0x528] sm:$0xff]
    %v3552 = vld [vmem:[#allocation3 + $0x530] sm:$0xff]
    %v3553 = vld [vmem:[#allocation3 + $0x538] sm:$0xff]
    %v3554 = vld [vmem:[#allocation3 + $0x540] sm:$0xff]
    %v3555 = vld [vmem:[#allocation3 + $0x548] sm:$0xff]
    %v3556 = vld [vmem:[#allocation3 + $0x550] sm:$0xff]
    %v3557 = vld [vmem:[#allocation3 + $0x558] sm:$0xff]
    %v3558 = vld [vmem:[#allocation3 + $0x560] sm:$0xff]
    %v3559 = vld [vmem:[#allocation3 + $0x568] sm:$0xff]
    %v3560 = vld [vmem:[#allocation3 + $0x570] sm:$0xff]
    %v3561 = vld [vmem:[#allocation3 + $0x578] sm:$0xff]
    %v3562 = vld [vmem:[#allocation3 + $0x580] sm:$0xff]
    %v3563 = vld [vmem:[#allocation3 + $0x588] sm:$0xff]
    %v3564 = vld [vmem:[#allocation3 + $0x590] sm:$0xff]
    %v3565 = vld [vmem:[#allocation3 + $0x598] sm:$0xff]
    %v3566 = vld [vmem:[#allocation3 + $0x5a0] sm:$0xff]
    %v3567 = vld [vmem:[#allocation3 + $0x5a8] sm:$0xff]
    %v3568 = vld [vmem:[#allocation3 + $0x5b0] sm:$0xff]
    %v3569 = vld [vmem:[#allocation3 + $0x5b8] sm:$0xff]
    %v3570 = vld [vmem:[#allocation3 + $0x5c0] sm:$0xff]
    %v3571 = vld [vmem:[#allocation3 + $0x5c8] sm:$0xff]
    %v3572 = vld [vmem:[#allocation3 + $0x5d0] sm:$0xff]
    %v3573 = vld [vmem:[#allocation3 + $0x5d8] sm:$0xff]
    %v3574 = vld [vmem:[#allocation3 + $0x5e0] sm:$0xff]
    %v3575 = vld [vmem:[#allocation3 + $0x5e8] sm:$0xff]
    %v3576 = vld [vmem:[#allocation3 + $0x5f0] sm:$0xff]
    %v3577 = vld [vmem:[#allocation3 + $0x5f8] sm:$0xff]
    %v3578 = vld [vmem:[#allocation3 + $0x600] sm:$0xff]
    %v3579 = vld [vmem:[#allocation3 + $0x608] sm:$0xff]
    %v3580 = vld [vmem:[#allocation3 + $0x610] sm:$0xff]
    %v3581 = vld [vmem:[#allocation3 + $0x618] sm:$0xff]
    %v3582 = vld [vmem:[#allocation3 + $0x620] sm:$0xff]
    %v3583 = vld [vmem:[#allocation3 + $0x628] sm:$0xff]
    %v3584 = vld [vmem:[#allocation3 + $0x630] sm:$0xff]
    %v3585 = vld [vmem:[#allocation3 + $0x638] sm:$0xff]
    %v3586 = vld [vmem:[#allocation3 + $0x640] sm:$0xff]
    %v3587 = vld [vmem:[#allocation3 + $0x648] sm:$0xff]
    %v3588 = vld [vmem:[#allocation3 + $0x650] sm:$0xff]
    %v3589 = vld [vmem:[#allocation3 + $0x658] sm:$0xff]
    %v3590 = vld [vmem:[#allocation3 + $0x660] sm:$0xff]
    %v3591 = vld [vmem:[#allocation3 + $0x668] sm:$0xff]
    %v3592 = vld [vmem:[#allocation3 + $0x670] sm:$0xff]
    %v3593 = vld [vmem:[#allocation3 + $0x678] sm:$0xff]
    %v3594 = vld [vmem:[#allocation3 + $0x680] sm:$0xff]
    %v3595 = vld [vmem:[#allocation3 + $0x688] sm:$0xff]
    %v3596 = vld [vmem:[#allocation3 + $0x690] sm:$0xff]
    %v3597 = vld [vmem:[#allocation3 + $0x698] sm:$0xff]
    %v3598 = vld [vmem:[#allocation3 + $0x6a0] sm:$0xff]
    %v3599 = vld [vmem:[#allocation3 + $0x6a8] sm:$0xff]
    %v3600 = vld [vmem:[#allocation3 + $0x6b0] sm:$0xff]
    %v3601 = vld [vmem:[#allocation3 + $0x6b8] sm:$0xff]
    %v3602 = vld [vmem:[#allocation3 + $0x6c0] sm:$0xff]
    %v3603 = vld [vmem:[#allocation3 + $0x6c8] sm:$0xff]
    %v3604 = vld [vmem:[#allocation3 + $0x6d0] sm:$0xff]
    %v3605 = vld [vmem:[#allocation3 + $0x6d8] sm:$0xff]
    %v3606 = vld [vmem:[#allocation3 + $0x6e0] sm:$0xff]
    %v3607 = vld [vmem:[#allocation3 + $0x6e8] sm:$0xff]
    %v3608 = vld [vmem:[#allocation3 + $0x6f0] sm:$0xff]
    %v3609 = vld [vmem:[#allocation3 + $0x6f8] sm:$0xff]
    %v3610 = vld [vmem:[#allocation3 + $0x700] sm:$0xff]
    %v3611 = vld [vmem:[#allocation3 + $0x708] sm:$0xff]
    %v3612 = vld [vmem:[#allocation3 + $0x710] sm:$0xff]
    %v3613 = vld [vmem:[#allocation3 + $0x718] sm:$0xff]
    %v3614 = vld [vmem:[#allocation3 + $0x720] sm:$0xff]
    %v3615 = vld [vmem:[#allocation3 + $0x728] sm:$0xff]
    %v3616 = vld [vmem:[#allocation3 + $0x730] sm:$0xff]
    %v3617 = vld [vmem:[#allocation3 + $0x738] sm:$0xff]
    %v3618 = vld [vmem:[#allocation3 + $0x740] sm:$0xff]
    %v3619 = vld [vmem:[#allocation3 + $0x748] sm:$0xff]
    %v3620 = vld [vmem:[#allocation3 + $0x750] sm:$0xff]
    %v3621 = vld [vmem:[#allocation3 + $0x758] sm:$0xff]
    %v3622 = vld [vmem:[#allocation3 + $0x760] sm:$0xff]
    %v3623 = vld [vmem:[#allocation3 + $0x768] sm:$0xff]
    %v3624 = vld [vmem:[#allocation3 + $0x770] sm:$0xff]
    %v3625 = vld [vmem:[#allocation3 + $0x778] sm:$0xff]
    %v3626 = vld [vmem:[#allocation3 + $0x780] sm:$0xff]
    %v3627 = vld [vmem:[#allocation3 + $0x788] sm:$0xff]
    %v3628 = vld [vmem:[#allocation3 + $0x790] sm:$0xff]
    %v3629 = vld [vmem:[#allocation3 + $0x798] sm:$0xff]
    %v3630 = vld [vmem:[#allocation3 + $0x7a0] sm:$0xff]
    %v3631 = vld [vmem:[#allocation3 + $0x7a8] sm:$0xff]
    %v3632 = vld [vmem:[#allocation3 + $0x7b0] sm:$0xff]
    %v3633 = vld [vmem:[#allocation3 + $0x7b8] sm:$0xff]
    %v3634 = vld [vmem:[#allocation3 + $0x7c0] sm:$0xff]
    %v3635 = vld [vmem:[#allocation3 + $0x7c8] sm:$0xff]
    %v3636 = vld [vmem:[#allocation3 + $0x7d0] sm:$0xff]
    %v3637 = vld [vmem:[#allocation3 + $0x7d8] sm:$0xff]
    %v3638 = vld [vmem:[#allocation3 + $0x7e0] sm:$0xff]
    %v3639 = vld [vmem:[#allocation3 + $0x7e8] sm:$0xff]
    %v3640 = vld [vmem:[#allocation3 + $0x7f0] sm:$0xff]
    %v3641 = vld [vmem:[#allocation3 + $0x7f8] sm:$0xff]
    %v3642 = vld [vmem:[#allocation3 + $0x800] sm:$0xff]
    %v3643 = vld [vmem:[#allocation3 + $0x808] sm:$0xff]
    %v3644 = vld [vmem:[#allocation3 + $0x810] sm:$0xff]
    %v3645 = vld [vmem:[#allocation3 + $0x818] sm:$0xff]
    %v3646 = vld [vmem:[#allocation3 + $0x820] sm:$0xff]
    %v3647 = vld [vmem:[#allocation3 + $0x828] sm:$0xff]
    %v3648 = vld [vmem:[#allocation3 + $0x830] sm:$0xff]
    %v3649 = vld [vmem:[#allocation3 + $0x838] sm:$0xff]
    %v3650 = vld [vmem:[#allocation3 + $0x840] sm:$0xff]
    %v3651 = vld [vmem:[#allocation3 + $0x848] sm:$0xff]
    %v3652 = vld [vmem:[#allocation3 + $0x850] sm:$0xff]
    %v3653 = vld [vmem:[#allocation3 + $0x858] sm:$0xff]
    %v3654 = vld [vmem:[#allocation3 + $0x860] sm:$0xff]
    %v3655 = vld [vmem:[#allocation3 + $0x868] sm:$0xff]
    %v3656 = vld [vmem:[#allocation3 + $0x870] sm:$0xff]
    %v3657 = vld [vmem:[#allocation3 + $0x878] sm:$0xff]
    %v3658 = vld [vmem:[#allocation3 + $0x880] sm:$0xff]
    %v3659 = vld [vmem:[#allocation3 + $0x888] sm:$0xff]
    %v3660 = vld [vmem:[#allocation3 + $0x890] sm:$0xff]
    %v3661 = vld [vmem:[#allocation3 + $0x898] sm:$0xff]
    %v3662 = vld [vmem:[#allocation3 + $0x8a0] sm:$0xff]
    %v3663 = vld [vmem:[#allocation3 + $0x8a8] sm:$0xff]
    %v3664 = vld [vmem:[#allocation3 + $0x8b0] sm:$0xff]
    %v3665 = vld [vmem:[#allocation3 + $0x8b8] sm:$0xff]
    %v3666 = vld [vmem:[#allocation3 + $0x8c0] sm:$0xff]
    %v3667 = vld [vmem:[#allocation3 + $0x8c8] sm:$0xff]
    %v3668 = vld [vmem:[#allocation3 + $0x8d0] sm:$0xff]
    %v3669 = vld [vmem:[#allocation3 + $0x8d8] sm:$0xff]
    %v3670 = vld [vmem:[#allocation3 + $0x8e0] sm:$0xff]
    %v3671 = vld [vmem:[#allocation3 + $0x8e8] sm:$0xff]
    %v3672 = vld [vmem:[#allocation3 + $0x8f0] sm:$0xff]
    %v3673 = vld [vmem:[#allocation3 + $0x8f8] sm:$0xff]
    %v3674 = vld [vmem:[#allocation3 + $0x900] sm:$0xff]
    %v3675 = vld [vmem:[#allocation3 + $0x908] sm:$0xff]
    %v3676 = vld [vmem:[#allocation3 + $0x910] sm:$0xff]
    %v3677 = vld [vmem:[#allocation3 + $0x918] sm:$0xff]
    %v3678 = vld [vmem:[#allocation3 + $0x920] sm:$0xff]
    %v3679 = vld [vmem:[#allocation3 + $0x928] sm:$0xff]
    %v3680 = vld [vmem:[#allocation3 + $0x930] sm:$0xff]
    %v3681 = vld [vmem:[#allocation3 + $0x938] sm:$0xff]
    %v3682 = vld [vmem:[#allocation3 + $0x940] sm:$0xff]
    %v3683 = vld [vmem:[#allocation3 + $0x948] sm:$0xff]
    %v3684 = vld [vmem:[#allocation3 + $0x950] sm:$0xff]
    %v3685 = vld [vmem:[#allocation3 + $0x958] sm:$0xff]
    %v3686 = vld [vmem:[#allocation3 + $0x960] sm:$0xff]
    %v3687 = vld [vmem:[#allocation3 + $0x968] sm:$0xff]
    %v3688 = vld [vmem:[#allocation3 + $0x970] sm:$0xff]
    %v3689 = vld [vmem:[#allocation3 + $0x978] sm:$0xff]
    %v3690 = vld [vmem:[#allocation3 + $0x980] sm:$0xff]
    %v3691 = vld [vmem:[#allocation3 + $0x988] sm:$0xff]
    %v3692 = vld [vmem:[#allocation3 + $0x990] sm:$0xff]
    %v3693 = vld [vmem:[#allocation3 + $0x998] sm:$0xff]
    %v3694 = vld [vmem:[#allocation3 + $0x9a0] sm:$0xff]
    %v3695 = vld [vmem:[#allocation3 + $0x9a8] sm:$0xff]
    %v3696 = vld [vmem:[#allocation3 + $0x9b0] sm:$0xff]
    %v3697 = vld [vmem:[#allocation3 + $0x9b8] sm:$0xff]
    %v3698 = vld [vmem:[#allocation3 + $0x9c0] sm:$0xff]
    %v3699 = vld [vmem:[#allocation3 + $0x9c8] sm:$0xff]
    %v3700 = vld [vmem:[#allocation3 + $0x9d0] sm:$0xff]
    %v3701 = vld [vmem:[#allocation3 + $0x9d8] sm:$0xff]
    %v3702 = vld [vmem:[#allocation3 + $0x9e0] sm:$0xff]
    %v3703 = vld [vmem:[#allocation3 + $0x9e8] sm:$0xff]
    %v3704 = vld [vmem:[#allocation3 + $0x9f0] sm:$0xff]
    %v3705 = vld [vmem:[#allocation3 + $0x9f8] sm:$0xff]
    %v3706 = vld [vmem:[#allocation3 + $0xa00] sm:$0xff]
    %v3707 = vld [vmem:[#allocation3 + $0xa08] sm:$0xff]
    %v3708 = vld [vmem:[#allocation3 + $0xa10] sm:$0xff]
    %v3709 = vld [vmem:[#allocation3 + $0xa18] sm:$0xff]
    %v3710 = vld [vmem:[#allocation3 + $0xa20] sm:$0xff]
    %v3711 = vld [vmem:[#allocation3 + $0xa28] sm:$0xff]
    %v3712 = vld [vmem:[#allocation3 + $0xa30] sm:$0xff]
    %v3713 = vld [vmem:[#allocation3 + $0xa38] sm:$0xff]
    %v3714 = vld [vmem:[#allocation3 + $0xa40] sm:$0xff]
    %v3715 = vld [vmem:[#allocation3 + $0xa48] sm:$0xff]
    %v3716 = vld [vmem:[#allocation3 + $0xa50] sm:$0xff]
    %v3717 = vld [vmem:[#allocation3 + $0xa58] sm:$0xff]
    %v3718 = vld [vmem:[#allocation3 + $0xa60] sm:$0xff]
    %v3719 = vld [vmem:[#allocation3 + $0xa68] sm:$0xff]
    %v3720 = vld [vmem:[#allocation3 + $0xa70] sm:$0xff]
    %v3721 = vld [vmem:[#allocation3 + $0xa78] sm:$0xff]
    %v3722 = vld [vmem:[#allocation3 + $0xa80] sm:$0xff]
    %v3723 = vld [vmem:[#allocation3 + $0xa88] sm:$0xff]
    %v3724 = vld [vmem:[#allocation3 + $0xa90] sm:$0xff]
    %v3725 = vld [vmem:[#allocation3 + $0xa98] sm:$0xff]
    %v3726 = vld [vmem:[#allocation3 + $0xaa0] sm:$0xff]
    %v3727 = vld [vmem:[#allocation3 + $0xaa8] sm:$0xff]
    %v3728 = vld [vmem:[#allocation3 + $0xab0] sm:$0xff]
    %v3729 = vld [vmem:[#allocation3 + $0xab8] sm:$0xff]
    %v3730 = vld [vmem:[#allocation3 + $0xac0] sm:$0xff]
    %v3731 = vld [vmem:[#allocation3 + $0xac8] sm:$0xff]
    %v3732 = vld [vmem:[#allocation3 + $0xad0] sm:$0xff]
    %v3733 = vld [vmem:[#allocation3 + $0xad8] sm:$0xff]
    %v3734 = vld [vmem:[#allocation3 + $0xae0] sm:$0xff]
    %v3735 = vld [vmem:[#allocation3 + $0xae8] sm:$0xff]
    %v3736 = vld [vmem:[#allocation3 + $0xaf0] sm:$0xff]
    %v3737 = vld [vmem:[#allocation3 + $0xaf8] sm:$0xff]
    %v3738 = vld [vmem:[#allocation3 + $0xb00] sm:$0xff]
    %v3739 = vld [vmem:[#allocation3 + $0xb08] sm:$0xff]
    %v3740 = vld [vmem:[#allocation3 + $0xb10] sm:$0xff]
    %v3741 = vld [vmem:[#allocation3 + $0xb18] sm:$0xff]
    %v3742 = vld [vmem:[#allocation3 + $0xb20] sm:$0xff]
    %v3743 = vld [vmem:[#allocation3 + $0xb28] sm:$0xff]
    %v3744 = vld [vmem:[#allocation3 + $0xb30] sm:$0xff]
    %v3745 = vld [vmem:[#allocation3 + $0xb38] sm:$0xff]
    %v3746 = vld [vmem:[#allocation3 + $0xb40] sm:$0xff]
    %v3747 = vld [vmem:[#allocation3 + $0xb48] sm:$0xff]
    %v3748 = vld [vmem:[#allocation3 + $0xb50] sm:$0xff]
    %v3749 = vld [vmem:[#allocation3 + $0xb58] sm:$0xff]
    %v3750 = vld [vmem:[#allocation3 + $0xb60] sm:$0xff]
    %v3751 = vld [vmem:[#allocation3 + $0xb68] sm:$0xff]
    %v3752 = vld [vmem:[#allocation3 + $0xb70] sm:$0xff]
    %v3753 = vld [vmem:[#allocation3 + $0xb78] sm:$0xff]
    %v3754 = vld [vmem:[#allocation3 + $0xb80] sm:$0xff]
    %v3755 = vld [vmem:[#allocation3 + $0xb88] sm:$0xff]
    %v3756 = vld [vmem:[#allocation3 + $0xb90] sm:$0xff]
    %v3757 = vld [vmem:[#allocation3 + $0xb98] sm:$0xff]
    %v3758 = vld [vmem:[#allocation3 + $0xba0] sm:$0xff]
    %v3759 = vld [vmem:[#allocation3 + $0xba8] sm:$0xff]
    %v3760 = vld [vmem:[#allocation3 + $0xbb0] sm:$0xff]
    %v3761 = vld [vmem:[#allocation3 + $0xbb8] sm:$0xff]
    %v3762 = vld [vmem:[#allocation3 + $0xbc0] sm:$0xff]
    %v3763 = vld [vmem:[#allocation3 + $0xbc8] sm:$0xff]
    %v3764 = vld [vmem:[#allocation3 + $0xbd0] sm:$0xff]
    %v3765 = vld [vmem:[#allocation3 + $0xbd8] sm:$0xff]
    %v3766 = vld [vmem:[#allocation3 + $0xbe0] sm:$0xff]
    %v3767 = vld [vmem:[#allocation3 + $0xbe8] sm:$0xff]
    %v3768 = vld [vmem:[#allocation3 + $0xbf0] sm:$0xff]
    %v3769 = vld [vmem:[#allocation3 + $0xbf8] sm:$0xff]
    %v3770 = vpack.c.bf16 %v3374, %v3374
    %v3771 = vpack.c.bf16 %v3375, %v3375
    %v3772 = vpack.c.bf16 %v3376, %v3376
    %v3773 = vpack.c.bf16 %v3377, %v3377
    %v3774 = vpack.c.bf16 %v3378, %v3378
    %v3775 = vpack.c.bf16 %v3379, %v3379
    %v3776 = vpack.c.bf16 %v3380, %v3380
    %v3777 = vpack.c.bf16 %v3381, %v3381
    %v3779 = vlaneseq
    %v3780 = vshrl.u32 %v3779, 7
    %v3781 = vsub.s32 0, %v3780
    %v3782 = vrot.slane %v140, %v3781
    %v3783 = vlaneseq
    %v3784 = vshrl.u32 %v3783, 7
    %v3785 = vsub.s32 1, %v3784
    %v3786 = vrot.slane %v140, %v3785
    %v3787 = vlaneseq
    %v3788 = vshrl.u32 %v3787, 7
    %v3789 = vsub.s32 2, %v3788
    %v3790 = vrot.slane %v140, %v3789
    %v3791 = vlaneseq
    %v3792 = vshrl.u32 %v3791, 7
    %v3793 = vsub.s32 3, %v3792
    %v3794 = vrot.slane %v140, %v3793
    %v3795 = vlaneseq
    %v3796 = vshrl.u32 %v3795, 7
    %v3797 = vsub.s32 4, %v3796
    %v3798 = vrot.slane %v140, %v3797
    %v3799 = vlaneseq
    %v3800 = vshrl.u32 %v3799, 7
    %v3801 = vsub.s32 5, %v3800
    %v3802 = vrot.slane %v140, %v3801
    %v4193 = vunpack.c.l.b16 %v3386
    %v4194 = vunpack.c.h.b16 %v3386
    %v4195 = vunpack.c.l.b16 %v3387
    %v4196 = vunpack.c.h.b16 %v3387
    %v4197 = vunpack.c.l.b16 %v3388
    %v4198 = vunpack.c.h.b16 %v3388
    %v4199 = vunpack.c.l.b16 %v3389
    %v4200 = vunpack.c.h.b16 %v3389
    %v4201 = vunpack.c.l.b16 %v3390
    %v4202 = vunpack.c.h.b16 %v3390
    %v4203 = vunpack.c.l.b16 %v3391
    %v4204 = vunpack.c.h.b16 %v3391
    %v4205 = vunpack.c.l.b16 %v3392
    %v4206 = vunpack.c.h.b16 %v3392
    %v4207 = vunpack.c.l.b16 %v3393
    %v4208 = vunpack.c.h.b16 %v3393
    %v4209 = vunpack.c.l.b16 %v3394
    %v4210 = vunpack.c.h.b16 %v3394
    %v4211 = vunpack.c.l.b16 %v3395
    %v4212 = vunpack.c.h.b16 %v3395
    %v4213 = vunpack.c.l.b16 %v3396
    %v4214 = vunpack.c.h.b16 %v3396
    %v4215 = vunpack.c.l.b16 %v3397
    %v4216 = vunpack.c.h.b16 %v3397
    %v4217 = vunpack.c.l.b16 %v3398
    %v4218 = vunpack.c.h.b16 %v3398
    %v4219 = vunpack.c.l.b16 %v3399
    %v4220 = vunpack.c.h.b16 %v3399
    %v4221 = vunpack.c.l.b16 %v3400
    %v4222 = vunpack.c.h.b16 %v3400
    %v4223 = vunpack.c.l.b16 %v3401
    %v4224 = vunpack.c.h.b16 %v3401
    %v4225 = vunpack.c.l.b16 %v3402
    %v4226 = vunpack.c.h.b16 %v3402
    %v4227 = vunpack.c.l.b16 %v3403
    %v4228 = vunpack.c.h.b16 %v3403
    %v4229 = vunpack.c.l.b16 %v3404
    %v4230 = vunpack.c.h.b16 %v3404
    %v4231 = vunpack.c.l.b16 %v3405
    %v4232 = vunpack.c.h.b16 %v3405
    %v4233 = vunpack.c.l.b16 %v3406
    %v4234 = vunpack.c.h.b16 %v3406
    %v4235 = vunpack.c.l.b16 %v3407
    %v4236 = vunpack.c.h.b16 %v3407
    %v4237 = vunpack.c.l.b16 %v3408
    %v4238 = vunpack.c.h.b16 %v3408
    %v4239 = vunpack.c.l.b16 %v3409
    %v4240 = vunpack.c.h.b16 %v3409
    %v4241 = vunpack.c.l.b16 %v3410
    %v4242 = vunpack.c.h.b16 %v3410
    %v4243 = vunpack.c.l.b16 %v3411
    %v4244 = vunpack.c.h.b16 %v3411
    %v4245 = vunpack.c.l.b16 %v3412
    %v4246 = vunpack.c.h.b16 %v3412
    %v4247 = vunpack.c.l.b16 %v3413
    %v4248 = vunpack.c.h.b16 %v3413
    %v4249 = vunpack.c.l.b16 %v3414
    %v4250 = vunpack.c.h.b16 %v3414
    %v4251 = vunpack.c.l.b16 %v3415
    %v4252 = vunpack.c.h.b16 %v3415
    %v4253 = vunpack.c.l.b16 %v3416
    %v4254 = vunpack.c.h.b16 %v3416
    %v4255 = vunpack.c.l.b16 %v3417
    %v4256 = vunpack.c.h.b16 %v3417
    %v4257 = vunpack.c.l.b16 %v3418
    %v4258 = vunpack.c.h.b16 %v3418
    %v4259 = vunpack.c.l.b16 %v3419
    %v4260 = vunpack.c.h.b16 %v3419
    %v4261 = vunpack.c.l.b16 %v3420
    %v4262 = vunpack.c.h.b16 %v3420
    %v4263 = vunpack.c.l.b16 %v3421
    %v4264 = vunpack.c.h.b16 %v3421
    %v4265 = vunpack.c.l.b16 %v3422
    %v4266 = vunpack.c.h.b16 %v3422
    %v4267 = vunpack.c.l.b16 %v3423
    %v4268 = vunpack.c.h.b16 %v3423
    %v4269 = vunpack.c.l.b16 %v3424
    %v4270 = vunpack.c.h.b16 %v3424
    %v4271 = vunpack.c.l.b16 %v3425
    %v4272 = vunpack.c.h.b16 %v3425
    %v4273 = vunpack.c.l.b16 %v3426
    %v4274 = vunpack.c.h.b16 %v3426
    %v4275 = vunpack.c.l.b16 %v3427
    %v4276 = vunpack.c.h.b16 %v3427
    %v4277 = vunpack.c.l.b16 %v3428
    %v4278 = vunpack.c.h.b16 %v3428
    %v4279 = vunpack.c.l.b16 %v3429
    %v4280 = vunpack.c.h.b16 %v3429
    %v4281 = vunpack.c.l.b16 %v3430
    %v4282 = vunpack.c.h.b16 %v3430
    %v4283 = vunpack.c.l.b16 %v3431
    %v4284 = vunpack.c.h.b16 %v3431
    %v4285 = vunpack.c.l.b16 %v3432
    %v4286 = vunpack.c.h.b16 %v3432
    %v4287 = vunpack.c.l.b16 %v3433
    %v4288 = vunpack.c.h.b16 %v3433
    %v4289 = vunpack.c.l.b16 %v3434
    %v4290 = vunpack.c.h.b16 %v3434
    %v4291 = vunpack.c.l.b16 %v3435
    %v4292 = vunpack.c.h.b16 %v3435
    %v4293 = vunpack.c.l.b16 %v3436
    %v4294 = vunpack.c.h.b16 %v3436
    %v4295 = vunpack.c.l.b16 %v3437
    %v4296 = vunpack.c.h.b16 %v3437
    %v4297 = vunpack.c.l.b16 %v3438
    %v4298 = vunpack.c.h.b16 %v3438
    %v4299 = vunpack.c.l.b16 %v3439
    %v4300 = vunpack.c.h.b16 %v3439
    %v4301 = vunpack.c.l.b16 %v3440
    %v4302 = vunpack.c.h.b16 %v3440
    %v4303 = vunpack.c.l.b16 %v3441
    %v4304 = vunpack.c.h.b16 %v3441
    %v4305 = vunpack.c.l.b16 %v3442
    %v4306 = vunpack.c.h.b16 %v3442
    %v4307 = vunpack.c.l.b16 %v3443
    %v4308 = vunpack.c.h.b16 %v3443
    %v4309 = vunpack.c.l.b16 %v3444
    %v4310 = vunpack.c.h.b16 %v3444
    %v4311 = vunpack.c.l.b16 %v3445
    %v4312 = vunpack.c.h.b16 %v3445
    %v4313 = vunpack.c.l.b16 %v3446
    %v4314 = vunpack.c.h.b16 %v3446
    %v4315 = vunpack.c.l.b16 %v3447
    %v4316 = vunpack.c.h.b16 %v3447
    %v4317 = vunpack.c.l.b16 %v3448
    %v4318 = vunpack.c.h.b16 %v3448
    %v4319 = vunpack.c.l.b16 %v3449
    %v4320 = vunpack.c.h.b16 %v3449
    %v4321 = vunpack.c.l.b16 %v3450
    %v4322 = vunpack.c.h.b16 %v3450
    %v4323 = vunpack.c.l.b16 %v3451
    %v4324 = vunpack.c.h.b16 %v3451
    %v4325 = vunpack.c.l.b16 %v3452
    %v4326 = vunpack.c.h.b16 %v3452
    %v4327 = vunpack.c.l.b16 %v3453
    %v4328 = vunpack.c.h.b16 %v3453
    %v4329 = vunpack.c.l.b16 %v3454
    %v4330 = vunpack.c.h.b16 %v3454
    %v4331 = vunpack.c.l.b16 %v3455
    %v4332 = vunpack.c.h.b16 %v3455
    %v4333 = vunpack.c.l.b16 %v3456
    %v4334 = vunpack.c.h.b16 %v3456
    %v4335 = vunpack.c.l.b16 %v3457
    %v4336 = vunpack.c.h.b16 %v3457
    %v4337 = vunpack.c.l.b16 %v3458
    %v4338 = vunpack.c.h.b16 %v3458
    %v4339 = vunpack.c.l.b16 %v3459
    %v4340 = vunpack.c.h.b16 %v3459
    %v4341 = vunpack.c.l.b16 %v3460
    %v4342 = vunpack.c.h.b16 %v3460
    %v4343 = vunpack.c.l.b16 %v3461
    %v4344 = vunpack.c.h.b16 %v3461
    %v4345 = vunpack.c.l.b16 %v3462
    %v4346 = vunpack.c.h.b16 %v3462
    %v4347 = vunpack.c.l.b16 %v3463
    %v4348 = vunpack.c.h.b16 %v3463
    %v4349 = vunpack.c.l.b16 %v3464
    %v4350 = vunpack.c.h.b16 %v3464
    %v4351 = vunpack.c.l.b16 %v3465
    %v4352 = vunpack.c.h.b16 %v3465
    %v4353 = vunpack.c.l.b16 %v3466
    %v4354 = vunpack.c.h.b16 %v3466
    %v4355 = vunpack.c.l.b16 %v3467
    %v4356 = vunpack.c.h.b16 %v3467
    %v4357 = vunpack.c.l.b16 %v3468
    %v4358 = vunpack.c.h.b16 %v3468
    %v4359 = vunpack.c.l.b16 %v3469
    %v4360 = vunpack.c.h.b16 %v3469
    %v4361 = vunpack.c.l.b16 %v3470
    %v4362 = vunpack.c.h.b16 %v3470
    %v4363 = vunpack.c.l.b16 %v3471
    %v4364 = vunpack.c.h.b16 %v3471
    %v4365 = vunpack.c.l.b16 %v3472
    %v4366 = vunpack.c.h.b16 %v3472
    %v4367 = vunpack.c.l.b16 %v3473
    %v4368 = vunpack.c.h.b16 %v3473
    %v4369 = vunpack.c.l.b16 %v3474
    %v4370 = vunpack.c.h.b16 %v3474
    %v4371 = vunpack.c.l.b16 %v3475
    %v4372 = vunpack.c.h.b16 %v3475
    %v4373 = vunpack.c.l.b16 %v3476
    %v4374 = vunpack.c.h.b16 %v3476
    %v4375 = vunpack.c.l.b16 %v3477
    %v4376 = vunpack.c.h.b16 %v3477
    %v4377 = vunpack.c.l.b16 %v3478
    %v4378 = vunpack.c.h.b16 %v3478
    %v4379 = vunpack.c.l.b16 %v3479
    %v4380 = vunpack.c.h.b16 %v3479
    %v4381 = vunpack.c.l.b16 %v3480
    %v4382 = vunpack.c.h.b16 %v3480
    %v4383 = vunpack.c.l.b16 %v3481
    %v4384 = vunpack.c.h.b16 %v3481
    %v4385 = vunpack.c.l.b16 %v3482
    %v4386 = vunpack.c.h.b16 %v3482
    %v4387 = vunpack.c.l.b16 %v3483
    %v4388 = vunpack.c.h.b16 %v3483
    %v4389 = vunpack.c.l.b16 %v3484
    %v4390 = vunpack.c.h.b16 %v3484
    %v4391 = vunpack.c.l.b16 %v3485
    %v4392 = vunpack.c.h.b16 %v3485
    %v4393 = vunpack.c.l.b16 %v3486
    %v4394 = vunpack.c.h.b16 %v3486
    %v4395 = vunpack.c.l.b16 %v3487
    %v4396 = vunpack.c.h.b16 %v3487
    %v4397 = vunpack.c.l.b16 %v3488
    %v4398 = vunpack.c.h.b16 %v3488
    %v4399 = vunpack.c.l.b16 %v3489
    %v4400 = vunpack.c.h.b16 %v3489
    %v4401 = vunpack.c.l.b16 %v3490
    %v4402 = vunpack.c.h.b16 %v3490
    %v4403 = vunpack.c.l.b16 %v3491
    %v4404 = vunpack.c.h.b16 %v3491
    %v4405 = vunpack.c.l.b16 %v3492
    %v4406 = vunpack.c.h.b16 %v3492
    %v4407 = vunpack.c.l.b16 %v3493
    %v4408 = vunpack.c.h.b16 %v3493
    %v4409 = vunpack.c.l.b16 %v3494
    %v4410 = vunpack.c.h.b16 %v3494
    %v4411 = vunpack.c.l.b16 %v3495
    %v4412 = vunpack.c.h.b16 %v3495
    %v4413 = vunpack.c.l.b16 %v3496
    %v4414 = vunpack.c.h.b16 %v3496
    %v4415 = vunpack.c.l.b16 %v3497
    %v4416 = vunpack.c.h.b16 %v3497
    %v4417 = vunpack.c.l.b16 %v3498
    %v4418 = vunpack.c.h.b16 %v3498
    %v4419 = vunpack.c.l.b16 %v3499
    %v4420 = vunpack.c.h.b16 %v3499
    %v4421 = vunpack.c.l.b16 %v3500
    %v4422 = vunpack.c.h.b16 %v3500
    %v4423 = vunpack.c.l.b16 %v3501
    %v4424 = vunpack.c.h.b16 %v3501
    %v4425 = vunpack.c.l.b16 %v3502
    %v4426 = vunpack.c.h.b16 %v3502
    %v4427 = vunpack.c.l.b16 %v3503
    %v4428 = vunpack.c.h.b16 %v3503
    %v4429 = vunpack.c.l.b16 %v3504
    %v4430 = vunpack.c.h.b16 %v3504
    %v4431 = vunpack.c.l.b16 %v3505
    %v4432 = vunpack.c.h.b16 %v3505
    %v4433 = vunpack.c.l.b16 %v3506
    %v4434 = vunpack.c.h.b16 %v3506
    %v4435 = vunpack.c.l.b16 %v3507
    %v4436 = vunpack.c.h.b16 %v3507
    %v4437 = vunpack.c.l.b16 %v3508
    %v4438 = vunpack.c.h.b16 %v3508
    %v4439 = vunpack.c.l.b16 %v3509
    %v4440 = vunpack.c.h.b16 %v3509
    %v4441 = vunpack.c.l.b16 %v3510
    %v4442 = vunpack.c.h.b16 %v3510
    %v4443 = vunpack.c.l.b16 %v3511
    %v4444 = vunpack.c.h.b16 %v3511
    %v4445 = vunpack.c.l.b16 %v3512
    %v4446 = vunpack.c.h.b16 %v3512
    %v4447 = vunpack.c.l.b16 %v3513
    %v4448 = vunpack.c.h.b16 %v3513
    %v4449 = vunpack.c.l.b16 %v3514
    %v4450 = vunpack.c.h.b16 %v3514
    %v4451 = vunpack.c.l.b16 %v3515
    %v4452 = vunpack.c.h.b16 %v3515
    %v4453 = vunpack.c.l.b16 %v3516
    %v4454 = vunpack.c.h.b16 %v3516
    %v4455 = vunpack.c.l.b16 %v3517
    %v4456 = vunpack.c.h.b16 %v3517
    %v4457 = vunpack.c.l.b16 %v3518
    %v4458 = vunpack.c.h.b16 %v3518
    %v4459 = vunpack.c.l.b16 %v3519
    %v4460 = vunpack.c.h.b16 %v3519
    %v4461 = vunpack.c.l.b16 %v3520
    %v4462 = vunpack.c.h.b16 %v3520
    %v4463 = vunpack.c.l.b16 %v3521
    %v4464 = vunpack.c.h.b16 %v3521
    %v4465 = vunpack.c.l.b16 %v3522
    %v4466 = vunpack.c.h.b16 %v3522
    %v4467 = vunpack.c.l.b16 %v3523
    %v4468 = vunpack.c.h.b16 %v3523
    %v4469 = vunpack.c.l.b16 %v3524
    %v4470 = vunpack.c.h.b16 %v3524
    %v4471 = vunpack.c.l.b16 %v3525
    %v4472 = vunpack.c.h.b16 %v3525
    %v4473 = vunpack.c.l.b16 %v3526
    %v4474 = vunpack.c.h.b16 %v3526
    %v4475 = vunpack.c.l.b16 %v3527
    %v4476 = vunpack.c.h.b16 %v3527
    %v4477 = vunpack.c.l.b16 %v3528
    %v4478 = vunpack.c.h.b16 %v3528
    %v4479 = vunpack.c.l.b16 %v3529
    %v4480 = vunpack.c.h.b16 %v3529
    %v4481 = vunpack.c.l.b16 %v3530
    %v4482 = vunpack.c.h.b16 %v3530
    %v4483 = vunpack.c.l.b16 %v3531
    %v4484 = vunpack.c.h.b16 %v3531
    %v4485 = vunpack.c.l.b16 %v3532
    %v4486 = vunpack.c.h.b16 %v3532
    %v4487 = vunpack.c.l.b16 %v3533
    %v4488 = vunpack.c.h.b16 %v3533
    %v4489 = vunpack.c.l.b16 %v3534
    %v4490 = vunpack.c.h.b16 %v3534
    %v4491 = vunpack.c.l.b16 %v3535
    %v4492 = vunpack.c.h.b16 %v3535
    %v4493 = vunpack.c.l.b16 %v3536
    %v4494 = vunpack.c.h.b16 %v3536
    %v4495 = vunpack.c.l.b16 %v3537
    %v4496 = vunpack.c.h.b16 %v3537
    %v4497 = vunpack.c.l.b16 %v3538
    %v4498 = vunpack.c.h.b16 %v3538
    %v4499 = vunpack.c.l.b16 %v3539
    %v4500 = vunpack.c.h.b16 %v3539
    %v4501 = vunpack.c.l.b16 %v3540
    %v4502 = vunpack.c.h.b16 %v3540
    %v4503 = vunpack.c.l.b16 %v3541
    %v4504 = vunpack.c.h.b16 %v3541
    %v4505 = vunpack.c.l.b16 %v3542
    %v4506 = vunpack.c.h.b16 %v3542
    %v4507 = vunpack.c.l.b16 %v3543
    %v4508 = vunpack.c.h.b16 %v3543
    %v4509 = vunpack.c.l.b16 %v3544
    %v4510 = vunpack.c.h.b16 %v3544
    %v4511 = vunpack.c.l.b16 %v3545
    %v4512 = vunpack.c.h.b16 %v3545
    %v4513 = vunpack.c.l.b16 %v3546
    %v4514 = vunpack.c.h.b16 %v3546
    %v4515 = vunpack.c.l.b16 %v3547
    %v4516 = vunpack.c.h.b16 %v3547
    %v4517 = vunpack.c.l.b16 %v3548
    %v4518 = vunpack.c.h.b16 %v3548
    %v4519 = vunpack.c.l.b16 %v3549
    %v4520 = vunpack.c.h.b16 %v3549
    %v4521 = vunpack.c.l.b16 %v3550
    %v4522 = vunpack.c.h.b16 %v3550
    %v4523 = vunpack.c.l.b16 %v3551
    %v4524 = vunpack.c.h.b16 %v3551
    %v4525 = vunpack.c.l.b16 %v3552
    %v4526 = vunpack.c.h.b16 %v3552
    %v4527 = vunpack.c.l.b16 %v3553
    %v4528 = vunpack.c.h.b16 %v3553
    %v4529 = vunpack.c.l.b16 %v3554
    %v4530 = vunpack.c.h.b16 %v3554
    %v4531 = vunpack.c.l.b16 %v3555
    %v4532 = vunpack.c.h.b16 %v3555
    %v4533 = vunpack.c.l.b16 %v3556
    %v4534 = vunpack.c.h.b16 %v3556
    %v4535 = vunpack.c.l.b16 %v3557
    %v4536 = vunpack.c.h.b16 %v3557
    %v4537 = vunpack.c.l.b16 %v3558
    %v4538 = vunpack.c.h.b16 %v3558
    %v4539 = vunpack.c.l.b16 %v3559
    %v4540 = vunpack.c.h.b16 %v3559
    %v4541 = vunpack.c.l.b16 %v3560
    %v4542 = vunpack.c.h.b16 %v3560
    %v4543 = vunpack.c.l.b16 %v3561
    %v4544 = vunpack.c.h.b16 %v3561
    %v4545 = vunpack.c.l.b16 %v3562
    %v4546 = vunpack.c.h.b16 %v3562
    %v4547 = vunpack.c.l.b16 %v3563
    %v4548 = vunpack.c.h.b16 %v3563
    %v4549 = vunpack.c.l.b16 %v3564
    %v4550 = vunpack.c.h.b16 %v3564
    %v4551 = vunpack.c.l.b16 %v3565
    %v4552 = vunpack.c.h.b16 %v3565
    %v4553 = vunpack.c.l.b16 %v3566
    %v4554 = vunpack.c.h.b16 %v3566
    %v4555 = vunpack.c.l.b16 %v3567
    %v4556 = vunpack.c.h.b16 %v3567
    %v4557 = vunpack.c.l.b16 %v3568
    %v4558 = vunpack.c.h.b16 %v3568
    %v4559 = vunpack.c.l.b16 %v3569
    %v4560 = vunpack.c.h.b16 %v3569
    %v4561 = vunpack.c.l.b16 %v3570
    %v4562 = vunpack.c.h.b16 %v3570
    %v4563 = vunpack.c.l.b16 %v3571
    %v4564 = vunpack.c.h.b16 %v3571
    %v4565 = vunpack.c.l.b16 %v3572
    %v4566 = vunpack.c.h.b16 %v3572
    %v4567 = vunpack.c.l.b16 %v3573
    %v4568 = vunpack.c.h.b16 %v3573
    %v4569 = vunpack.c.l.b16 %v3574
    %v4570 = vunpack.c.h.b16 %v3574
    %v4571 = vunpack.c.l.b16 %v3575
    %v4572 = vunpack.c.h.b16 %v3575
    %v4573 = vunpack.c.l.b16 %v3576
    %v4574 = vunpack.c.h.b16 %v3576
    %v4575 = vunpack.c.l.b16 %v3577
    %v4576 = vunpack.c.h.b16 %v3577
    %v4577 = vunpack.c.l.b16 %v3578
    %v4578 = vunpack.c.h.b16 %v3578
    %v4579 = vunpack.c.l.b16 %v3579
    %v4580 = vunpack.c.h.b16 %v3579
    %v4581 = vunpack.c.l.b16 %v3580
    %v4582 = vunpack.c.h.b16 %v3580
    %v4583 = vunpack.c.l.b16 %v3581
    %v4584 = vunpack.c.h.b16 %v3581
    %v4585 = vunpack.c.l.b16 %v3582
    %v4586 = vunpack.c.h.b16 %v3582
    %v4587 = vunpack.c.l.b16 %v3583
    %v4588 = vunpack.c.h.b16 %v3583
    %v4589 = vunpack.c.l.b16 %v3584
    %v4590 = vunpack.c.h.b16 %v3584
    %v4591 = vunpack.c.l.b16 %v3585
    %v4592 = vunpack.c.h.b16 %v3585
    %v4593 = vunpack.c.l.b16 %v3586
    %v4594 = vunpack.c.h.b16 %v3586
    %v4595 = vunpack.c.l.b16 %v3587
    %v4596 = vunpack.c.h.b16 %v3587
    %v4597 = vunpack.c.l.b16 %v3588
    %v4598 = vunpack.c.h.b16 %v3588
    %v4599 = vunpack.c.l.b16 %v3589
    %v4600 = vunpack.c.h.b16 %v3589
    %v4601 = vunpack.c.l.b16 %v3590
    %v4602 = vunpack.c.h.b16 %v3590
    %v4603 = vunpack.c.l.b16 %v3591
    %v4604 = vunpack.c.h.b16 %v3591
    %v4605 = vunpack.c.l.b16 %v3592
    %v4606 = vunpack.c.h.b16 %v3592
    %v4607 = vunpack.c.l.b16 %v3593
    %v4608 = vunpack.c.h.b16 %v3593
    %v4609 = vunpack.c.l.b16 %v3594
    %v4610 = vunpack.c.h.b16 %v3594
    %v4611 = vunpack.c.l.b16 %v3595
    %v4612 = vunpack.c.h.b16 %v3595
    %v4613 = vunpack.c.l.b16 %v3596
    %v4614 = vunpack.c.h.b16 %v3596
    %v4615 = vunpack.c.l.b16 %v3597
    %v4616 = vunpack.c.h.b16 %v3597
    %v4617 = vunpack.c.l.b16 %v3598
    %v4618 = vunpack.c.h.b16 %v3598
    %v4619 = vunpack.c.l.b16 %v3599
    %v4620 = vunpack.c.h.b16 %v3599
    %v4621 = vunpack.c.l.b16 %v3600
    %v4622 = vunpack.c.h.b16 %v3600
    %v4623 = vunpack.c.l.b16 %v3601
    %v4624 = vunpack.c.h.b16 %v3601
    %v4625 = vunpack.c.l.b16 %v3602
    %v4626 = vunpack.c.h.b16 %v3602
    %v4627 = vunpack.c.l.b16 %v3603
    %v4628 = vunpack.c.h.b16 %v3603
    %v4629 = vunpack.c.l.b16 %v3604
    %v4630 = vunpack.c.h.b16 %v3604
    %v4631 = vunpack.c.l.b16 %v3605
    %v4632 = vunpack.c.h.b16 %v3605
    %v4633 = vunpack.c.l.b16 %v3606
    %v4634 = vunpack.c.h.b16 %v3606
    %v4635 = vunpack.c.l.b16 %v3607
    %v4636 = vunpack.c.h.b16 %v3607
    %v4637 = vunpack.c.l.b16 %v3608
    %v4638 = vunpack.c.h.b16 %v3608
    %v4639 = vunpack.c.l.b16 %v3609
    %v4640 = vunpack.c.h.b16 %v3609
    %v4641 = vunpack.c.l.b16 %v3610
    %v4642 = vunpack.c.h.b16 %v3610
    %v4643 = vunpack.c.l.b16 %v3611
    %v4644 = vunpack.c.h.b16 %v3611
    %v4645 = vunpack.c.l.b16 %v3612
    %v4646 = vunpack.c.h.b16 %v3612
    %v4647 = vunpack.c.l.b16 %v3613
    %v4648 = vunpack.c.h.b16 %v3613
    %v4649 = vunpack.c.l.b16 %v3614
    %v4650 = vunpack.c.h.b16 %v3614
    %v4651 = vunpack.c.l.b16 %v3615
    %v4652 = vunpack.c.h.b16 %v3615
    %v4653 = vunpack.c.l.b16 %v3616
    %v4654 = vunpack.c.h.b16 %v3616
    %v4655 = vunpack.c.l.b16 %v3617
    %v4656 = vunpack.c.h.b16 %v3617
    %v4657 = vunpack.c.l.b16 %v3618
    %v4658 = vunpack.c.h.b16 %v3618
    %v4659 = vunpack.c.l.b16 %v3619
    %v4660 = vunpack.c.h.b16 %v3619
    %v4661 = vunpack.c.l.b16 %v3620
    %v4662 = vunpack.c.h.b16 %v3620
    %v4663 = vunpack.c.l.b16 %v3621
    %v4664 = vunpack.c.h.b16 %v3621
    %v4665 = vunpack.c.l.b16 %v3622
    %v4666 = vunpack.c.h.b16 %v3622
    %v4667 = vunpack.c.l.b16 %v3623
    %v4668 = vunpack.c.h.b16 %v3623
    %v4669 = vunpack.c.l.b16 %v3624
    %v4670 = vunpack.c.h.b16 %v3624
    %v4671 = vunpack.c.l.b16 %v3625
    %v4672 = vunpack.c.h.b16 %v3625
    %v4673 = vunpack.c.l.b16 %v3626
    %v4674 = vunpack.c.h.b16 %v3626
    %v4675 = vunpack.c.l.b16 %v3627
    %v4676 = vunpack.c.h.b16 %v3627
    %v4677 = vunpack.c.l.b16 %v3628
    %v4678 = vunpack.c.h.b16 %v3628
    %v4679 = vunpack.c.l.b16 %v3629
    %v4680 = vunpack.c.h.b16 %v3629
    %v4681 = vunpack.c.l.b16 %v3630
    %v4682 = vunpack.c.h.b16 %v3630
    %v4683 = vunpack.c.l.b16 %v3631
    %v4684 = vunpack.c.h.b16 %v3631
    %v4685 = vunpack.c.l.b16 %v3632
    %v4686 = vunpack.c.h.b16 %v3632
    %v4687 = vunpack.c.l.b16 %v3633
    %v4688 = vunpack.c.h.b16 %v3633
    %v4689 = vunpack.c.l.b16 %v3634
    %v4690 = vunpack.c.h.b16 %v3634
    %v4691 = vunpack.c.l.b16 %v3635
    %v4692 = vunpack.c.h.b16 %v3635
    %v4693 = vunpack.c.l.b16 %v3636
    %v4694 = vunpack.c.h.b16 %v3636
    %v4695 = vunpack.c.l.b16 %v3637
    %v4696 = vunpack.c.h.b16 %v3637
    %v4697 = vunpack.c.l.b16 %v3638
    %v4698 = vunpack.c.h.b16 %v3638
    %v4699 = vunpack.c.l.b16 %v3639
    %v4700 = vunpack.c.h.b16 %v3639
    %v4701 = vunpack.c.l.b16 %v3640
    %v4702 = vunpack.c.h.b16 %v3640
    %v4703 = vunpack.c.l.b16 %v3641
    %v4704 = vunpack.c.h.b16 %v3641
    %v4705 = vunpack.c.l.b16 %v3642
    %v4706 = vunpack.c.h.b16 %v3642
    %v4707 = vunpack.c.l.b16 %v3643
    %v4708 = vunpack.c.h.b16 %v3643
    %v4709 = vunpack.c.l.b16 %v3644
    %v4710 = vunpack.c.h.b16 %v3644
    %v4711 = vunpack.c.l.b16 %v3645
    %v4712 = vunpack.c.h.b16 %v3645
    %v4713 = vunpack.c.l.b16 %v3646
    %v4714 = vunpack.c.h.b16 %v3646
    %v4715 = vunpack.c.l.b16 %v3647
    %v4716 = vunpack.c.h.b16 %v3647
    %v4717 = vunpack.c.l.b16 %v3648
    %v4718 = vunpack.c.h.b16 %v3648
    %v4719 = vunpack.c.l.b16 %v3649
    %v4720 = vunpack.c.h.b16 %v3649
    %v4721 = vunpack.c.l.b16 %v3650
    %v4722 = vunpack.c.h.b16 %v3650
    %v4723 = vunpack.c.l.b16 %v3651
    %v4724 = vunpack.c.h.b16 %v3651
    %v4725 = vunpack.c.l.b16 %v3652
    %v4726 = vunpack.c.h.b16 %v3652
    %v4727 = vunpack.c.l.b16 %v3653
    %v4728 = vunpack.c.h.b16 %v3653
    %v4729 = vunpack.c.l.b16 %v3654
    %v4730 = vunpack.c.h.b16 %v3654
    %v4731 = vunpack.c.l.b16 %v3655
    %v4732 = vunpack.c.h.b16 %v3655
    %v4733 = vunpack.c.l.b16 %v3656
    %v4734 = vunpack.c.h.b16 %v3656
    %v4735 = vunpack.c.l.b16 %v3657
    %v4736 = vunpack.c.h.b16 %v3657
    %v4737 = vunpack.c.l.b16 %v3658
    %v4738 = vunpack.c.h.b16 %v3658
    %v4739 = vunpack.c.l.b16 %v3659
    %v4740 = vunpack.c.h.b16 %v3659
    %v4741 = vunpack.c.l.b16 %v3660
    %v4742 = vunpack.c.h.b16 %v3660
    %v4743 = vunpack.c.l.b16 %v3661
    %v4744 = vunpack.c.h.b16 %v3661
    %v4745 = vunpack.c.l.b16 %v3662
    %v4746 = vunpack.c.h.b16 %v3662
    %v4747 = vunpack.c.l.b16 %v3663
    %v4748 = vunpack.c.h.b16 %v3663
    %v4749 = vunpack.c.l.b16 %v3664
    %v4750 = vunpack.c.h.b16 %v3664
    %v4751 = vunpack.c.l.b16 %v3665
    %v4752 = vunpack.c.h.b16 %v3665
    %v4753 = vunpack.c.l.b16 %v3666
    %v4754 = vunpack.c.h.b16 %v3666
    %v4755 = vunpack.c.l.b16 %v3667
    %v4756 = vunpack.c.h.b16 %v3667
    %v4757 = vunpack.c.l.b16 %v3668
    %v4758 = vunpack.c.h.b16 %v3668
    %v4759 = vunpack.c.l.b16 %v3669
    %v4760 = vunpack.c.h.b16 %v3669
    %v4761 = vunpack.c.l.b16 %v3670
    %v4762 = vunpack.c.h.b16 %v3670
    %v4763 = vunpack.c.l.b16 %v3671
    %v4764 = vunpack.c.h.b16 %v3671
    %v4765 = vunpack.c.l.b16 %v3672
    %v4766 = vunpack.c.h.b16 %v3672
    %v4767 = vunpack.c.l.b16 %v3673
    %v4768 = vunpack.c.h.b16 %v3673
    %v4769 = vunpack.c.l.b16 %v3674
    %v4770 = vunpack.c.h.b16 %v3674
    %v4771 = vunpack.c.l.b16 %v3675
    %v4772 = vunpack.c.h.b16 %v3675
    %v4773 = vunpack.c.l.b16 %v3676
    %v4774 = vunpack.c.h.b16 %v3676
    %v4775 = vunpack.c.l.b16 %v3677
    %v4776 = vunpack.c.h.b16 %v3677
    %v4777 = vunpack.c.l.b16 %v3678
    %v4778 = vunpack.c.h.b16 %v3678
    %v4779 = vunpack.c.l.b16 %v3679
    %v4780 = vunpack.c.h.b16 %v3679
    %v4781 = vunpack.c.l.b16 %v3680
    %v4782 = vunpack.c.h.b16 %v3680
    %v4783 = vunpack.c.l.b16 %v3681
    %v4784 = vunpack.c.h.b16 %v3681
    %v4785 = vunpack.c.l.b16 %v3682
    %v4786 = vunpack.c.h.b16 %v3682
    %v4787 = vunpack.c.l.b16 %v3683
    %v4788 = vunpack.c.h.b16 %v3683
    %v4789 = vunpack.c.l.b16 %v3684
    %v4790 = vunpack.c.h.b16 %v3684
    %v4791 = vunpack.c.l.b16 %v3685
    %v4792 = vunpack.c.h.b16 %v3685
    %v4793 = vunpack.c.l.b16 %v3686
    %v4794 = vunpack.c.h.b16 %v3686
    %v4795 = vunpack.c.l.b16 %v3687
    %v4796 = vunpack.c.h.b16 %v3687
    %v4797 = vunpack.c.l.b16 %v3688
    %v4798 = vunpack.c.h.b16 %v3688
    %v4799 = vunpack.c.l.b16 %v3689
    %v4800 = vunpack.c.h.b16 %v3689
    %v4801 = vunpack.c.l.b16 %v3690
    %v4802 = vunpack.c.h.b16 %v3690
    %v4803 = vunpack.c.l.b16 %v3691
    %v4804 = vunpack.c.h.b16 %v3691
    %v4805 = vunpack.c.l.b16 %v3692
    %v4806 = vunpack.c.h.b16 %v3692
    %v4807 = vunpack.c.l.b16 %v3693
    %v4808 = vunpack.c.h.b16 %v3693
    %v4809 = vunpack.c.l.b16 %v3694
    %v4810 = vunpack.c.h.b16 %v3694
    %v4811 = vunpack.c.l.b16 %v3695
    %v4812 = vunpack.c.h.b16 %v3695
    %v4813 = vunpack.c.l.b16 %v3696
    %v4814 = vunpack.c.h.b16 %v3696
    %v4815 = vunpack.c.l.b16 %v3697
    %v4816 = vunpack.c.h.b16 %v3697
    %v4817 = vunpack.c.l.b16 %v3698
    %v4818 = vunpack.c.h.b16 %v3698
    %v4819 = vunpack.c.l.b16 %v3699
    %v4820 = vunpack.c.h.b16 %v3699
    %v4821 = vunpack.c.l.b16 %v3700
    %v4822 = vunpack.c.h.b16 %v3700
    %v4823 = vunpack.c.l.b16 %v3701
    %v4824 = vunpack.c.h.b16 %v3701
    %v4825 = vunpack.c.l.b16 %v3702
    %v4826 = vunpack.c.h.b16 %v3702
    %v4827 = vunpack.c.l.b16 %v3703
    %v4828 = vunpack.c.h.b16 %v3703
    %v4829 = vunpack.c.l.b16 %v3704
    %v4830 = vunpack.c.h.b16 %v3704
    %v4831 = vunpack.c.l.b16 %v3705
    %v4832 = vunpack.c.h.b16 %v3705
    %v4833 = vunpack.c.l.b16 %v3706
    %v4834 = vunpack.c.h.b16 %v3706
    %v4835 = vunpack.c.l.b16 %v3707
    %v4836 = vunpack.c.h.b16 %v3707
    %v4837 = vunpack.c.l.b16 %v3708
    %v4838 = vunpack.c.h.b16 %v3708
    %v4839 = vunpack.c.l.b16 %v3709
    %v4840 = vunpack.c.h.b16 %v3709
    %v4841 = vunpack.c.l.b16 %v3710
    %v4842 = vunpack.c.h.b16 %v3710
    %v4843 = vunpack.c.l.b16 %v3711
    %v4844 = vunpack.c.h.b16 %v3711
    %v4845 = vunpack.c.l.b16 %v3712
    %v4846 = vunpack.c.h.b16 %v3712
    %v4847 = vunpack.c.l.b16 %v3713
    %v4848 = vunpack.c.h.b16 %v3713
    %v4849 = vunpack.c.l.b16 %v3714
    %v4850 = vunpack.c.h.b16 %v3714
    %v4851 = vunpack.c.l.b16 %v3715
    %v4852 = vunpack.c.h.b16 %v3715
    %v4853 = vunpack.c.l.b16 %v3716
    %v4854 = vunpack.c.h.b16 %v3716
    %v4855 = vunpack.c.l.b16 %v3717
    %v4856 = vunpack.c.h.b16 %v3717
    %v4857 = vunpack.c.l.b16 %v3718
    %v4858 = vunpack.c.h.b16 %v3718
    %v4859 = vunpack.c.l.b16 %v3719
    %v4860 = vunpack.c.h.b16 %v3719
    %v4861 = vunpack.c.l.b16 %v3720
    %v4862 = vunpack.c.h.b16 %v3720
    %v4863 = vunpack.c.l.b16 %v3721
    %v4864 = vunpack.c.h.b16 %v3721
    %v4865 = vunpack.c.l.b16 %v3722
    %v4866 = vunpack.c.h.b16 %v3722
    %v4867 = vunpack.c.l.b16 %v3723
    %v4868 = vunpack.c.h.b16 %v3723
    %v4869 = vunpack.c.l.b16 %v3724
    %v4870 = vunpack.c.h.b16 %v3724
    %v4871 = vunpack.c.l.b16 %v3725
    %v4872 = vunpack.c.h.b16 %v3725
    %v4873 = vunpack.c.l.b16 %v3726
    %v4874 = vunpack.c.h.b16 %v3726
    %v4875 = vunpack.c.l.b16 %v3727
    %v4876 = vunpack.c.h.b16 %v3727
    %v4877 = vunpack.c.l.b16 %v3728
    %v4878 = vunpack.c.h.b16 %v3728
    %v4879 = vunpack.c.l.b16 %v3729
    %v4880 = vunpack.c.h.b16 %v3729
    %v4881 = vunpack.c.l.b16 %v3730
    %v4882 = vunpack.c.h.b16 %v3730
    %v4883 = vunpack.c.l.b16 %v3731
    %v4884 = vunpack.c.h.b16 %v3731
    %v4885 = vunpack.c.l.b16 %v3732
    %v4886 = vunpack.c.h.b16 %v3732
    %v4887 = vunpack.c.l.b16 %v3733
    %v4888 = vunpack.c.h.b16 %v3733
    %v4889 = vunpack.c.l.b16 %v3734
    %v4890 = vunpack.c.h.b16 %v3734
    %v4891 = vunpack.c.l.b16 %v3735
    %v4892 = vunpack.c.h.b16 %v3735
    %v4893 = vunpack.c.l.b16 %v3736
    %v4894 = vunpack.c.h.b16 %v3736
    %v4895 = vunpack.c.l.b16 %v3737
    %v4896 = vunpack.c.h.b16 %v3737
    %v4897 = vunpack.c.l.b16 %v3738
    %v4898 = vunpack.c.h.b16 %v3738
    %v4899 = vunpack.c.l.b16 %v3739
    %v4900 = vunpack.c.h.b16 %v3739
    %v4901 = vunpack.c.l.b16 %v3740
    %v4902 = vunpack.c.h.b16 %v3740
    %v4903 = vunpack.c.l.b16 %v3741
    %v4904 = vunpack.c.h.b16 %v3741
    %v4905 = vunpack.c.l.b16 %v3742
    %v4906 = vunpack.c.h.b16 %v3742
    %v4907 = vunpack.c.l.b16 %v3743
    %v4908 = vunpack.c.h.b16 %v3743
    %v4909 = vunpack.c.l.b16 %v3744
    %v4910 = vunpack.c.h.b16 %v3744
    %v4911 = vunpack.c.l.b16 %v3745
    %v4912 = vunpack.c.h.b16 %v3745
    %v4913 = vunpack.c.l.b16 %v3746
    %v4914 = vunpack.c.h.b16 %v3746
    %v4915 = vunpack.c.l.b16 %v3747
    %v4916 = vunpack.c.h.b16 %v3747
    %v4917 = vunpack.c.l.b16 %v3748
    %v4918 = vunpack.c.h.b16 %v3748
    %v4919 = vunpack.c.l.b16 %v3749
    %v4920 = vunpack.c.h.b16 %v3749
    %v4921 = vunpack.c.l.b16 %v3750
    %v4922 = vunpack.c.h.b16 %v3750
    %v4923 = vunpack.c.l.b16 %v3751
    %v4924 = vunpack.c.h.b16 %v3751
    %v4925 = vunpack.c.l.b16 %v3752
    %v4926 = vunpack.c.h.b16 %v3752
    %v4927 = vunpack.c.l.b16 %v3753
    %v4928 = vunpack.c.h.b16 %v3753
    %v4929 = vunpack.c.l.b16 %v3754
    %v4930 = vunpack.c.h.b16 %v3754
    %v4931 = vunpack.c.l.b16 %v3755
    %v4932 = vunpack.c.h.b16 %v3755
    %v4933 = vunpack.c.l.b16 %v3756
    %v4934 = vunpack.c.h.b16 %v3756
    %v4935 = vunpack.c.l.b16 %v3757
    %v4936 = vunpack.c.h.b16 %v3757
    %v4937 = vunpack.c.l.b16 %v3758
    %v4938 = vunpack.c.h.b16 %v3758
    %v4939 = vunpack.c.l.b16 %v3759
    %v4940 = vunpack.c.h.b16 %v3759
    %v4941 = vunpack.c.l.b16 %v3760
    %v4942 = vunpack.c.h.b16 %v3760
    %v4943 = vunpack.c.l.b16 %v3761
    %v4944 = vunpack.c.h.b16 %v3761
    %v4945 = vunpack.c.l.b16 %v3762
    %v4946 = vunpack.c.h.b16 %v3762
    %v4947 = vunpack.c.l.b16 %v3763
    %v4948 = vunpack.c.h.b16 %v3763
    %v4949 = vunpack.c.l.b16 %v3764
    %v4950 = vunpack.c.h.b16 %v3764
    %v4951 = vunpack.c.l.b16 %v3765
    %v4952 = vunpack.c.h.b16 %v3765
    %v4953 = vunpack.c.l.b16 %v3766
    %v4954 = vunpack.c.h.b16 %v3766
    %v4955 = vunpack.c.l.b16 %v3767
    %v4956 = vunpack.c.h.b16 %v3767
    %v4957 = vunpack.c.l.b16 %v3768
    %v4958 = vunpack.c.h.b16 %v3768
    %v4959 = vunpack.c.l.b16 %v3769
    %v4960 = vunpack.c.h.b16 %v3769
    %v4961 = vpack.c.b16 %v4199, %v4193
    %v4962 = vpack.c.b16 %v4200, %v4194
    %v4963 = vpack.c.b16 %v4201, %v4195
    %v4964 = vpack.c.b16 %v4202, %v4196
    %v4965 = vpack.c.b16 %v4203, %v4197
    %v4966 = vpack.c.b16 %v4204, %v4198
    %v4967 = vpack.c.b16 %v4211, %v4205
    %v4968 = vpack.c.b16 %v4212, %v4206
    %v4969 = vpack.c.b16 %v4213, %v4207
    %v4970 = vpack.c.b16 %v4214, %v4208
    %v4971 = vpack.c.b16 %v4215, %v4209
    %v4972 = vpack.c.b16 %v4216, %v4210
    %v4973 = vpack.c.b16 %v4223, %v4217
    %v4974 = vpack.c.b16 %v4224, %v4218
    %v4975 = vpack.c.b16 %v4225, %v4219
    %v4976 = vpack.c.b16 %v4226, %v4220
    %v4977 = vpack.c.b16 %v4227, %v4221
    %v4978 = vpack.c.b16 %v4228, %v4222
    %v4979 = vpack.c.b16 %v4235, %v4229
    %v4980 = vpack.c.b16 %v4236, %v4230
    %v4981 = vpack.c.b16 %v4237, %v4231
    %v4982 = vpack.c.b16 %v4238, %v4232
    %v4983 = vpack.c.b16 %v4239, %v4233
    %v4984 = vpack.c.b16 %v4240, %v4234
    %v4985 = vpack.c.b16 %v4247, %v4241
    %v4986 = vpack.c.b16 %v4248, %v4242
    %v4987 = vpack.c.b16 %v4249, %v4243
    %v4988 = vpack.c.b16 %v4250, %v4244
    %v4989 = vpack.c.b16 %v4251, %v4245
    %v4990 = vpack.c.b16 %v4252, %v4246
    %v4991 = vpack.c.b16 %v4259, %v4253
    %v4992 = vpack.c.b16 %v4260, %v4254
    %v4993 = vpack.c.b16 %v4261, %v4255
    %v4994 = vpack.c.b16 %v4262, %v4256
    %v4995 = vpack.c.b16 %v4263, %v4257
    %v4996 = vpack.c.b16 %v4264, %v4258
    %v4997 = vpack.c.b16 %v4271, %v4265
    %v4998 = vpack.c.b16 %v4272, %v4266
    %v4999 = vpack.c.b16 %v4273, %v4267
    %v5000 = vpack.c.b16 %v4274, %v4268
    %v5001 = vpack.c.b16 %v4275, %v4269
    %v5002 = vpack.c.b16 %v4276, %v4270
    %v5003 = vpack.c.b16 %v4283, %v4277
    %v5004 = vpack.c.b16 %v4284, %v4278
    %v5005 = vpack.c.b16 %v4285, %v4279
    %v5006 = vpack.c.b16 %v4286, %v4280
    %v5007 = vpack.c.b16 %v4287, %v4281
    %v5008 = vpack.c.b16 %v4288, %v4282
    %v5009 = vpack.c.b16 %v4295, %v4289
    %v5010 = vpack.c.b16 %v4296, %v4290
    %v5011 = vpack.c.b16 %v4297, %v4291
    %v5012 = vpack.c.b16 %v4298, %v4292
    %v5013 = vpack.c.b16 %v4299, %v4293
    %v5014 = vpack.c.b16 %v4300, %v4294
    %v5015 = vpack.c.b16 %v4307, %v4301
    %v5016 = vpack.c.b16 %v4308, %v4302
    %v5017 = vpack.c.b16 %v4309, %v4303
    %v5018 = vpack.c.b16 %v4310, %v4304
    %v5019 = vpack.c.b16 %v4311, %v4305
    %v5020 = vpack.c.b16 %v4312, %v4306
    %v5021 = vpack.c.b16 %v4319, %v4313
    %v5022 = vpack.c.b16 %v4320, %v4314
    %v5023 = vpack.c.b16 %v4321, %v4315
    %v5024 = vpack.c.b16 %v4322, %v4316
    %v5025 = vpack.c.b16 %v4323, %v4317
    %v5026 = vpack.c.b16 %v4324, %v4318
    %v5027 = vpack.c.b16 %v4331, %v4325
    %v5028 = vpack.c.b16 %v4332, %v4326
    %v5029 = vpack.c.b16 %v4333, %v4327
    %v5030 = vpack.c.b16 %v4334, %v4328
    %v5031 = vpack.c.b16 %v4335, %v4329
    %v5032 = vpack.c.b16 %v4336, %v4330
    %v5033 = vpack.c.b16 %v4343, %v4337
    %v5034 = vpack.c.b16 %v4344, %v4338
    %v5035 = vpack.c.b16 %v4345, %v4339
    %v5036 = vpack.c.b16 %v4346, %v4340
    %v5037 = vpack.c.b16 %v4347, %v4341
    %v5038 = vpack.c.b16 %v4348, %v4342
    %v5039 = vpack.c.b16 %v4355, %v4349
    %v5040 = vpack.c.b16 %v4356, %v4350
    %v5041 = vpack.c.b16 %v4357, %v4351
    %v5042 = vpack.c.b16 %v4358, %v4352
    %v5043 = vpack.c.b16 %v4359, %v4353
    %v5044 = vpack.c.b16 %v4360, %v4354
    %v5045 = vpack.c.b16 %v4367, %v4361
    %v5046 = vpack.c.b16 %v4368, %v4362
    %v5047 = vpack.c.b16 %v4369, %v4363
    %v5048 = vpack.c.b16 %v4370, %v4364
    %v5049 = vpack.c.b16 %v4371, %v4365
    %v5050 = vpack.c.b16 %v4372, %v4366
    %v5051 = vpack.c.b16 %v4379, %v4373
    %v5052 = vpack.c.b16 %v4380, %v4374
    %v5053 = vpack.c.b16 %v4381, %v4375
    %v5054 = vpack.c.b16 %v4382, %v4376
    %v5055 = vpack.c.b16 %v4383, %v4377
    %v5056 = vpack.c.b16 %v4384, %v4378
    %v5057 = vpack.c.b16 %v4391, %v4385
    %v5058 = vpack.c.b16 %v4392, %v4386
    %v5059 = vpack.c.b16 %v4393, %v4387
    %v5060 = vpack.c.b16 %v4394, %v4388
    %v5061 = vpack.c.b16 %v4395, %v4389
    %v5062 = vpack.c.b16 %v4396, %v4390
    %v5063 = vpack.c.b16 %v4403, %v4397
    %v5064 = vpack.c.b16 %v4404, %v4398
    %v5065 = vpack.c.b16 %v4405, %v4399
    %v5066 = vpack.c.b16 %v4406, %v4400
    %v5067 = vpack.c.b16 %v4407, %v4401
    %v5068 = vpack.c.b16 %v4408, %v4402
    %v5069 = vpack.c.b16 %v4415, %v4409
    %v5070 = vpack.c.b16 %v4416, %v4410
    %v5071 = vpack.c.b16 %v4417, %v4411
    %v5072 = vpack.c.b16 %v4418, %v4412
    %v5073 = vpack.c.b16 %v4419, %v4413
    %v5074 = vpack.c.b16 %v4420, %v4414
    %v5075 = vpack.c.b16 %v4427, %v4421
    %v5076 = vpack.c.b16 %v4428, %v4422
    %v5077 = vpack.c.b16 %v4429, %v4423
    %v5078 = vpack.c.b16 %v4430, %v4424
    %v5079 = vpack.c.b16 %v4431, %v4425
    %v5080 = vpack.c.b16 %v4432, %v4426
    %v5081 = vpack.c.b16 %v4439, %v4433
    %v5082 = vpack.c.b16 %v4440, %v4434
    %v5083 = vpack.c.b16 %v4441, %v4435
    %v5084 = vpack.c.b16 %v4442, %v4436
    %v5085 = vpack.c.b16 %v4443, %v4437
    %v5086 = vpack.c.b16 %v4444, %v4438
    %v5087 = vpack.c.b16 %v4451, %v4445
    %v5088 = vpack.c.b16 %v4452, %v4446
    %v5089 = vpack.c.b16 %v4453, %v4447
    %v5090 = vpack.c.b16 %v4454, %v4448
    %v5091 = vpack.c.b16 %v4455, %v4449
    %v5092 = vpack.c.b16 %v4456, %v4450
    %v5093 = vpack.c.b16 %v4463, %v4457
    %v5094 = vpack.c.b16 %v4464, %v4458
    %v5095 = vpack.c.b16 %v4465, %v4459
    %v5096 = vpack.c.b16 %v4466, %v4460
    %v5097 = vpack.c.b16 %v4467, %v4461
    %v5098 = vpack.c.b16 %v4468, %v4462
    %v5099 = vpack.c.b16 %v4475, %v4469
    %v5100 = vpack.c.b16 %v4476, %v4470
    %v5101 = vpack.c.b16 %v4477, %v4471
    %v5102 = vpack.c.b16 %v4478, %v4472
    %v5103 = vpack.c.b16 %v4479, %v4473
    %v5104 = vpack.c.b16 %v4480, %v4474
    %v5105 = vpack.c.b16 %v4487, %v4481
    %v5106 = vpack.c.b16 %v4488, %v4482
    %v5107 = vpack.c.b16 %v4489, %v4483
    %v5108 = vpack.c.b16 %v4490, %v4484
    %v5109 = vpack.c.b16 %v4491, %v4485
    %v5110 = vpack.c.b16 %v4492, %v4486
    %v5111 = vpack.c.b16 %v4499, %v4493
    %v5112 = vpack.c.b16 %v4500, %v4494
    %v5113 = vpack.c.b16 %v4501, %v4495
    %v5114 = vpack.c.b16 %v4502, %v4496
    %v5115 = vpack.c.b16 %v4503, %v4497
    %v5116 = vpack.c.b16 %v4504, %v4498
    %v5117 = vpack.c.b16 %v4511, %v4505
    %v5118 = vpack.c.b16 %v4512, %v4506
    %v5119 = vpack.c.b16 %v4513, %v4507
    %v5120 = vpack.c.b16 %v4514, %v4508
    %v5121 = vpack.c.b16 %v4515, %v4509
    %v5122 = vpack.c.b16 %v4516, %v4510
    %v5123 = vpack.c.b16 %v4523, %v4517
    %v5124 = vpack.c.b16 %v4524, %v4518
    %v5125 = vpack.c.b16 %v4525, %v4519
    %v5126 = vpack.c.b16 %v4526, %v4520
    %v5127 = vpack.c.b16 %v4527, %v4521
    %v5128 = vpack.c.b16 %v4528, %v4522
    %v5129 = vpack.c.b16 %v4535, %v4529
    %v5130 = vpack.c.b16 %v4536, %v4530
    %v5131 = vpack.c.b16 %v4537, %v4531
    %v5132 = vpack.c.b16 %v4538, %v4532
    %v5133 = vpack.c.b16 %v4539, %v4533
    %v5134 = vpack.c.b16 %v4540, %v4534
    %v5135 = vpack.c.b16 %v4547, %v4541
    %v5136 = vpack.c.b16 %v4548, %v4542
    %v5137 = vpack.c.b16 %v4549, %v4543
    %v5138 = vpack.c.b16 %v4550, %v4544
    %v5139 = vpack.c.b16 %v4551, %v4545
    %v5140 = vpack.c.b16 %v4552, %v4546
    %v5141 = vpack.c.b16 %v4559, %v4553
    %v5142 = vpack.c.b16 %v4560, %v4554
    %v5143 = vpack.c.b16 %v4561, %v4555
    %v5144 = vpack.c.b16 %v4562, %v4556
    %v5145 = vpack.c.b16 %v4563, %v4557
    %v5146 = vpack.c.b16 %v4564, %v4558
    %v5147 = vpack.c.b16 %v4571, %v4565
    %v5148 = vpack.c.b16 %v4572, %v4566
    %v5149 = vpack.c.b16 %v4573, %v4567
    %v5150 = vpack.c.b16 %v4574, %v4568
    %v5151 = vpack.c.b16 %v4575, %v4569
    %v5152 = vpack.c.b16 %v4576, %v4570
    %v5153 = vpack.c.b16 %v4583, %v4577
    %v5154 = vpack.c.b16 %v4584, %v4578
    %v5155 = vpack.c.b16 %v4585, %v4579
    %v5156 = vpack.c.b16 %v4586, %v4580
    %v5157 = vpack.c.b16 %v4587, %v4581
    %v5158 = vpack.c.b16 %v4588, %v4582
    %v5159 = vpack.c.b16 %v4595, %v4589
    %v5160 = vpack.c.b16 %v4596, %v4590
    %v5161 = vpack.c.b16 %v4597, %v4591
    %v5162 = vpack.c.b16 %v4598, %v4592
    %v5163 = vpack.c.b16 %v4599, %v4593
    %v5164 = vpack.c.b16 %v4600, %v4594
    %v5165 = vpack.c.b16 %v4607, %v4601
    %v5166 = vpack.c.b16 %v4608, %v4602
    %v5167 = vpack.c.b16 %v4609, %v4603
    %v5168 = vpack.c.b16 %v4610, %v4604
    %v5169 = vpack.c.b16 %v4611, %v4605
    %v5170 = vpack.c.b16 %v4612, %v4606
    %v5171 = vpack.c.b16 %v4619, %v4613
    %v5172 = vpack.c.b16 %v4620, %v4614
    %v5173 = vpack.c.b16 %v4621, %v4615
    %v5174 = vpack.c.b16 %v4622, %v4616
    %v5175 = vpack.c.b16 %v4623, %v4617
    %v5176 = vpack.c.b16 %v4624, %v4618
    %v5177 = vpack.c.b16 %v4631, %v4625
    %v5178 = vpack.c.b16 %v4632, %v4626
    %v5179 = vpack.c.b16 %v4633, %v4627
    %v5180 = vpack.c.b16 %v4634, %v4628
    %v5181 = vpack.c.b16 %v4635, %v4629
    %v5182 = vpack.c.b16 %v4636, %v4630
    %v5183 = vpack.c.b16 %v4643, %v4637
    %v5184 = vpack.c.b16 %v4644, %v4638
    %v5185 = vpack.c.b16 %v4645, %v4639
    %v5186 = vpack.c.b16 %v4646, %v4640
    %v5187 = vpack.c.b16 %v4647, %v4641
    %v5188 = vpack.c.b16 %v4648, %v4642
    %v5189 = vpack.c.b16 %v4655, %v4649
    %v5190 = vpack.c.b16 %v4656, %v4650
    %v5191 = vpack.c.b16 %v4657, %v4651
    %v5192 = vpack.c.b16 %v4658, %v4652
    %v5193 = vpack.c.b16 %v4659, %v4653
    %v5194 = vpack.c.b16 %v4660, %v4654
    %v5195 = vpack.c.b16 %v4667, %v4661
    %v5196 = vpack.c.b16 %v4668, %v4662
    %v5197 = vpack.c.b16 %v4669, %v4663
    %v5198 = vpack.c.b16 %v4670, %v4664
    %v5199 = vpack.c.b16 %v4671, %v4665
    %v5200 = vpack.c.b16 %v4672, %v4666
    %v5201 = vpack.c.b16 %v4679, %v4673
    %v5202 = vpack.c.b16 %v4680, %v4674
    %v5203 = vpack.c.b16 %v4681, %v4675
    %v5204 = vpack.c.b16 %v4682, %v4676
    %v5205 = vpack.c.b16 %v4683, %v4677
    %v5206 = vpack.c.b16 %v4684, %v4678
    %v5207 = vpack.c.b16 %v4691, %v4685
    %v5208 = vpack.c.b16 %v4692, %v4686
    %v5209 = vpack.c.b16 %v4693, %v4687
    %v5210 = vpack.c.b16 %v4694, %v4688
    %v5211 = vpack.c.b16 %v4695, %v4689
    %v5212 = vpack.c.b16 %v4696, %v4690
    %v5213 = vpack.c.b16 %v4703, %v4697
    %v5214 = vpack.c.b16 %v4704, %v4698
    %v5215 = vpack.c.b16 %v4705, %v4699
    %v5216 = vpack.c.b16 %v4706, %v4700
    %v5217 = vpack.c.b16 %v4707, %v4701
    %v5218 = vpack.c.b16 %v4708, %v4702
    %v5219 = vpack.c.b16 %v4715, %v4709
    %v5220 = vpack.c.b16 %v4716, %v4710
    %v5221 = vpack.c.b16 %v4717, %v4711
    %v5222 = vpack.c.b16 %v4718, %v4712
    %v5223 = vpack.c.b16 %v4719, %v4713
    %v5224 = vpack.c.b16 %v4720, %v4714
    %v5225 = vpack.c.b16 %v4727, %v4721
    %v5226 = vpack.c.b16 %v4728, %v4722
    %v5227 = vpack.c.b16 %v4729, %v4723
    %v5228 = vpack.c.b16 %v4730, %v4724
    %v5229 = vpack.c.b16 %v4731, %v4725
    %v5230 = vpack.c.b16 %v4732, %v4726
    %v5231 = vpack.c.b16 %v4739, %v4733
    %v5232 = vpack.c.b16 %v4740, %v4734
    %v5233 = vpack.c.b16 %v4741, %v4735
    %v5234 = vpack.c.b16 %v4742, %v4736
    %v5235 = vpack.c.b16 %v4743, %v4737
    %v5236 = vpack.c.b16 %v4744, %v4738
    %v5237 = vpack.c.b16 %v4751, %v4745
    %v5238 = vpack.c.b16 %v4752, %v4746
    %v5239 = vpack.c.b16 %v4753, %v4747
    %v5240 = vpack.c.b16 %v4754, %v4748
    %v5241 = vpack.c.b16 %v4755, %v4749
    %v5242 = vpack.c.b16 %v4756, %v4750
    %v5243 = vpack.c.b16 %v4763, %v4757
    %v5244 = vpack.c.b16 %v4764, %v4758
    %v5245 = vpack.c.b16 %v4765, %v4759
    %v5246 = vpack.c.b16 %v4766, %v4760
    %v5247 = vpack.c.b16 %v4767, %v4761
    %v5248 = vpack.c.b16 %v4768, %v4762
    %v5249 = vpack.c.b16 %v4775, %v4769
    %v5250 = vpack.c.b16 %v4776, %v4770
    %v5251 = vpack.c.b16 %v4777, %v4771
    %v5252 = vpack.c.b16 %v4778, %v4772
    %v5253 = vpack.c.b16 %v4779, %v4773
    %v5254 = vpack.c.b16 %v4780, %v4774
    %v5255 = vpack.c.b16 %v4787, %v4781
    %v5256 = vpack.c.b16 %v4788, %v4782
    %v5257 = vpack.c.b16 %v4789, %v4783
    %v5258 = vpack.c.b16 %v4790, %v4784
    %v5259 = vpack.c.b16 %v4791, %v4785
    %v5260 = vpack.c.b16 %v4792, %v4786
    %v5261 = vpack.c.b16 %v4799, %v4793
    %v5262 = vpack.c.b16 %v4800, %v4794
    %v5263 = vpack.c.b16 %v4801, %v4795
    %v5264 = vpack.c.b16 %v4802, %v4796
    %v5265 = vpack.c.b16 %v4803, %v4797
    %v5266 = vpack.c.b16 %v4804, %v4798
    %v5267 = vpack.c.b16 %v4811, %v4805
    %v5268 = vpack.c.b16 %v4812, %v4806
    %v5269 = vpack.c.b16 %v4813, %v4807
    %v5270 = vpack.c.b16 %v4814, %v4808
    %v5271 = vpack.c.b16 %v4815, %v4809
    %v5272 = vpack.c.b16 %v4816, %v4810
    %v5273 = vpack.c.b16 %v4823, %v4817
    %v5274 = vpack.c.b16 %v4824, %v4818
    %v5275 = vpack.c.b16 %v4825, %v4819
    %v5276 = vpack.c.b16 %v4826, %v4820
    %v5277 = vpack.c.b16 %v4827, %v4821
    %v5278 = vpack.c.b16 %v4828, %v4822
    %v5279 = vpack.c.b16 %v4835, %v4829
    %v5280 = vpack.c.b16 %v4836, %v4830
    %v5281 = vpack.c.b16 %v4837, %v4831
    %v5282 = vpack.c.b16 %v4838, %v4832
    %v5283 = vpack.c.b16 %v4839, %v4833
    %v5284 = vpack.c.b16 %v4840, %v4834
    %v5285 = vpack.c.b16 %v4847, %v4841
    %v5286 = vpack.c.b16 %v4848, %v4842
    %v5287 = vpack.c.b16 %v4849, %v4843
    %v5288 = vpack.c.b16 %v4850, %v4844
    %v5289 = vpack.c.b16 %v4851, %v4845
    %v5290 = vpack.c.b16 %v4852, %v4846
    %v5291 = vpack.c.b16 %v4859, %v4853
    %v5292 = vpack.c.b16 %v4860, %v4854
    %v5293 = vpack.c.b16 %v4861, %v4855
    %v5294 = vpack.c.b16 %v4862, %v4856
    %v5295 = vpack.c.b16 %v4863, %v4857
    %v5296 = vpack.c.b16 %v4864, %v4858
    %v5297 = vpack.c.b16 %v4871, %v4865
    %v5298 = vpack.c.b16 %v4872, %v4866
    %v5299 = vpack.c.b16 %v4873, %v4867
    %v5300 = vpack.c.b16 %v4874, %v4868
    %v5301 = vpack.c.b16 %v4875, %v4869
    %v5302 = vpack.c.b16 %v4876, %v4870
    %v5303 = vpack.c.b16 %v4883, %v4877
    %v5304 = vpack.c.b16 %v4884, %v4878
    %v5305 = vpack.c.b16 %v4885, %v4879
    %v5306 = vpack.c.b16 %v4886, %v4880
    %v5307 = vpack.c.b16 %v4887, %v4881
    %v5308 = vpack.c.b16 %v4888, %v4882
    %v5309 = vpack.c.b16 %v4895, %v4889
    %v5310 = vpack.c.b16 %v4896, %v4890
    %v5311 = vpack.c.b16 %v4897, %v4891
    %v5312 = vpack.c.b16 %v4898, %v4892
    %v5313 = vpack.c.b16 %v4899, %v4893
    %v5314 = vpack.c.b16 %v4900, %v4894
    %v5315 = vpack.c.b16 %v4907, %v4901
    %v5316 = vpack.c.b16 %v4908, %v4902
    %v5317 = vpack.c.b16 %v4909, %v4903
    %v5318 = vpack.c.b16 %v4910, %v4904
    %v5319 = vpack.c.b16 %v4911, %v4905
    %v5320 = vpack.c.b16 %v4912, %v4906
    %v5321 = vpack.c.b16 %v4919, %v4913
    %v5322 = vpack.c.b16 %v4920, %v4914
    %v5323 = vpack.c.b16 %v4921, %v4915
    %v5324 = vpack.c.b16 %v4922, %v4916
    %v5325 = vpack.c.b16 %v4923, %v4917
    %v5326 = vpack.c.b16 %v4924, %v4918
    %v5327 = vpack.c.b16 %v4931, %v4925
    %v5328 = vpack.c.b16 %v4932, %v4926
    %v5329 = vpack.c.b16 %v4933, %v4927
    %v5330 = vpack.c.b16 %v4934, %v4928
    %v5331 = vpack.c.b16 %v4935, %v4929
    %v5332 = vpack.c.b16 %v4936, %v4930
    %v5333 = vpack.c.b16 %v4943, %v4937
    %v5334 = vpack.c.b16 %v4944, %v4938
    %v5335 = vpack.c.b16 %v4945, %v4939
    %v5336 = vpack.c.b16 %v4946, %v4940
    %v5337 = vpack.c.b16 %v4947, %v4941
    %v5338 = vpack.c.b16 %v4948, %v4942
    %v5339 = vpack.c.b16 %v4955, %v4949
    %v5340 = vpack.c.b16 %v4956, %v4950
    %v5341 = vpack.c.b16 %v4957, %v4951
    %v5342 = vpack.c.b16 %v4958, %v4952
    %v5343 = vpack.c.b16 %v4959, %v4953
    %v5344 = vpack.c.b16 %v4960, %v4954
    %5729 = vmatprep.subr.bf16.mxu0 %v5004
    %5730 = vmatpush1.bf16.msra.mxu0 %v5003
    %5731 = vmatprep.subr.bf16.mxu0 %v4998
    %5732 = vmatpush1.bf16.msra.mxu0 %v4997
    %5733 = vmatprep.subr.bf16.mxu0 %v4992
    %5734 = vmatpush1.bf16.msra.mxu0 %v4991
    %5735 = vmatprep.subr.bf16.mxu0 %v4986
    %5736 = vmatpush1.bf16.msra.mxu0 %v4985
    %5737 = vmatprep.subr.bf16.mxu0 %v4980
    %5738 = vmatpush1.bf16.msra.mxu0 %v4979
    %5739 = vmatprep.subr.bf16.mxu0 %v4974
    %5740 = vmatpush1.bf16.msra.mxu0 %v4973
    %5741 = vmatprep.subr.bf16.mxu0 %v4968
    %5742 = vmatpush1.bf16.msra.mxu0 %v4967
    %5743 = vmatprep.subr.bf16.mxu0 %v4962
    %5744 = vmatpush1.bf16.msra.mxu0 %v4961
    %5745 = vmatprep.subr.bf16.mxu0 %v5052
    %5746 = vmatpush2.bf16.msra.mxu0 %v5051
    %5747 = vmatprep.subr.bf16.mxu0 %v5046
    %5748 = vmatpush2.bf16.msra.mxu0 %v5045
    %5749 = vmatprep.subr.bf16.mxu0 %v5040
    %5750 = vmatpush2.bf16.msra.mxu0 %v5039
    %5751 = vmatprep.subr.bf16.mxu0 %v5034
    %5752 = vmatpush2.bf16.msra.mxu0 %v5033
    %5753 = vmatprep.subr.bf16.mxu0 %v5028
    %5754 = vmatpush2.bf16.msra.mxu0 %v5027
    %5755 = vmatprep.subr.bf16.mxu0 %v5022
    %5756 = vmatpush2.bf16.msra.mxu0 %v5021
    %5757 = vmatprep.subr.bf16.mxu0 %v5016
    %5758 = vmatpush2.bf16.msra.mxu0 %v5015
    %5759 = vmatprep.subr.bf16.mxu0 %v5010
    %5760 = vmatpush2.bf16.msra.mxu0 %v5009
    %5761 = vmatprep.mubr.bf16.mxu0 %v3771
    %5762 = vmatmul.mubr.bf16.gmra.mxu0 %v3770
    %v5763 = vpop.f32.mrf.mxu0
    %v5764 = vadd.f32 %v3782, %v5763
    %v5765 = vpop.f32.mrf.mxu0
    %v5766 = vadd.f32 %v3786, %v5765
    %v5767 = vpop.f32.mrf.mxu0
    %v5768 = vpop.f32.mrf.mxu0
    %5769 = vdwg.mxu0
    %5770 = vmatprep.subr.bf16.mxu0 %v5100
    %5771 = vmatpush1.bf16.msra.mxu0 %v5099
    %5772 = vmatprep.subr.bf16.mxu0 %v5094
    %5773 = vmatpush1.bf16.msra.mxu0 %v5093
    %5774 = vmatprep.subr.bf16.mxu0 %v5088
    %5775 = vmatpush1.bf16.msra.mxu0 %v5087
    %5776 = vmatprep.subr.bf16.mxu0 %v5082
    %5777 = vmatpush1.bf16.msra.mxu0 %v5081
    %5778 = vmatprep.subr.bf16.mxu0 %v5076
    %5779 = vmatpush1.bf16.msra.mxu0 %v5075
    %5780 = vmatprep.subr.bf16.mxu0 %v5070
    %5781 = vmatpush1.bf16.msra.mxu0 %v5069
    %5782 = vmatprep.subr.bf16.mxu0 %v5064
    %5783 = vmatpush1.bf16.msra.mxu0 %v5063
    %5784 = vmatprep.subr.bf16.mxu0 %v5058
    %5785 = vmatpush1.bf16.msra.mxu0 %v5057
    %5786 = vmatprep.subr.bf16.mxu0 %v5148
    %5787 = vmatpush2.bf16.msra.mxu0 %v5147
    %5788 = vmatprep.subr.bf16.mxu0 %v5142
    %5789 = vmatpush2.bf16.msra.mxu0 %v5141
    %5790 = vmatprep.subr.bf16.mxu0 %v5136
    %5791 = vmatpush2.bf16.msra.mxu0 %v5135
    %5792 = vmatprep.subr.bf16.mxu0 %v5130
    %5793 = vmatpush2.bf16.msra.mxu0 %v5129
    %5794 = vmatprep.subr.bf16.mxu0 %v5124
    %5795 = vmatpush2.bf16.msra.mxu0 %v5123
    %5796 = vmatprep.subr.bf16.mxu0 %v5118
    %5797 = vmatpush2.bf16.msra.mxu0 %v5117
    %5798 = vmatprep.subr.bf16.mxu0 %v5112
    %5799 = vmatpush2.bf16.msra.mxu0 %v5111
    %5800 = vmatprep.subr.bf16.mxu0 %v5106
    %5801 = vmatpush2.bf16.msra.mxu0 %v5105
    %5802 = vmatprep.mubr.bf16.mxu0 %v3773
    %5803 = vmatmul.mubr.bf16.gmra.mxu0 %v3772
    %v5804 = vpop.f32.mrf.mxu0
    %v5805 = vadd.f32 %v5764, %v5804
    %v5806 = vpop.f32.mrf.mxu0
    %v5807 = vadd.f32 %v5766, %v5806
    %v5808 = vpop.f32.mrf.mxu0
    %v5809 = vpop.f32.mrf.mxu0
    %5810 = vdwg.mxu0
    %5811 = vmatprep.subr.bf16.mxu0 %v5196
    %5812 = vmatpush1.bf16.msra.mxu0 %v5195
    %5813 = vmatprep.subr.bf16.mxu0 %v5190
    %5814 = vmatpush1.bf16.msra.mxu0 %v5189
    %5815 = vmatprep.subr.bf16.mxu0 %v5184
    %5816 = vmatpush1.bf16.msra.mxu0 %v5183
    %5817 = vmatprep.subr.bf16.mxu0 %v5178
    %5818 = vmatpush1.bf16.msra.mxu0 %v5177
    %5819 = vmatprep.subr.bf16.mxu0 %v5172
    %5820 = vmatpush1.bf16.msra.mxu0 %v5171
    %5821 = vmatprep.subr.bf16.mxu0 %v5166
    %5822 = vmatpush1.bf16.msra.mxu0 %v5165
    %5823 = vmatprep.subr.bf16.mxu0 %v5160
    %5824 = vmatpush1.bf16.msra.mxu0 %v5159
    %5825 = vmatprep.subr.bf16.mxu0 %v5154
    %5826 = vmatpush1.bf16.msra.mxu0 %v5153
    %5827 = vmatprep.subr.bf16.mxu0 %v5244
    %5828 = vmatpush2.bf16.msra.mxu0 %v5243
    %5829 = vmatprep.subr.bf16.mxu0 %v5238
    %5830 = vmatpush2.bf16.msra.mxu0 %v5237
    %5831 = vmatprep.subr.bf16.mxu0 %v5232
    %5832 = vmatpush2.bf16.msra.mxu0 %v5231
    %5833 = vmatprep.subr.bf16.mxu0 %v5226
    %5834 = vmatpush2.bf16.msra.mxu0 %v5225
    %5835 = vmatprep.subr.bf16.mxu0 %v5220
    %5836 = vmatpush2.bf16.msra.mxu0 %v5219
    %5837 = vmatprep.subr.bf16.mxu0 %v5214
    %5838 = vmatpush2.bf16.msra.mxu0 %v5213
    %5839 = vmatprep.subr.bf16.mxu0 %v5208
    %5840 = vmatpush2.bf16.msra.mxu0 %v5207
    %5841 = vmatprep.subr.bf16.mxu0 %v5202
    %5842 = vmatpush2.bf16.msra.mxu0 %v5201
    %5843 = vmatprep.mubr.bf16.mxu0 %v3775
    %5844 = vmatmul.mubr.bf16.gmra.mxu0 %v3774
    %v5845 = vpop.f32.mrf.mxu0
    %v5846 = vadd.f32 %v5805, %v5845
    %v5847 = vpop.f32.mrf.mxu0
    %v5848 = vadd.f32 %v5807, %v5847
    %v5849 = vpop.f32.mrf.mxu0
    %v5850 = vpop.f32.mrf.mxu0
    %5851 = vdwg.mxu0
    %5852 = vmatprep.subr.bf16.mxu0 %v5292
    %5853 = vmatpush1.bf16.msra.mxu0 %v5291
    %5854 = vmatprep.subr.bf16.mxu0 %v5286
    %5855 = vmatpush1.bf16.msra.mxu0 %v5285
    %5856 = vmatprep.subr.bf16.mxu0 %v5280
    %5857 = vmatpush1.bf16.msra.mxu0 %v5279
    %5858 = vmatprep.subr.bf16.mxu0 %v5274
    %5859 = vmatpush1.bf16.msra.mxu0 %v5273
    %5860 = vmatprep.subr.bf16.mxu0 %v5268
    %5861 = vmatpush1.bf16.msra.mxu0 %v5267
    %5862 = vmatprep.subr.bf16.mxu0 %v5262
    %5863 = vmatpush1.bf16.msra.mxu0 %v5261
    %5864 = vmatprep.subr.bf16.mxu0 %v5256
    %5865 = vmatpush1.bf16.msra.mxu0 %v5255
    %5866 = vmatprep.subr.bf16.mxu0 %v5250
    %5867 = vmatpush1.bf16.msra.mxu0 %v5249
    %5868 = vmatprep.subr.bf16.mxu0 %v5340
    %5869 = vmatpush2.bf16.msra.mxu0 %v5339
    %5870 = vmatprep.subr.bf16.mxu0 %v5334
    %5871 = vmatpush2.bf16.msra.mxu0 %v5333
    %5872 = vmatprep.subr.bf16.mxu0 %v5328
    %5873 = vmatpush2.bf16.msra.mxu0 %v5327
    %5874 = vmatprep.subr.bf16.mxu0 %v5322
    %5875 = vmatpush2.bf16.msra.mxu0 %v5321
    %5876 = vmatprep.subr.bf16.mxu0 %v5316
    %5877 = vmatpush2.bf16.msra.mxu0 %v5315
    %5878 = vmatprep.subr.bf16.mxu0 %v5310
    %5879 = vmatpush2.bf16.msra.mxu0 %v5309
    %5880 = vmatprep.subr.bf16.mxu0 %v5304
    %5881 = vmatpush2.bf16.msra.mxu0 %v5303
    %5882 = vmatprep.subr.bf16.mxu0 %v5298
    %5883 = vmatpush2.bf16.msra.mxu0 %v5297
    %5884 = vmatprep.mubr.bf16.mxu0 %v3777
    %5885 = vmatmul.mubr.bf16.gmra.mxu0 %v3776
    %v5886 = vpop.f32.mrf.mxu0
    %v5887 = vadd.f32 %v5846, %v5886
    %v5888 = vpop.f32.mrf.mxu0
    %v5889 = vadd.f32 %v5848, %v5888
    %v5890 = vpop.f32.mrf.mxu0
    %v5891 = vpop.f32.mrf.mxu0
    %5892 = vdwg.mxu0
    %5893 = vmatprep.subr.bf16.mxu0 %v5006
    %5894 = vmatpush1.bf16.msra.mxu0 %v5005
    %5895 = vmatprep.subr.bf16.mxu0 %v5000
    %5896 = vmatpush1.bf16.msra.mxu0 %v4999
    %5897 = vmatprep.subr.bf16.mxu0 %v4994
    %5898 = vmatpush1.bf16.msra.mxu0 %v4993
    %5899 = vmatprep.subr.bf16.mxu0 %v4988
    %5900 = vmatpush1.bf16.msra.mxu0 %v4987
    %5901 = vmatprep.subr.bf16.mxu0 %v4982
    %5902 = vmatpush1.bf16.msra.mxu0 %v4981
    %5903 = vmatprep.subr.bf16.mxu0 %v4976
    %5904 = vmatpush1.bf16.msra.mxu0 %v4975
    %5905 = vmatprep.subr.bf16.mxu0 %v4970
    %5906 = vmatpush1.bf16.msra.mxu0 %v4969
    %5907 = vmatprep.subr.bf16.mxu0 %v4964
    %5908 = vmatpush1.bf16.msra.mxu0 %v4963
    %5909 = vmatprep.subr.bf16.mxu0 %v5054
    %5910 = vmatpush2.bf16.msra.mxu0 %v5053
    %5911 = vmatprep.subr.bf16.mxu0 %v5048
    %5912 = vmatpush2.bf16.msra.mxu0 %v5047
    %5913 = vmatprep.subr.bf16.mxu0 %v5042
    %5914 = vmatpush2.bf16.msra.mxu0 %v5041
    %5915 = vmatprep.subr.bf16.mxu0 %v5036
    %5916 = vmatpush2.bf16.msra.mxu0 %v5035
    %5917 = vmatprep.subr.bf16.mxu0 %v5030
    %5918 = vmatpush2.bf16.msra.mxu0 %v5029
    %5919 = vmatprep.subr.bf16.mxu0 %v5024
    %5920 = vmatpush2.bf16.msra.mxu0 %v5023
    %5921 = vmatprep.subr.bf16.mxu0 %v5018
    %5922 = vmatpush2.bf16.msra.mxu0 %v5017
    %5923 = vmatprep.subr.bf16.mxu0 %v5012
    %5924 = vmatpush2.bf16.msra.mxu0 %v5011
    %5925 = vmatprep.mubr.bf16.mxu0 %v3771
    %5926 = vmatmul.mubr.bf16.gmra.mxu0 %v3770
    %v5927 = vpop.f32.mrf.mxu0
    %v5928 = vadd.f32 %v3790, %v5927
    %v5929 = vpop.f32.mrf.mxu0
    %v5930 = vadd.f32 %v3794, %v5929
    %v5931 = vpop.f32.mrf.mxu0
    %v5932 = vpop.f32.mrf.mxu0
    %5933 = vdwg.mxu0
    %5934 = vmatprep.subr.bf16.mxu0 %v5102
    %5935 = vmatpush1.bf16.msra.mxu0 %v5101
    %5936 = vmatprep.subr.bf16.mxu0 %v5096
    %5937 = vmatpush1.bf16.msra.mxu0 %v5095
    %5938 = vmatprep.subr.bf16.mxu0 %v5090
    %5939 = vmatpush1.bf16.msra.mxu0 %v5089
    %5940 = vmatprep.subr.bf16.mxu0 %v5084
    %5941 = vmatpush1.bf16.msra.mxu0 %v5083
    %5942 = vmatprep.subr.bf16.mxu0 %v5078
    %5943 = vmatpush1.bf16.msra.mxu0 %v5077
    %5944 = vmatprep.subr.bf16.mxu0 %v5072
    %5945 = vmatpush1.bf16.msra.mxu0 %v5071
    %5946 = vmatprep.subr.bf16.mxu0 %v5066
    %5947 = vmatpush1.bf16.msra.mxu0 %v5065
    %5948 = vmatprep.subr.bf16.mxu0 %v5060
    %5949 = vmatpush1.bf16.msra.mxu0 %v5059
    %5950 = vmatprep.subr.bf16.mxu0 %v5150
    %5951 = vmatpush2.bf16.msra.mxu0 %v5149
    %5952 = vmatprep.subr.bf16.mxu0 %v5144
    %5953 = vmatpush2.bf16.msra.mxu0 %v5143
    %5954 = vmatprep.subr.bf16.mxu0 %v5138
    %5955 = vmatpush2.bf16.msra.mxu0 %v5137
    %5956 = vmatprep.subr.bf16.mxu0 %v5132
    %5957 = vmatpush2.bf16.msra.mxu0 %v5131
    %5958 = vmatprep.subr.bf16.mxu0 %v5126
    %5959 = vmatpush2.bf16.msra.mxu0 %v5125
    %5960 = vmatprep.subr.bf16.mxu0 %v5120
    %5961 = vmatpush2.bf16.msra.mxu0 %v5119
    %5962 = vmatprep.subr.bf16.mxu0 %v5114
    %5963 = vmatpush2.bf16.msra.mxu0 %v5113
    %5964 = vmatprep.subr.bf16.mxu0 %v5108
    %5965 = vmatpush2.bf16.msra.mxu0 %v5107
    %5966 = vmatprep.mubr.bf16.mxu0 %v3773
    %5967 = vmatmul.mubr.bf16.gmra.mxu0 %v3772
    %v5968 = vpop.f32.mrf.mxu0
    %v5969 = vadd.f32 %v5928, %v5968
    %v5970 = vpop.f32.mrf.mxu0
    %v5971 = vadd.f32 %v5930, %v5970
    %v5972 = vpop.f32.mrf.mxu0
    %v5973 = vpop.f32.mrf.mxu0
    %5974 = vdwg.mxu0
    %5975 = vmatprep.subr.bf16.mxu0 %v5198
    %5976 = vmatpush1.bf16.msra.mxu0 %v5197
    %5977 = vmatprep.subr.bf16.mxu0 %v5192
    %5978 = vmatpush1.bf16.msra.mxu0 %v5191
    %5979 = vmatprep.subr.bf16.mxu0 %v5186
    %5980 = vmatpush1.bf16.msra.mxu0 %v5185
    %5981 = vmatprep.subr.bf16.mxu0 %v5180
    %5982 = vmatpush1.bf16.msra.mxu0 %v5179
    %5983 = vmatprep.subr.bf16.mxu0 %v5174
    %5984 = vmatpush1.bf16.msra.mxu0 %v5173
    %5985 = vmatprep.subr.bf16.mxu0 %v5168
    %5986 = vmatpush1.bf16.msra.mxu0 %v5167
    %5987 = vmatprep.subr.bf16.mxu0 %v5162
    %5988 = vmatpush1.bf16.msra.mxu0 %v5161
    %5989 = vmatprep.subr.bf16.mxu0 %v5156
    %5990 = vmatpush1.bf16.msra.mxu0 %v5155
    %5991 = vmatprep.subr.bf16.mxu0 %v5246
    %5992 = vmatpush2.bf16.msra.mxu0 %v5245
    %5993 = vmatprep.subr.bf16.mxu0 %v5240
    %5994 = vmatpush2.bf16.msra.mxu0 %v5239
    %5995 = vmatprep.subr.bf16.mxu0 %v5234
    %5996 = vmatpush2.bf16.msra.mxu0 %v5233
    %5997 = vmatprep.subr.bf16.mxu0 %v5228
    %5998 = vmatpush2.bf16.msra.mxu0 %v5227
    %5999 = vmatprep.subr.bf16.mxu0 %v5222
    %6000 = vmatpush2.bf16.msra.mxu0 %v5221
    %6001 = vmatprep.subr.bf16.mxu0 %v5216
    %6002 = vmatpush2.bf16.msra.mxu0 %v5215
    %6003 = vmatprep.subr.bf16.mxu0 %v5210
    %6004 = vmatpush2.bf16.msra.mxu0 %v5209
    %6005 = vmatprep.subr.bf16.mxu0 %v5204
    %6006 = vmatpush2.bf16.msra.mxu0 %v5203
    %6007 = vmatprep.mubr.bf16.mxu0 %v3775
    %6008 = vmatmul.mubr.bf16.gmra.mxu0 %v3774
    %v6009 = vpop.f32.mrf.mxu0
    %v6010 = vadd.f32 %v5969, %v6009
    %v6011 = vpop.f32.mrf.mxu0
    %v6012 = vadd.f32 %v5971, %v6011
    %v6013 = vpop.f32.mrf.mxu0
    %v6014 = vpop.f32.mrf.mxu0
    %6015 = vdwg.mxu0
    %6016 = vmatprep.subr.bf16.mxu0 %v5294
    %6017 = vmatpush1.bf16.msra.mxu0 %v5293
    %6018 = vmatprep.subr.bf16.mxu0 %v5288
    %6019 = vmatpush1.bf16.msra.mxu0 %v5287
    %6020 = vmatprep.subr.bf16.mxu0 %v5282
    %6021 = vmatpush1.bf16.msra.mxu0 %v5281
    %6022 = vmatprep.subr.bf16.mxu0 %v5276
    %6023 = vmatpush1.bf16.msra.mxu0 %v5275
    %6024 = vmatprep.subr.bf16.mxu0 %v5270
    %6025 = vmatpush1.bf16.msra.mxu0 %v5269
    %6026 = vmatprep.subr.bf16.mxu0 %v5264
    %6027 = vmatpush1.bf16.msra.mxu0 %v5263
    %6028 = vmatprep.subr.bf16.mxu0 %v5258
    %6029 = vmatpush1.bf16.msra.mxu0 %v5257
    %6030 = vmatprep.subr.bf16.mxu0 %v5252
    %6031 = vmatpush1.bf16.msra.mxu0 %v5251
    %6032 = vmatprep.subr.bf16.mxu0 %v5342
    %6033 = vmatpush2.bf16.msra.mxu0 %v5341
    %6034 = vmatprep.subr.bf16.mxu0 %v5336
    %6035 = vmatpush2.bf16.msra.mxu0 %v5335
    %6036 = vmatprep.subr.bf16.mxu0 %v5330
    %6037 = vmatpush2.bf16.msra.mxu0 %v5329
    %6038 = vmatprep.subr.bf16.mxu0 %v5324
    %6039 = vmatpush2.bf16.msra.mxu0 %v5323
    %6040 = vmatprep.subr.bf16.mxu0 %v5318
    %6041 = vmatpush2.bf16.msra.mxu0 %v5317
    %6042 = vmatprep.subr.bf16.mxu0 %v5312
    %6043 = vmatpush2.bf16.msra.mxu0 %v5311
    %6044 = vmatprep.subr.bf16.mxu0 %v5306
    %6045 = vmatpush2.bf16.msra.mxu0 %v5305
    %6046 = vmatprep.subr.bf16.mxu0 %v5300
    %6047 = vmatpush2.bf16.msra.mxu0 %v5299
    %6048 = vmatprep.mubr.bf16.mxu0 %v3777
    %6049 = vmatmul.mubr.bf16.gmra.mxu0 %v3776
    %v6050 = vpop.f32.mrf.mxu0
    %v6051 = vadd.f32 %v6010, %v6050
    %v6052 = vpop.f32.mrf.mxu0
    %v6053 = vadd.f32 %v6012, %v6052
    %v6054 = vpop.f32.mrf.mxu0
    %v6055 = vpop.f32.mrf.mxu0
    %6056 = vdwg.mxu0
    %6057 = vmatprep.subr.bf16.mxu0 %v5008
    %6058 = vmatpush1.bf16.msra.mxu0 %v5007
    %6059 = vmatprep.subr.bf16.mxu0 %v5002
    %6060 = vmatpush1.bf16.msra.mxu0 %v5001
    %6061 = vmatprep.subr.bf16.mxu0 %v4996
    %6062 = vmatpush1.bf16.msra.mxu0 %v4995
    %6063 = vmatprep.subr.bf16.mxu0 %v4990
    %6064 = vmatpush1.bf16.msra.mxu0 %v4989
    %6065 = vmatprep.subr.bf16.mxu0 %v4984
    %6066 = vmatpush1.bf16.msra.mxu0 %v4983
    %6067 = vmatprep.subr.bf16.mxu0 %v4978
    %6068 = vmatpush1.bf16.msra.mxu0 %v4977
    %6069 = vmatprep.subr.bf16.mxu0 %v4972
    %6070 = vmatpush1.bf16.msra.mxu0 %v4971
    %6071 = vmatprep.subr.bf16.mxu0 %v4966
    %6072 = vmatpush1.bf16.msra.mxu0 %v4965
    %6073 = vmatprep.subr.bf16.mxu0 %v5056
    %6074 = vmatpush2.bf16.msra.mxu0 %v5055
    %6075 = vmatprep.subr.bf16.mxu0 %v5050
    %6076 = vmatpush2.bf16.msra.mxu0 %v5049
    %6077 = vmatprep.subr.bf16.mxu0 %v5044
    %6078 = vmatpush2.bf16.msra.mxu0 %v5043
    %6079 = vmatprep.subr.bf16.mxu0 %v5038
    %6080 = vmatpush2.bf16.msra.mxu0 %v5037
    %6081 = vmatprep.subr.bf16.mxu0 %v5032
    %6082 = vmatpush2.bf16.msra.mxu0 %v5031
    %6083 = vmatprep.subr.bf16.mxu0 %v5026
    %6084 = vmatpush2.bf16.msra.mxu0 %v5025
    %6085 = vmatprep.subr.bf16.mxu0 %v5020
    %6086 = vmatpush2.bf16.msra.mxu0 %v5019
    %6087 = vmatprep.subr.bf16.mxu0 %v5014
    %6088 = vmatpush2.bf16.msra.mxu0 %v5013
    %6089 = vmatprep.mubr.bf16.mxu0 %v3771
    %6090 = vmatmul.mubr.bf16.gmra.mxu0 %v3770
    %v6091 = vpop.f32.mrf.mxu0
    %v6092 = vadd.f32 %v3798, %v6091
    %v6093 = vpop.f32.mrf.mxu0
    %v6094 = vadd.f32 %v3802, %v6093
    %v6095 = vpop.f32.mrf.mxu0
    %v6096 = vpop.f32.mrf.mxu0
    %6097 = vdwg.mxu0
    %6098 = vmatprep.subr.bf16.mxu0 %v5104
    %6099 = vmatpush1.bf16.msra.mxu0 %v5103
    %6100 = vmatprep.subr.bf16.mxu0 %v5098
    %6101 = vmatpush1.bf16.msra.mxu0 %v5097
    %6102 = vmatprep.subr.bf16.mxu0 %v5092
    %6103 = vmatpush1.bf16.msra.mxu0 %v5091
    %6104 = vmatprep.subr.bf16.mxu0 %v5086
    %6105 = vmatpush1.bf16.msra.mxu0 %v5085
    %6106 = vmatprep.subr.bf16.mxu0 %v5080
    %6107 = vmatpush1.bf16.msra.mxu0 %v5079
    %6108 = vmatprep.subr.bf16.mxu0 %v5074
    %6109 = vmatpush1.bf16.msra.mxu0 %v5073
    %6110 = vmatprep.subr.bf16.mxu0 %v5068
    %6111 = vmatpush1.bf16.msra.mxu0 %v5067
    %6112 = vmatprep.subr.bf16.mxu0 %v5062
    %6113 = vmatpush1.bf16.msra.mxu0 %v5061
    %6114 = vmatprep.subr.bf16.mxu0 %v5152
    %6115 = vmatpush2.bf16.msra.mxu0 %v5151
    %6116 = vmatprep.subr.bf16.mxu0 %v5146
    %6117 = vmatpush2.bf16.msra.mxu0 %v5145
    %6118 = vmatprep.subr.bf16.mxu0 %v5140
    %6119 = vmatpush2.bf16.msra.mxu0 %v5139
    %6120 = vmatprep.subr.bf16.mxu0 %v5134
    %6121 = vmatpush2.bf16.msra.mxu0 %v5133
    %6122 = vmatprep.subr.bf16.mxu0 %v5128
    %6123 = vmatpush2.bf16.msra.mxu0 %v5127
    %6124 = vmatprep.subr.bf16.mxu0 %v5122
    %6125 = vmatpush2.bf16.msra.mxu0 %v5121
    %6126 = vmatprep.subr.bf16.mxu0 %v5116
    %6127 = vmatpush2.bf16.msra.mxu0 %v5115
    %6128 = vmatprep.subr.bf16.mxu0 %v5110
    %6129 = vmatpush2.bf16.msra.mxu0 %v5109
    %6130 = vmatprep.mubr.bf16.mxu0 %v3773
    %6131 = vmatmul.mubr.bf16.gmra.mxu0 %v3772
    %v6132 = vpop.f32.mrf.mxu0
    %v6133 = vadd.f32 %v6092, %v6132
    %v6134 = vpop.f32.mrf.mxu0
    %v6135 = vadd.f32 %v6094, %v6134
    %v6136 = vpop.f32.mrf.mxu0
    %v6137 = vpop.f32.mrf.mxu0
    %6138 = vdwg.mxu0
    %6139 = vmatprep.subr.bf16.mxu0 %v5200
    %6140 = vmatpush1.bf16.msra.mxu0 %v5199
    %6141 = vmatprep.subr.bf16.mxu0 %v5194
    %6142 = vmatpush1.bf16.msra.mxu0 %v5193
    %6143 = vmatprep.subr.bf16.mxu0 %v5188
    %6144 = vmatpush1.bf16.msra.mxu0 %v5187
    %6145 = vmatprep.subr.bf16.mxu0 %v5182
    %6146 = vmatpush1.bf16.msra.mxu0 %v5181
    %6147 = vmatprep.subr.bf16.mxu0 %v5176
    %6148 = vmatpush1.bf16.msra.mxu0 %v5175
    %6149 = vmatprep.subr.bf16.mxu0 %v5170
    %6150 = vmatpush1.bf16.msra.mxu0 %v5169
    %6151 = vmatprep.subr.bf16.mxu0 %v5164
    %6152 = vmatpush1.bf16.msra.mxu0 %v5163
    %6153 = vmatprep.subr.bf16.mxu0 %v5158
    %6154 = vmatpush1.bf16.msra.mxu0 %v5157
    %6155 = vmatprep.subr.bf16.mxu0 %v5248
    %6156 = vmatpush2.bf16.msra.mxu0 %v5247
    %6157 = vmatprep.subr.bf16.mxu0 %v5242
    %6158 = vmatpush2.bf16.msra.mxu0 %v5241
    %6159 = vmatprep.subr.bf16.mxu0 %v5236
    %6160 = vmatpush2.bf16.msra.mxu0 %v5235
    %6161 = vmatprep.subr.bf16.mxu0 %v5230
    %6162 = vmatpush2.bf16.msra.mxu0 %v5229
    %6163 = vmatprep.subr.bf16.mxu0 %v5224
    %6164 = vmatpush2.bf16.msra.mxu0 %v5223
    %6165 = vmatprep.subr.bf16.mxu0 %v5218
    %6166 = vmatpush2.bf16.msra.mxu0 %v5217
    %6167 = vmatprep.subr.bf16.mxu0 %v5212
    %6168 = vmatpush2.bf16.msra.mxu0 %v5211
    %6169 = vmatprep.subr.bf16.mxu0 %v5206
    %6170 = vmatpush2.bf16.msra.mxu0 %v5205
    %6171 = vmatprep.mubr.bf16.mxu0 %v3775
    %6172 = vmatmul.mubr.bf16.gmra.mxu0 %v3774
    %v6173 = vpop.f32.mrf.mxu0
    %v6174 = vadd.f32 %v6133, %v6173
    %v6175 = vpop.f32.mrf.mxu0
    %v6176 = vadd.f32 %v6135, %v6175
    %v6177 = vpop.f32.mrf.mxu0
    %v6178 = vpop.f32.mrf.mxu0
    %6179 = vdwg.mxu0
    %6180 = vmatprep.subr.bf16.mxu0 %v5296
    %6181 = vmatpush1.bf16.msra.mxu0 %v5295
    %6182 = vmatprep.subr.bf16.mxu0 %v5290
    %6183 = vmatpush1.bf16.msra.mxu0 %v5289
    %6184 = vmatprep.subr.bf16.mxu0 %v5284
    %6185 = vmatpush1.bf16.msra.mxu0 %v5283
    %6186 = vmatprep.subr.bf16.mxu0 %v5278
    %6187 = vmatpush1.bf16.msra.mxu0 %v5277
    %6188 = vmatprep.subr.bf16.mxu0 %v5272
    %6189 = vmatpush1.bf16.msra.mxu0 %v5271
    %6190 = vmatprep.subr.bf16.mxu0 %v5266
    %6191 = vmatpush1.bf16.msra.mxu0 %v5265
    %6192 = vmatprep.subr.bf16.mxu0 %v5260
    %6193 = vmatpush1.bf16.msra.mxu0 %v5259
    %6194 = vmatprep.subr.bf16.mxu0 %v5254
    %6195 = vmatpush1.bf16.msra.mxu0 %v5253
    %6196 = vmatprep.subr.bf16.mxu0 %v5344
    %6197 = vmatpush2.bf16.msra.mxu0 %v5343
    %6198 = vmatprep.subr.bf16.mxu0 %v5338
    %6199 = vmatpush2.bf16.msra.mxu0 %v5337
    %6200 = vmatprep.subr.bf16.mxu0 %v5332
    %6201 = vmatpush2.bf16.msra.mxu0 %v5331
    %6202 = vmatprep.subr.bf16.mxu0 %v5326
    %6203 = vmatpush2.bf16.msra.mxu0 %v5325
    %6204 = vmatprep.subr.bf16.mxu0 %v5320
    %6205 = vmatpush2.bf16.msra.mxu0 %v5319
    %6206 = vmatprep.subr.bf16.mxu0 %v5314
    %6207 = vmatpush2.bf16.msra.mxu0 %v5313
    %6208 = vmatprep.subr.bf16.mxu0 %v5308
    %6209 = vmatpush2.bf16.msra.mxu0 %v5307
    %6210 = vmatprep.subr.bf16.mxu0 %v5302
    %6211 = vmatpush2.bf16.msra.mxu0 %v5301
    %6212 = vmatprep.mubr.bf16.mxu0 %v3777
    %6213 = vmatmul.mubr.bf16.gmra.mxu0 %v3776
    %v6214 = vpop.f32.mrf.mxu0
    %v6215 = vadd.f32 %v6174, %v6214
    %v6216 = vpop.f32.mrf.mxu0
    %v6217 = vadd.f32 %v6176, %v6216
    %v6218 = vpop.f32.mrf.mxu0
    %v6219 = vpop.f32.mrf.mxu0
    %6220 = vdwg.mxu0
    %v6221 = vtanh.pop %v5887
    %v6222 = vtanh.pop %v5889
    %v6223 = vtanh.pop %v6051
    %v6224 = vtanh.pop %v6053
    %v6225 = vtanh.pop %v6215
    %v6226 = vtanh.pop %v6217
    %6227 = vst [vmem:[%s9] sm:$0xff] %v6221
    %6228 = vst [vmem:[%s9 + $0x8] sm:$0xff] %v6222
    %6229 = vst [vmem:[%s9 + $0x10] sm:$0xff] %v6223
    %6230 = vst [vmem:[%s9 + $0x18] sm:$0xff] %v6224
    %6231 = vst [vmem:[%s9 + $0x20] sm:$0xff] %v6225
    %6232 = vst [vmem:[%s9 + $0x28] sm:$0xff] %v6226
    // Predicated region
    $region62: #{cgenerator_forward.1} parent=1 // pred_check
      _
    $region63: #{cgenerator_forward.1} parent=1 // pred_check_branch
      %6234 = sbr.rel (0) target = $region65
    $region64: #{cgenerator_forward.1} parent=1 // pred_region
      _
    $region65: #{cgenerator_forward.1} parent=1 // pred_fallthru
      _
    // Predicated region
    $region66: #{cgenerator_forward.1} parent=1 // pred_check
      _
    $region67: #{cgenerator_forward.1} parent=1 // pred_check_branch
      %6236 = sbr.rel (0) target = $region69
    $region68: #{cgenerator_forward.1} parent=1 // pred_region
      _
    $region69: #{cgenerator_forward.1} parent=1 // pred_fallthru
      _
    %6237 = vsyncpa [#allocation6], 1
    %6238 = vsyncpa [#allocation8], 1
    %6239 = vsyncpa [#allocation11], 1
    %6240 = vsyncpa [#allocation14], 1
  %6241 = vsyncmov [#allocation4]
  %s6242 = vpop.sfrf %6241
  %p6243 = scmp.eq.s32.totalorder %s6242, 0
  %p6244 = pneg %p6243
  %6246 = shalt.err (%p6244)
  %s6247 = scalar_lea.sflag [#allocation4], 1
  %6248 = vsyncmov %s6247
  %s6249 = vpop.sfrf %6248
  %p6250 = scmp.eq.s32.totalorder %s6249, 0
  %p6251 = pneg %p6250
  %6253 = shalt.err (%p6251)

</llo_original>
